<compile_context>
chip_gen: v7x
topology: tpu7x:2x2x1
jax: 0.10.0
libtpu: 0.0.40
codegen_flags: <defaults>
</compile_context>

<pallas_src>
import jax
import jax.numpy as jnp
from jax import lax
from jax.experimental import pallas as pl
from jax.experimental.pallas import tpu as pltpu


def worker_kernel(x_ref, g_ref, h0_ref, c0_ref, w_x_ref, w_g_ref, b_ref,
                  w_hh_ref, w_fc_ref, b_fc_ref,
                  logits_ref, hT_ref, cT_ref, p_ref, hs_ref):
    """Fused: bulk input projection -> LSTM recurrence -> bulk action head.

    x_ref:      (T*Bp, H)    time-major observations, batch padded to Bp
    g_ref:      (T*Bp, G)    time-major goals
    h0/c0:      (Bp, H)
    w_x:        (H, 4H) f32  input-proj weights, gate order [i|f|o|g]
    w_g:        (G, 4H) f32
    b:          (1, 4H) f32  b_ih + b_hh, gate order [i|f|o|g]
    w_hh:       (H, 4H) bf16 recurrent weights, gate order [i|f|o|g]
    w_fc:       (H, Ap) f32  action head (lane-padded)
    b_fc:       (1, Ap) f32
    logits_ref: (T*Bp, Ap)
    hT/cT:      (Bp, H)
    p_ref:      (T*Bp, 4H) f32 VMEM scratch (precomputed input projection)
    hs_ref:     (T*Bp, H)  f32 VMEM scratch (all h_t, feeds the head matmul)
    """
    Bp, H = h0_ref.shape
    T = x_ref.shape[0] // Bp

    # Bulk input projection for ALL timesteps: one MXU pass, off the serial
    # path.  Gate columns already ordered [i | f | o | g].
    p_ref[...] = (
        jnp.dot(x_ref[...], w_x_ref[...], preferred_element_type=jnp.float32)
        + jnp.dot(g_ref[...], w_g_ref[...], preferred_element_type=jnp.float32)
        + b_ref[...])

    h = h0_ref[...]
    c = c0_ref[...]
    # Static unroll: T is a small trace-time constant.
    for t in range(T):
        row = t * Bp                                   # 8-aligned static offset
        # Only h @ W_hh sits on the serial critical path.  bf16 operands ->
        # single-pass MXU; f32 accumulation.  w_hh_ref read inside the dot so
        # it streams from VMEM instead of pinning the whole vreg file.
        gates = p_ref[pl.ds(row, Bp), :] + jnp.dot(
            h.astype(jnp.bfloat16), w_hh_ref[...],
            preferred_element_type=jnp.float32)        # (Bp, 4H) f32

        # sigmoid(x) = 0.5*tanh(0.5*x) + 0.5 : one EUP pass over the whole
        # contiguous [i|f|o] slab (Bp, 3H); gate math stays in f32.
        sig = 0.5 * jnp.tanh(0.5 * gates[:, :3 * H]) + 0.5
        i_g = sig[:, 0 * H:1 * H]
        f_g = sig[:, 1 * H:2 * H]
        o_g = sig[:, 2 * H:3 * H]
        g_g = jnp.tanh(gates[:, 3 * H:4 * H])

        c = f_g * c + i_g * g_g
        h = o_g * jnp.tanh(c)
        hs_ref[pl.ds(row, Bp), :] = h

    hT_ref[...] = h
    cT_ref[...] = c

    # Action head: one bulk MXU matmul + one lane-dense store, off the serial
    # path.
    logits_ref[...] = (jnp.dot(hs_ref[...], w_fc_ref[...],
                               preferred_element_type=jnp.float32)
                       + b_fc_ref[...])


@jax.jit
def worker_forward(x, goal, h0, c0, params):
    """x: (B, T, H), goal: (B, T, G), h0/c0: (1, B, H) -> (logits, (hT, cT))."""
    w_ih, w_hh, b_ih, b_hh, w_fc, b_fc = params
    B, T, H = x.shape
    G = goal.shape[-1]
    A = w_fc.shape[0]
    Bp = ((B + 7) // 8) * 8                 # pad batch to sublane multiple
    Ap = ((A + 127) // 128) * 128           # pad action dim to lane multiple

    # PyTorch packs LSTM gate rows as [i, f, g, o]; reorder to [i, f, o, g] so
    # the kernel applies one sigmoid over a contiguous 3H slab.
    def gate_perm(w):
        return jnp.concatenate([w[:2 * H], w[3 * H:4 * H], w[2 * H:3 * H]],
                               axis=0)

    w_ih_p = gate_perm(w_ih)                            # (4H, H+G)
    w_hh_p = gate_perm(w_hh)                            # (4H, H)
    b_p = gate_perm(b_ih + b_hh)                        # (4H,)

    w_x = w_ih_p[:, :H].T                               # (H, 4H) f32
    w_g = w_ih_p[:, H:].T                               # (G, 4H) f32
    w_hh_t = w_hh_p.T.astype(jnp.bfloat16)              # (H, 4H) bf16
    b2 = b_p.reshape(1, 4 * H)

    w_fc_p = jnp.zeros((H, Ap), jnp.float32).at[:, :A].set(w_fc.T)
    b_fc_p = jnp.zeros((1, Ap), jnp.float32).at[0, :A].set(b_fc)

    # Layout only: pad batch, go time-major, flatten to 2D so every in-kernel
    # slice/store is (8,128)-tile aligned.  All matmuls happen in the kernel.
    x2 = jnp.transpose(jnp.pad(x, ((0, Bp - B), (0, 0), (0, 0))),
                       (1, 0, 2)).reshape(T * Bp, H)
    g2 = jnp.transpose(jnp.pad(goal, ((0, Bp - B), (0, 0), (0, 0))),
                       (1, 0, 2)).reshape(T * Bp, G)
    h0p = jnp.pad(h0[0], ((0, Bp - B), (0, 0)))
    c0p = jnp.pad(c0[0], ((0, Bp - B), (0, 0)))

    cost = pl.CostEstimate(
        flops=(2 * T * Bp * (H + G) * 4 * H        # input projection
               + 2 * T * Bp * H * 4 * H            # recurrence
               + 2 * T * Bp * H * Ap),             # action head
        transcendentals=4 * T * Bp * H,            # 3H sigmoid-slab + tanh(g) + tanh(c)
        bytes_accessed=4 * (x2.size + g2.size + 2 * Bp * H + w_x.size
                            + w_g.size + b2.size + w_fc_p.size + b_fc_p.size
                            + T * Bp * Ap + 2 * Bp * H) + 2 * w_hh_t.size,
    )

    vmem = pl.BlockSpec(memory_space=pltpu.MemorySpace.VMEM)
    logits_p, hT, cT = pl.pallas_call(
        worker_kernel,
        out_shape=(
            jax.ShapeDtypeStruct((T * Bp, Ap), jnp.float32),
            jax.ShapeDtypeStruct((Bp, H), jnp.float32),
            jax.ShapeDtypeStruct((Bp, H), jnp.float32),
        ),
        in_specs=[vmem] * 10,
        out_specs=(vmem, vmem, vmem),
        scratch_shapes=[pltpu.VMEM((T * Bp, 4 * H), jnp.float32),
                        pltpu.VMEM((T * Bp, H), jnp.float32)],
        cost_estimate=cost,
    )(x2, g2, h0p, c0p, w_x, w_g, b2, w_hh_t, w_fc_p, b_fc_p)

    logits = jnp.transpose(logits_p.reshape(T, Bp, Ap), (1, 0, 2))[:B, :, :A]
    return logits, (hT[:B][None], cT[:B][None])


def reference_forward(x, goal, h0, c0, params):
    """Pure-JAX reference mirroring torch.nn.LSTM(batch_first=True) + Linear."""
    w_ih, w_hh, b_ih, b_hh, w_fc, b_fc = params
    H = w_hh.shape[1]
    hi = lax.Precision.HIGHEST
    xg = jnp.concatenate([x, goal], axis=-1)          # (B, T, Din)

    def step(carry, x_t):
        h, c = carry
        gates = (jnp.dot(x_t, w_ih.T, precision=hi) + b_ih
                 + jnp.dot(h, w_hh.T, precision=hi) + b_hh)
        i_g = jax.nn.sigmoid(gates[:, 0 * H:1 * H])
        f_g = jax.nn.sigmoid(gates[:, 1 * H:2 * H])
        g_g = jnp.tanh(gates[:, 2 * H:3 * H])
        o_g = jax.nn.sigmoid(gates[:, 3 * H:4 * H])
        c_new = f_g * c + i_g * g_g
        h_new = o_g * jnp.tanh(c_new)
        return (h_new, c_new), h_new

    (hT, cT), hs = lax.scan(step, (h0[0], c0[0]),
                            jnp.transpose(xg, (1, 0, 2)))
    lstm_out = jnp.transpose(hs, (1, 0, 2))           # (B, T, H)
    logits = jnp.dot(lstm_out, w_fc.T, precision=hi) + b_fc
    return logits, (hT[None], cT[None])


def init_params(key, hidden_dim, goal_dim, num_actions):
    """Deterministic init matching PyTorch default U(-1/sqrt(H), 1/sqrt(H))."""
    din = hidden_dim + goal_dim
    k_lstm = 1.0 / jnp.sqrt(hidden_dim)
    k_fc = 1.0 / jnp.sqrt(hidden_dim)
    ks = jax.random.split(key, 6)
    w_ih = jax.random.uniform(ks[0], (4 * hidden_dim, din),
                              jnp.float32, -k_lstm, k_lstm)
    w_hh = jax.random.uniform(ks[1], (4 * hidden_dim, hidden_dim),
                              jnp.float32, -k_lstm, k_lstm)
    b_ih = jax.random.uniform(ks[2], (4 * hidden_dim,),
                              jnp.float32, -k_lstm, k_lstm)
    b_hh = jax.random.uniform(ks[3], (4 * hidden_dim,),
                              jnp.float32, -k_lstm, k_lstm)
    w_fc = jax.random.uniform(ks[4], (num_actions, hidden_dim),
                              jnp.float32, -k_fc, k_fc)
    b_fc = jax.random.uniform(ks[5], (num_actions,),
                              jnp.float32, -k_fc, k_fc)
    return (w_ih, w_hh, b_ih, b_hh, w_fc, b_fc)


if __name__ == "__main__":
    # Shapes from the spec: hidden_dim=128, goal_dim=16, num_actions=4.
    #   x: (B, T, hidden_dim), goal: (B, T, goal_dim),
    #   hx = (h0, c0) each (1, B, hidden_dim)
    B, T = 2, 8
    hidden_dim, goal_dim, num_actions = 128, 16, 4

    key = jax.random.PRNGKey(0)
    k_x, k_g, k_h, k_c, k_p = jax.random.split(key, 5)

    x = jax.random.normal(k_x, (B, T, hidden_dim), jnp.float32)
    goal = jax.random.normal(k_g, (B, T, goal_dim), jnp.float32)
    h0 = jax.random.normal(k_h, (1, B, hidden_dim), jnp.float32)
    c0 = jax.random.normal(k_c, (1, B, hidden_dim), jnp.float32)
    params = init_params(k_p, hidden_dim, goal_dim, num_actions)

    logits, (hT, cT) = worker_forward(x, goal, h0, c0, params)
    jax.block_until_ready((logits, hT, cT))

    # Cross-check against pure-JAX reference (bf16 recurrence operands ->
    # slightly looser tolerance than full-f32).
    ref_logits, (ref_hT, ref_cT) = reference_forward(x, goal, h0, c0, params)
    assert logits.shape == (B, T, num_actions)
    assert hT.shape == (1, B, hidden_dim) and cT.shape == (1, B, hidden_dim)
    assert jnp.allclose(logits, ref_logits, atol=5e-3, rtol=5e-3)
    assert jnp.allclose(hT, ref_hT, atol=5e-3, rtol=5e-3)
    assert jnp.allclose(cT, ref_cT, atol=5e-3, rtol=5e-3)

    print("KERNEL_OK")
</pallas_src>

<mosaic_0001>
module attributes {stable_mosaic.version = 11 : i64} {
  func.func @worker_kernel(%arg0: memref<64x128xf32, #tpu.memory_space<vmem>>, %arg1: memref<64x16xf32, #tpu.memory_space<vmem>>, %arg2: memref<8x128xf32, #tpu.memory_space<vmem>>, %arg3: memref<8x128xf32, #tpu.memory_space<vmem>>, %arg4: memref<128x512xf32, #tpu.memory_space<vmem>>, %arg5: memref<16x512xf32, #tpu.memory_space<vmem>>, %arg6: memref<1x512xf32, #tpu.memory_space<vmem>>, %arg7: memref<128x512xbf16, #tpu.memory_space<vmem>>, %arg8: memref<128x128xf32, #tpu.memory_space<vmem>>, %arg9: memref<1x128xf32, #tpu.memory_space<vmem>>, %arg10: memref<64x128xf32, #tpu.memory_space<vmem>>, %arg11: memref<8x128xf32, #tpu.memory_space<vmem>>, %arg12: memref<8x128xf32, #tpu.memory_space<vmem>>, %arg13: memref<64x512xf32, #tpu.memory_space<vmem>>, %arg14: memref<64x128xf32, #tpu.memory_space<vmem>>) attributes {dimension_semantics = [], scalar_prefetch = 0 : i64, scratch_operands = 2 : i64, tpu.core_type = #tpu.core_type<tc>} {
    %c0 = arith.constant 0 : index
    %c0_0 = arith.constant 0 : index
    %0 = vector.load %arg0[%c0, %c0_0] : memref<64x128xf32, #tpu.memory_space<vmem>>, vector<64x128xf32>
    %c0_1 = arith.constant 0 : index
    %c0_2 = arith.constant 0 : index
    %1 = vector.load %arg4[%c0_1, %c0_2] : memref<128x512xf32, #tpu.memory_space<vmem>>, vector<128x512xf32>
    %cst = arith.constant dense<0.000000e+00> : vector<64x512xf32>
    %2 = tpu.matmul %0, %1, %cst {dimension_numbers = #tpu.dot_dimension_numbers<[1], [0], [0], [1], [0, 0, 1, 1], [], []>} : vector<64x128xf32>, vector<128x512xf32>, vector<64x512xf32> -> vector<64x512xf32>
    %c0_3 = arith.constant 0 : index
    %c0_4 = arith.constant 0 : index
    %3 = vector.load %arg1[%c0_3, %c0_4] : memref<64x16xf32, #tpu.memory_space<vmem>>, vector<64x16xf32>
    %c0_5 = arith.constant 0 : index
    %c0_6 = arith.constant 0 : index
    %4 = vector.load %arg5[%c0_5, %c0_6] : memref<16x512xf32, #tpu.memory_space<vmem>>, vector<16x512xf32>
    %cst_7 = arith.constant dense<0.000000e+00> : vector<64x512xf32>
    %5 = tpu.matmul %3, %4, %cst_7 {dimension_numbers = #tpu.dot_dimension_numbers<[1], [0], [0], [1], [0, 0, 1, 1], [], []>} : vector<64x16xf32>, vector<16x512xf32>, vector<64x512xf32> -> vector<64x512xf32>
    %6 = arith.addf %2, %5 : vector<64x512xf32>
    %c0_8 = arith.constant 0 : index
    %c0_9 = arith.constant 0 : index
    %7 = vector.load %arg6[%c0_8, %c0_9] : memref<1x512xf32, #tpu.memory_space<vmem>>, vector<1x512xf32>
    %8 = vector.broadcast %7 : vector<1x512xf32> to vector<64x512xf32>
    %9 = arith.addf %6, %8 : vector<64x512xf32>
    %c0_10 = arith.constant 0 : index
    %c0_11 = arith.constant 0 : index
    %10 = vector.load %arg13[%c0_10, %c0_11] : memref<64x512xf32, #tpu.memory_space<vmem>>, vector<64x512xf32>
    tpu.vector_store %arg13[%c0_10, %c0_11], %9 {strides = array<i32>} : memref<64x512xf32, #tpu.memory_space<vmem>>, vector<64x512xf32>,
    %c0_12 = arith.constant 0 : index
    %c0_13 = arith.constant 0 : index
    %11 = vector.load %arg2[%c0_12, %c0_13] : memref<8x128xf32, #tpu.memory_space<vmem>>, vector<8x128xf32>
    %c0_14 = arith.constant 0 : index
    %c0_15 = arith.constant 0 : index
    %12 = vector.load %arg3[%c0_14, %c0_15] : memref<8x128xf32, #tpu.memory_space<vmem>>, vector<8x128xf32>
    %c0_16 = arith.constant 0 : index
    %c0_17 = arith.constant 0 : index
    %13 = vector.load %arg13[%c0_16, %c0_17] : memref<64x512xf32, #tpu.memory_space<vmem>>, vector<8x512xf32>
    %14 = arith.truncf %11 : vector<8x128xf32> to vector<8x128xbf16>
    %c0_18 = arith.constant 0 : index
    %c0_19 = arith.constant 0 : index
    %15 = vector.load %arg7[%c0_18, %c0_19] : memref<128x512xbf16, #tpu.memory_space<vmem>>, vector<128x512xbf16>
    %cst_20 = arith.constant dense<0.000000e+00> : vector<8x512xf32>
    %16 = tpu.matmul %14, %15, %cst_20 {dimension_numbers = #tpu.dot_dimension_numbers<[1], [0], [0], [1], [0, 0, 1, 1], [], []>} : vector<8x128xbf16>, vector<128x512xbf16>, vector<8x512xf32> -> vector<8x512xf32>
    %17 = arith.addf %13, %16 : vector<8x512xf32>
    %18 = vector.extract_strided_slice %17 {offsets = [0, 0], sizes = [8, 384], strides = [1, 1]} : vector<8x512xf32> to vector<8x384xf32>
    %cst_21 = arith.constant 5.000000e-01 : f32
    %19 = vector.broadcast %cst_21 : f32 to vector<8x384xf32>
    %20 = arith.mulf %19, %18 : vector<8x384xf32>
    %21 = math.tanh %20 : vector<8x384xf32>
    %cst_22 = arith.constant 5.000000e-01 : f32
    %22 = vector.broadcast %cst_22 : f32 to vector<8x384xf32>
    %23 = arith.mulf %22, %21 : vector<8x384xf32>
    %cst_23 = arith.constant 5.000000e-01 : f32
    %24 = vector.broadcast %cst_23 : f32 to vector<8x384xf32>
    %25 = arith.addf %23, %24 : vector<8x384xf32>
    %26 = vector.extract_strided_slice %25 {offsets = [0, 0], sizes = [8, 128], strides = [1, 1]} : vector<8x384xf32> to vector<8x128xf32>
    %27 = vector.extract_strided_slice %25 {offsets = [0, 128], sizes = [8, 128], strides = [1, 1]} : vector<8x384xf32> to vector<8x128xf32>
    %28 = vector.extract_strided_slice %25 {offsets = [0, 256], sizes = [8, 128], strides = [1, 1]} : vector<8x384xf32> to vector<8x128xf32>
    %29 = vector.extract_strided_slice %17 {offsets = [0, 384], sizes = [8, 128], strides = [1, 1]} : vector<8x512xf32> to vector<8x128xf32>
    %30 = math.tanh %29 : vector<8x128xf32>
    %31 = arith.mulf %27, %12 : vector<8x128xf32>
    %32 = arith.mulf %26, %30 : vector<8x128xf32>
    %33 = arith.addf %31, %32 : vector<8x128xf32>
    %34 = math.tanh %33 : vector<8x128xf32>
    %35 = arith.mulf %28, %34 : vector<8x128xf32>
    %c0_24 = arith.constant 0 : index
    %c0_25 = arith.constant 0 : index
    %36 = vector.load %arg14[%c0_24, %c0_25] : memref<64x128xf32, #tpu.memory_space<vmem>>, vector<8x128xf32>
    tpu.vector_store %arg14[%c0_24, %c0_25], %35 {strides = array<i32>} : memref<64x128xf32, #tpu.memory_space<vmem>>, vector<8x128xf32>,
    %c8 = arith.constant 8 : index
    %c0_26 = arith.constant 0 : index
    %37 = vector.load %arg13[%c8, %c0_26] : memref<64x512xf32, #tpu.memory_space<vmem>>, vector<8x512xf32>
    %38 = arith.truncf %35 : vector<8x128xf32> to vector<8x128xbf16>
    %c0_27 = arith.constant 0 : index
    %c0_28 = arith.constant 0 : index
    %39 = vector.load %arg7[%c0_27, %c0_28] : memref<128x512xbf16, #tpu.memory_space<vmem>>, vector<128x512xbf16>
    %cst_29 = arith.constant dense<0.000000e+00> : vector<8x512xf32>
    %40 = tpu.matmul %38, %39, %cst_29 {dimension_numbers = #tpu.dot_dimension_numbers<[1], [0], [0], [1], [0, 0, 1, 1], [], []>} : vector<8x128xbf16>, vector<128x512xbf16>, vector<8x512xf32> -> vector<8x512xf32>
    %41 = arith.addf %37, %40 : vector<8x512xf32>
    %42 = vector.extract_strided_slice %41 {offsets = [0, 0], sizes = [8, 384], strides = [1, 1]} : vector<8x512xf32> to vector<8x384xf32>
    %cst_30 = arith.constant 5.000000e-01 : f32
    %43 = vector.broadcast %cst_30 : f32 to vector<8x384xf32>
    %44 = arith.mulf %43, %42 : vector<8x384xf32>
    %45 = math.tanh %44 : vector<8x384xf32>
    %cst_31 = arith.constant 5.000000e-01 : f32
    %46 = vector.broadcast %cst_31 : f32 to vector<8x384xf32>
    %47 = arith.mulf %46, %45 : vector<8x384xf32>
    %cst_32 = arith.constant 5.000000e-01 : f32
    %48 = vector.broadcast %cst_32 : f32 to vector<8x384xf32>
    %49 = arith.addf %47, %48 : vector<8x384xf32>
    %50 = vector.extract_strided_slice %49 {offsets = [0, 0], sizes = [8, 128], strides = [1, 1]} : vector<8x384xf32> to vector<8x128xf32>
    %51 = vector.extract_strided_slice %49 {offsets = [0, 128], sizes = [8, 128], strides = [1, 1]} : vector<8x384xf32> to vector<8x128xf32>
    %52 = vector.extract_strided_slice %49 {offsets = [0, 256], sizes = [8, 128], strides = [1, 1]} : vector<8x384xf32> to vector<8x128xf32>
    %53 = vector.extract_strided_slice %41 {offsets = [0, 384], sizes = [8, 128], strides = [1, 1]} : vector<8x512xf32> to vector<8x128xf32>
    %54 = math.tanh %53 : vector<8x128xf32>
    %55 = arith.mulf %51, %33 : vector<8x128xf32>
    %56 = arith.mulf %50, %54 : vector<8x128xf32>
    %57 = arith.addf %55, %56 : vector<8x128xf32>
    %58 = math.tanh %57 : vector<8x128xf32>
    %59 = arith.mulf %52, %58 : vector<8x128xf32>
    %c8_33 = arith.constant 8 : index
    %c0_34 = arith.constant 0 : index
    %60 = vector.load %arg14[%c8_33, %c0_34] : memref<64x128xf32, #tpu.memory_space<vmem>>, vector<8x128xf32>
    tpu.vector_store %arg14[%c8_33, %c0_34], %59 {strides = array<i32>} : memref<64x128xf32, #tpu.memory_space<vmem>>, vector<8x128xf32>,
    %c16 = arith.constant 16 : index
    %c0_35 = arith.constant 0 : index
    %61 = vector.load %arg13[%c16, %c0_35] : memref<64x512xf32, #tpu.memory_space<vmem>>, vector<8x512xf32>
    %62 = arith.truncf %59 : vector<8x128xf32> to vector<8x128xbf16>
    %c0_36 = arith.constant 0 : index
    %c0_37 = arith.constant 0 : index
    %63 = vector.load %arg7[%c0_36, %c0_37] : memref<128x512xbf16, #tpu.memory_space<vmem>>, vector<128x512xbf16>
    %cst_38 = arith.constant dense<0.000000e+00> : vector<8x512xf32>
    %64 = tpu.matmul %62, %63, %cst_38 {dimension_numbers = #tpu.dot_dimension_numbers<[1], [0], [0], [1], [0, 0, 1, 1], [], []>} : vector<8x128xbf16>, vector<128x512xbf16>, vector<8x512xf32> -> vector<8x512xf32>
    %65 = arith.addf %61, %64 : vector<8x512xf32>
    %66 = vector.extract_strided_slice %65 {offsets = [0, 0], sizes = [8, 384], strides = [1, 1]} : vector<8x512xf32> to vector<8x384xf32>
    %cst_39 = arith.constant 5.000000e-01 : f32
    %67 = vector.broadcast %cst_39 : f32 to vector<8x384xf32>
    %68 = arith.mulf %67, %66 : vector<8x384xf32>
    %69 = math.tanh %68 : vector<8x384xf32>
    %cst_40 = arith.constant 5.000000e-01 : f32
    %70 = vector.broadcast %cst_40 : f32 to vector<8x384xf32>
    %71 = arith.mulf %70, %69 : vector<8x384xf32>
    %cst_41 = arith.constant 5.000000e-01 : f32
    %72 = vector.broadcast %cst_41 : f32 to vector<8x384xf32>
    %73 = arith.addf %71, %72 : vector<8x384xf32>
    %74 = vector.extract_strided_slice %73 {offsets = [0, 0], sizes = [8, 128], strides = [1, 1]} : vector<8x384xf32> to vector<8x128xf32>
    %75 = vector.extract_strided_slice %73 {offsets = [0, 128], sizes = [8, 128], strides = [1, 1]} : vector<8x384xf32> to vector<8x128xf32>
    %76 = vector.extract_strided_slice %73 {offsets = [0, 256], sizes = [8, 128], strides = [1, 1]} : vector<8x384xf32> to vector<8x128xf32>
    %77 = vector.extract_strided_slice %65 {offsets = [0, 384], sizes = [8, 128], strides = [1, 1]} : vector<8x512xf32> to vector<8x128xf32>
    %78 = math.tanh %77 : vector<8x128xf32>
    %79 = arith.mulf %75, %57 : vector<8x128xf32>
    %80 = arith.mulf %74, %78 : vector<8x128xf32>
    %81 = arith.addf %79, %80 : vector<8x128xf32>
    %82 = math.tanh %81 : vector<8x128xf32>
    %83 = arith.mulf %76, %82 : vector<8x128xf32>
    %c16_42 = arith.constant 16 : index
    %c0_43 = arith.constant 0 : index
    %84 = vector.load %arg14[%c16_42, %c0_43] : memref<64x128xf32, #tpu.memory_space<vmem>>, vector<8x128xf32>
    tpu.vector_store %arg14[%c16_42, %c0_43], %83 {strides = array<i32>} : memref<64x128xf32, #tpu.memory_space<vmem>>, vector<8x128xf32>,
    %c24 = arith.constant 24 : index
    %c0_44 = arith.constant 0 : index
    %85 = vector.load %arg13[%c24, %c0_44] : memref<64x512xf32, #tpu.memory_space<vmem>>, vector<8x512xf32>
    %86 = arith.truncf %83 : vector<8x128xf32> to vector<8x128xbf16>
    %c0_45 = arith.constant 0 : index
    %c0_46 = arith.constant 0 : index
    %87 = vector.load %arg7[%c0_45, %c0_46] : memref<128x512xbf16, #tpu.memory_space<vmem>>, vector<128x512xbf16>
    %cst_47 = arith.constant dense<0.000000e+00> : vector<8x512xf32>
    %88 = tpu.matmul %86, %87, %cst_47 {dimension_numbers = #tpu.dot_dimension_numbers<[1], [0], [0], [1], [0, 0, 1, 1], [], []>} : vector<8x128xbf16>, vector<128x512xbf16>, vector<8x512xf32> -> vector<8x512xf32>
    %89 = arith.addf %85, %88 : vector<8x512xf32>
    %90 = vector.extract_strided_slice %89 {offsets = [0, 0], sizes = [8, 384], strides = [1, 1]} : vector<8x512xf32> to vector<8x384xf32>
    %cst_48 = arith.constant 5.000000e-01 : f32
    %91 = vector.broadcast %cst_48 : f32 to vector<8x384xf32>
    %92 = arith.mulf %91, %90 : vector<8x384xf32>
    %93 = math.tanh %92 : vector<8x384xf32>
    %cst_49 = arith.constant 5.000000e-01 : f32
    %94 = vector.broadcast %cst_49 : f32 to vector<8x384xf32>
    %95 = arith.mulf %94, %93 : vector<8x384xf32>
    %cst_50 = arith.constant 5.000000e-01 : f32
    %96 = vector.broadcast %cst_50 : f32 to vector<8x384xf32>
    %97 = arith.addf %95, %96 : vector<8x384xf32>
    %98 = vector.extract_strided_slice %97 {offsets = [0, 0], sizes = [8, 128], strides = [1, 1]} : vector<8x384xf32> to vector<8x128xf32>
    %99 = vector.extract_strided_slice %97 {offsets = [0, 128], sizes = [8, 128], strides = [1, 1]} : vector<8x384xf32> to vector<8x128xf32>
    %100 = vector.extract_strided_slice %97 {offsets = [0, 256], sizes = [8, 128], strides = [1, 1]} : vector<8x384xf32> to vector<8x128xf32>
    %101 = vector.extract_strided_slice %89 {offsets = [0, 384], sizes = [8, 128], strides = [1, 1]} : vector<8x512xf32> to vector<8x128xf32>
    %102 = math.tanh %101 : vector<8x128xf32>
    %103 = arith.mulf %99, %81 : vector<8x128xf32>
    %104 = arith.mulf %98, %102 : vector<8x128xf32>
    %105 = arith.addf %103, %104 : vector<8x128xf32>
    %106 = math.tanh %105 : vector<8x128xf32>
    %107 = arith.mulf %100, %106 : vector<8x128xf32>
    %c24_51 = arith.constant 24 : index
    %c0_52 = arith.constant 0 : index
    %108 = vector.load %arg14[%c24_51, %c0_52] : memref<64x128xf32, #tpu.memory_space<vmem>>, vector<8x128xf32>
    tpu.vector_store %arg14[%c24_51, %c0_52], %107 {strides = array<i32>} : memref<64x128xf32, #tpu.memory_space<vmem>>, vector<8x128xf32>,
    %c32 = arith.constant 32 : index
    %c0_53 = arith.constant 0 : index
    %109 = vector.load %arg13[%c32, %c0_53] : memref<64x512xf32, #tpu.memory_space<vmem>>, vector<8x512xf32>
    %110 = arith.truncf %107 : vector<8x128xf32> to vector<8x128xbf16>
    %c0_54 = arith.constant 0 : index
    %c0_55 = arith.constant 0 : index
    %111 = vector.load %arg7[%c0_54, %c0_55] : memref<128x512xbf16, #tpu.memory_space<vmem>>, vector<128x512xbf16>
    %cst_56 = arith.constant dense<0.000000e+00> : vector<8x512xf32>
    %112 = tpu.matmul %110, %111, %cst_56 {dimension_numbers = #tpu.dot_dimension_numbers<[1], [0], [0], [1], [0, 0, 1, 1], [], []>} : vector<8x128xbf16>, vector<128x512xbf16>, vector<8x512xf32> -> vector<8x512xf32>
    %113 = arith.addf %109, %112 : vector<8x512xf32>
    %114 = vector.extract_strided_slice %113 {offsets = [0, 0], sizes = [8, 384], strides = [1, 1]} : vector<8x512xf32> to vector<8x384xf32>
    %cst_57 = arith.constant 5.000000e-01 : f32
    %115 = vector.broadcast %cst_57 : f32 to vector<8x384xf32>
    %116 = arith.mulf %115, %114 : vector<8x384xf32>
    %117 = math.tanh %116 : vector<8x384xf32>
    %cst_58 = arith.constant 5.000000e-01 : f32
    %118 = vector.broadcast %cst_58 : f32 to vector<8x384xf32>
    %119 = arith.mulf %118, %117 : vector<8x384xf32>
    %cst_59 = arith.constant 5.000000e-01 : f32
    %120 = vector.broadcast %cst_59 : f32 to vector<8x384xf32>
    %121 = arith.addf %119, %120 : vector<8x384xf32>
    %122 = vector.extract_strided_slice %121 {offsets = [0, 0], sizes = [8, 128], strides = [1, 1]} : vector<8x384xf32> to vector<8x128xf32>
    %123 = vector.extract_strided_slice %121 {offsets = [0, 128], sizes = [8, 128], strides = [1, 1]} : vector<8x384xf32> to vector<8x128xf32>
    %124 = vector.extract_strided_slice %121 {offsets = [0, 256], sizes = [8, 128], strides = [1, 1]} : vector<8x384xf32> to vector<8x128xf32>
    %125 = vector.extract_strided_slice %113 {offsets = [0, 384], sizes = [8, 128], strides = [1, 1]} : vector<8x512xf32> to vector<8x128xf32>
    %126 = math.tanh %125 : vector<8x128xf32>
    %127 = arith.mulf %123, %105 : vector<8x128xf32>
    %128 = arith.mulf %122, %126 : vector<8x128xf32>
    %129 = arith.addf %127, %128 : vector<8x128xf32>
    %130 = math.tanh %129 : vector<8x128xf32>
    %131 = arith.mulf %124, %130 : vector<8x128xf32>
    %c32_60 = arith.constant 32 : index
    %c0_61 = arith.constant 0 : index
    %132 = vector.load %arg14[%c32_60, %c0_61] : memref<64x128xf32, #tpu.memory_space<vmem>>, vector<8x128xf32>
    tpu.vector_store %arg14[%c32_60, %c0_61], %131 {strides = array<i32>} : memref<64x128xf32, #tpu.memory_space<vmem>>, vector<8x128xf32>,
    %c40 = arith.constant 40 : index
    %c0_62 = arith.constant 0 : index
    %133 = vector.load %arg13[%c40, %c0_62] : memref<64x512xf32, #tpu.memory_space<vmem>>, vector<8x512xf32>
    %134 = arith.truncf %131 : vector<8x128xf32> to vector<8x128xbf16>
    %c0_63 = arith.constant 0 : index
    %c0_64 = arith.constant 0 : index
    %135 = vector.load %arg7[%c0_63, %c0_64] : memref<128x512xbf16, #tpu.memory_space<vmem>>, vector<128x512xbf16>
    %cst_65 = arith.constant dense<0.000000e+00> : vector<8x512xf32>
    %136 = tpu.matmul %134, %135, %cst_65 {dimension_numbers = #tpu.dot_dimension_numbers<[1], [0], [0], [1], [0, 0, 1, 1], [], []>} : vector<8x128xbf16>, vector<128x512xbf16>, vector<8x512xf32> -> vector<8x512xf32>
    %137 = arith.addf %133, %136 : vector<8x512xf32>
    %138 = vector.extract_strided_slice %137 {offsets = [0, 0], sizes = [8, 384], strides = [1, 1]} : vector<8x512xf32> to vector<8x384xf32>
    %cst_66 = arith.constant 5.000000e-01 : f32
    %139 = vector.broadcast %cst_66 : f32 to vector<8x384xf32>
    %140 = arith.mulf %139, %138 : vector<8x384xf32>
    %141 = math.tanh %140 : vector<8x384xf32>
    %cst_67 = arith.constant 5.000000e-01 : f32
    %142 = vector.broadcast %cst_67 : f32 to vector<8x384xf32>
    %143 = arith.mulf %142, %141 : vector<8x384xf32>
    %cst_68 = arith.constant 5.000000e-01 : f32
    %144 = vector.broadcast %cst_68 : f32 to vector<8x384xf32>
    %145 = arith.addf %143, %144 : vector<8x384xf32>
    %146 = vector.extract_strided_slice %145 {offsets = [0, 0], sizes = [8, 128], strides = [1, 1]} : vector<8x384xf32> to vector<8x128xf32>
    %147 = vector.extract_strided_slice %145 {offsets = [0, 128], sizes = [8, 128], strides = [1, 1]} : vector<8x384xf32> to vector<8x128xf32>
    %148 = vector.extract_strided_slice %145 {offsets = [0, 256], sizes = [8, 128], strides = [1, 1]} : vector<8x384xf32> to vector<8x128xf32>
    %149 = vector.extract_strided_slice %137 {offsets = [0, 384], sizes = [8, 128], strides = [1, 1]} : vector<8x512xf32> to vector<8x128xf32>
    %150 = math.tanh %149 : vector<8x128xf32>
    %151 = arith.mulf %147, %129 : vector<8x128xf32>
    %152 = arith.mulf %146, %150 : vector<8x128xf32>
    %153 = arith.addf %151, %152 : vector<8x128xf32>
    %154 = math.tanh %153 : vector<8x128xf32>
    %155 = arith.mulf %148, %154 : vector<8x128xf32>
    %c40_69 = arith.constant 40 : index
    %c0_70 = arith.constant 0 : index
    %156 = vector.load %arg14[%c40_69, %c0_70] : memref<64x128xf32, #tpu.memory_space<vmem>>, vector<8x128xf32>
    tpu.vector_store %arg14[%c40_69, %c0_70], %155 {strides = array<i32>} : memref<64x128xf32, #tpu.memory_space<vmem>>, vector<8x128xf32>,
    %c48 = arith.constant 48 : index
    %c0_71 = arith.constant 0 : index
    %157 = vector.load %arg13[%c48, %c0_71] : memref<64x512xf32, #tpu.memory_space<vmem>>, vector<8x512xf32>
    %158 = arith.truncf %155 : vector<8x128xf32> to vector<8x128xbf16>
    %c0_72 = arith.constant 0 : index
    %c0_73 = arith.constant 0 : index
    %159 = vector.load %arg7[%c0_72, %c0_73] : memref<128x512xbf16, #tpu.memory_space<vmem>>, vector<128x512xbf16>
    %cst_74 = arith.constant dense<0.000000e+00> : vector<8x512xf32>
    %160 = tpu.matmul %158, %159, %cst_74 {dimension_numbers = #tpu.dot_dimension_numbers<[1], [0], [0], [1], [0, 0, 1, 1], [], []>} : vector<8x128xbf16>, vector<128x512xbf16>, vector<8x512xf32> -> vector<8x512xf32>
    %161 = arith.addf %157, %160 : vector<8x512xf32>
    %162 = vector.extract_strided_slice %161 {offsets = [0, 0], sizes = [8, 384], strides = [1, 1]} : vector<8x512xf32> to vector<8x384xf32>
    %cst_75 = arith.constant 5.000000e-01 : f32
    %163 = vector.broadcast %cst_75 : f32 to vector<8x384xf32>
    %164 = arith.mulf %163, %162 : vector<8x384xf32>
    %165 = math.tanh %164 : vector<8x384xf32>
    %cst_76 = arith.constant 5.000000e-01 : f32
    %166 = vector.broadcast %cst_76 : f32 to vector<8x384xf32>
    %167 = arith.mulf %166, %165 : vector<8x384xf32>
    %cst_77 = arith.constant 5.000000e-01 : f32
    %168 = vector.broadcast %cst_77 : f32 to vector<8x384xf32>
    %169 = arith.addf %167, %168 : vector<8x384xf32>
    %170 = vector.extract_strided_slice %169 {offsets = [0, 0], sizes = [8, 128], strides = [1, 1]} : vector<8x384xf32> to vector<8x128xf32>
    %171 = vector.extract_strided_slice %169 {offsets = [0, 128], sizes = [8, 128], strides = [1, 1]} : vector<8x384xf32> to vector<8x128xf32>
    %172 = vector.extract_strided_slice %169 {offsets = [0, 256], sizes = [8, 128], strides = [1, 1]} : vector<8x384xf32> to vector<8x128xf32>
    %173 = vector.extract_strided_slice %161 {offsets = [0, 384], sizes = [8, 128], strides = [1, 1]} : vector<8x512xf32> to vector<8x128xf32>
    %174 = math.tanh %173 : vector<8x128xf32>
    %175 = arith.mulf %171, %153 : vector<8x128xf32>
    %176 = arith.mulf %170, %174 : vector<8x128xf32>
    %177 = arith.addf %175, %176 : vector<8x128xf32>
    %178 = math.tanh %177 : vector<8x128xf32>
    %179 = arith.mulf %172, %178 : vector<8x128xf32>
    %c48_78 = arith.constant 48 : index
    %c0_79 = arith.constant 0 : index
    %180 = vector.load %arg14[%c48_78, %c0_79] : memref<64x128xf32, #tpu.memory_space<vmem>>, vector<8x128xf32>
    tpu.vector_store %arg14[%c48_78, %c0_79], %179 {strides = array<i32>} : memref<64x128xf32, #tpu.memory_space<vmem>>, vector<8x128xf32>,
    %c56 = arith.constant 56 : index
    %c0_80 = arith.constant 0 : index
    %181 = vector.load %arg13[%c56, %c0_80] : memref<64x512xf32, #tpu.memory_space<vmem>>, vector<8x512xf32>
    %182 = arith.truncf %179 : vector<8x128xf32> to vector<8x128xbf16>
    %c0_81 = arith.constant 0 : index
    %c0_82 = arith.constant 0 : index
    %183 = vector.load %arg7[%c0_81, %c0_82] : memref<128x512xbf16, #tpu.memory_space<vmem>>, vector<128x512xbf16>
    %cst_83 = arith.constant dense<0.000000e+00> : vector<8x512xf32>
    %184 = tpu.matmul %182, %183, %cst_83 {dimension_numbers = #tpu.dot_dimension_numbers<[1], [0], [0], [1], [0, 0, 1, 1], [], []>} : vector<8x128xbf16>, vector<128x512xbf16>, vector<8x512xf32> -> vector<8x512xf32>
    %185 = arith.addf %181, %184 : vector<8x512xf32>
    %186 = vector.extract_strided_slice %185 {offsets = [0, 0], sizes = [8, 384], strides = [1, 1]} : vector<8x512xf32> to vector<8x384xf32>
    %cst_84 = arith.constant 5.000000e-01 : f32
    %187 = vector.broadcast %cst_84 : f32 to vector<8x384xf32>
    %188 = arith.mulf %187, %186 : vector<8x384xf32>
    %189 = math.tanh %188 : vector<8x384xf32>
    %cst_85 = arith.constant 5.000000e-01 : f32
    %190 = vector.broadcast %cst_85 : f32 to vector<8x384xf32>
    %191 = arith.mulf %190, %189 : vector<8x384xf32>
    %cst_86 = arith.constant 5.000000e-01 : f32
    %192 = vector.broadcast %cst_86 : f32 to vector<8x384xf32>
    %193 = arith.addf %191, %192 : vector<8x384xf32>
    %194 = vector.extract_strided_slice %193 {offsets = [0, 0], sizes = [8, 128], strides = [1, 1]} : vector<8x384xf32> to vector<8x128xf32>
    %195 = vector.extract_strided_slice %193 {offsets = [0, 128], sizes = [8, 128], strides = [1, 1]} : vector<8x384xf32> to vector<8x128xf32>
    %196 = vector.extract_strided_slice %193 {offsets = [0, 256], sizes = [8, 128], strides = [1, 1]} : vector<8x384xf32> to vector<8x128xf32>
    %197 = vector.extract_strided_slice %185 {offsets = [0, 384], sizes = [8, 128], strides = [1, 1]} : vector<8x512xf32> to vector<8x128xf32>
    %198 = math.tanh %197 : vector<8x128xf32>
    %199 = arith.mulf %195, %177 : vector<8x128xf32>
    %200 = arith.mulf %194, %198 : vector<8x128xf32>
    %201 = arith.addf %199, %200 : vector<8x128xf32>
    %202 = math.tanh %201 : vector<8x128xf32>
    %203 = arith.mulf %196, %202 : vector<8x128xf32>
    %c56_87 = arith.constant 56 : index
    %c0_88 = arith.constant 0 : index
    %204 = vector.load %arg14[%c56_87, %c0_88] : memref<64x128xf32, #tpu.memory_space<vmem>>, vector<8x128xf32>
    tpu.vector_store %arg14[%c56_87, %c0_88], %203 {strides = array<i32>} : memref<64x128xf32, #tpu.memory_space<vmem>>, vector<8x128xf32>,
    %c0_89 = arith.constant 0 : index
    %c0_90 = arith.constant 0 : index
    %205 = vector.load %arg11[%c0_89, %c0_90] : memref<8x128xf32, #tpu.memory_space<vmem>>, vector<8x128xf32>
    tpu.vector_store %arg11[%c0_89, %c0_90], %203 {strides = array<i32>} : memref<8x128xf32, #tpu.memory_space<vmem>>, vector<8x128xf32>,
    %c0_91 = arith.constant 0 : index
    %c0_92 = arith.constant 0 : index
    %206 = vector.load %arg12[%c0_91, %c0_92] : memref<8x128xf32, #tpu.memory_space<vmem>>, vector<8x128xf32>
    tpu.vector_store %arg12[%c0_91, %c0_92], %201 {strides = array<i32>} : memref<8x128xf32, #tpu.memory_space<vmem>>, vector<8x128xf32>,
    %c0_93 = arith.constant 0 : index
    %c0_94 = arith.constant 0 : index
    %207 = vector.load %arg14[%c0_93, %c0_94] : memref<64x128xf32, #tpu.memory_space<vmem>>, vector<64x128xf32>
    %c0_95 = arith.constant 0 : index
    %c0_96 = arith.constant 0 : index
    %208 = vector.load %arg8[%c0_95, %c0_96] : memref<128x128xf32, #tpu.memory_space<vmem>>, vector<128x128xf32>
    %cst_97 = arith.constant dense<0.000000e+00> : vector<64x128xf32>
    %209 = tpu.matmul %207, %208, %cst_97 {dimension_numbers = #tpu.dot_dimension_numbers<[1], [0], [0], [1], [0, 0, 1, 1], [], []>} : vector<64x128xf32>, vector<128x128xf32>, vector<64x128xf32> -> vector<64x128xf32>
    %c0_98 = arith.constant 0 : index
    %c0_99 = arith.constant 0 : index
    %210 = vector.load %arg9[%c0_98, %c0_99] : memref<1x128xf32, #tpu.memory_space<vmem>>, vector<1x128xf32>
    %211 = vector.broadcast %210 : vector<1x128xf32> to vector<64x128xf32>
    %212 = arith.addf %209, %211 : vector<64x128xf32>
    %c0_100 = arith.constant 0 : index
    %c0_101 = arith.constant 0 : index
    %213 = vector.load %arg10[%c0_100, %c0_101] : memref<64x128xf32, #tpu.memory_space<vmem>>, vector<64x128xf32>
    tpu.vector_store %arg10[%c0_100, %c0_101], %212 {strides = array<i32>} : memref<64x128xf32, #tpu.memory_space<vmem>>, vector<64x128xf32>,
    return
  }
}

</mosaic_0001>

<llo_original>
// kernel: worker_forward.1
$region0: #{worker_forward.1}
  #allocation0 [shape = 'u32[]', space=smem, size = 0x4, offset = 0x4, fixed_abs, tag = 'smem constant byte address 0x4 - core index']
  #allocation1 [shape = 'u32[144,128]{1,0:T(1,128)}', space=vmem, size = 0x12000, scoped, tag = 'internal scratch']
  #allocation2 [shape = 'f32[64,512]{1,0:T(8,128)}', space=vmem, size = 0x20000, scoped, tag = 'scratch operand']
  #allocation3 [shape = 'f32[64,128]{1,0:T(8,128)}', space=vmem, size = 0x8000, scoped, tag = 'scratch operand']
  %s0 = inlined_call_operand.vmem [shape: f32[64,128], index: 0, kind: input, shape index: {}]
  %s1 = inlined_call_operand.vmem [shape: f32[64,16], index: 1, kind: input, shape index: {}]
  %s2 = inlined_call_operand.vmem [shape: f32[8,128], index: 2, kind: input, shape index: {}]
  %s3 = inlined_call_operand.vmem [shape: f32[8,128], index: 3, kind: input, shape index: {}]
  %s4 = inlined_call_operand.vmem [shape: f32[128,512], index: 4, kind: input, shape index: {}]
  %s5 = inlined_call_operand.vmem [shape: f32[16,512], index: 5, kind: input, shape index: {}]
  %s6 = inlined_call_operand.vmem [shape: f32[1,512], index: 6, kind: input, shape index: {}]
  %s7 = inlined_call_operand.vmem [shape: bf16[128,512], index: 7, kind: input, shape index: {}]
  %s8 = inlined_call_operand.vmem [shape: f32[128,128], index: 8, kind: input, shape index: {}]
  %s9 = inlined_call_operand.vmem [shape: f32[1,128], index: 9, kind: input, shape index: {}]
  %s10 = inlined_call_operand.vmem [shape: f32[64,128], index: 10, kind: output, shape index: {0}]
  %s11 = inlined_call_operand.vmem [shape: f32[8,128], index: 11, kind: output, shape index: {1}]
  %s12 = inlined_call_operand.vmem [shape: f32[8,128], index: 12, kind: output, shape index: {2}]
  %13 = xla_tuple %s10, %s11, %s12
  %s14 = sld [smem:[#allocation0]]
  $region66: #{worker_forward.1} parent=0
    _
  %s16 = ssub.s32 1, %s14
  %s17 = scalar_select 0, %s16, %s14
  // Predicated region
  $region2: #{worker_forward.1} parent=0 // pred_check
    _
  $region3: #{worker_forward.1} parent=0 // pred_check_branch
    %19 = sbr.rel (0) target = $region5
  $region4: #{worker_forward.1} parent=0 // pred_region
    _
  $region5: #{worker_forward.1} parent=0 // pred_fallthru
    _
  // Predicated region
  $region6: #{worker_forward.1} parent=0 // pred_check
    _
  $region7: #{worker_forward.1} parent=0 // pred_check_branch
    %21 = sbr.rel (0) target = $region9
  $region8: #{worker_forward.1} parent=0 // pred_region
    _
  $region9: #{worker_forward.1} parent=0 // pred_fallthru
    _
  // Predicated region
  $region10: #{worker_forward.1} parent=0 // pred_check
    _
  $region11: #{worker_forward.1} parent=0 // pred_check_branch
    %23 = sbr.rel (0) target = $region13
  $region12: #{worker_forward.1} parent=0 // pred_region
    _
  $region13: #{worker_forward.1} parent=0 // pred_fallthru
    _
  // Predicated region
  $region14: #{worker_forward.1} parent=0 // pred_check
    _
  $region15: #{worker_forward.1} parent=0 // pred_check_branch
    %25 = sbr.rel (0) target = $region17
  $region16: #{worker_forward.1} parent=0 // pred_region
    _
  $region17: #{worker_forward.1} parent=0 // pred_fallthru
    _
  // Predicated region
  $region18: #{worker_forward.1} parent=0 // pred_check
    _
  $region19: #{worker_forward.1} parent=0 // pred_check_branch
    %27 = sbr.rel (0) target = $region21
  $region20: #{worker_forward.1} parent=0 // pred_region
    _
  $region21: #{worker_forward.1} parent=0 // pred_fallthru
    _
  // Predicated region
  $region22: #{worker_forward.1} parent=0 // pred_check
    _
  $region23: #{worker_forward.1} parent=0 // pred_check_branch
    %29 = sbr.rel (0) target = $region25
  $region24: #{worker_forward.1} parent=0 // pred_region
    _
  $region25: #{worker_forward.1} parent=0 // pred_fallthru
    _
  // Predicated region
  $region26: #{worker_forward.1} parent=0 // pred_check
    _
  $region27: #{worker_forward.1} parent=0 // pred_check_branch
    %31 = sbr.rel (0) target = $region29
  $region28: #{worker_forward.1} parent=0 // pred_region
    _
  $region29: #{worker_forward.1} parent=0 // pred_fallthru
    _
  // Predicated region
  $region30: #{worker_forward.1} parent=0 // pred_check
    _
  $region31: #{worker_forward.1} parent=0 // pred_check_branch
    %33 = sbr.rel (0) target = $region33
  $region32: #{worker_forward.1} parent=0 // pred_region
    _
  $region33: #{worker_forward.1} parent=0 // pred_fallthru
    _
  // Predicated region
  $region34: #{worker_forward.1} parent=0 // pred_check
    _
  $region35: #{worker_forward.1} parent=0 // pred_check_branch
    %35 = sbr.rel (0) target = $region37
  $region36: #{worker_forward.1} parent=0 // pred_region
    _
  $region37: #{worker_forward.1} parent=0 // pred_fallthru
    _
  // Predicated region
  $region38: #{worker_forward.1} parent=0 // pred_check
    _
  $region39: #{worker_forward.1} parent=0 // pred_check_branch
    %37 = sbr.rel (0) target = $region41
  $region40: #{worker_forward.1} parent=0 // pred_region
    _
  $region41: #{worker_forward.1} parent=0 // pred_fallthru
    _
  %v39 = vld [vmem:[%s0] sm:$0xff]
  %v40 = vld [vmem:[%s0 + $0x8] sm:$0xff]
  %v41 = vld [vmem:[%s0 + $0x10] sm:$0xff]
  %v42 = vld [vmem:[%s0 + $0x18] sm:$0xff]
  %v43 = vld [vmem:[%s0 + $0x20] sm:$0xff]
  %v44 = vld [vmem:[%s0 + $0x28] sm:$0xff]
  %v45 = vld [vmem:[%s0 + $0x30] sm:$0xff]
  %v46 = vld [vmem:[%s0 + $0x38] sm:$0xff]
  %v47 = vld [vmem:[%s4] sm:$0xff]
  %v48 = vld [vmem:[%s4 + $0x8] sm:$0xff]
  %v49 = vld [vmem:[%s4 + $0x10] sm:$0xff]
  %v50 = vld [vmem:[%s4 + $0x18] sm:$0xff]
  %v51 = vld [vmem:[%s4 + $0x20] sm:$0xff]
  %v52 = vld [vmem:[%s4 + $0x28] sm:$0xff]
  %v53 = vld [vmem:[%s4 + $0x30] sm:$0xff]
  %v54 = vld [vmem:[%s4 + $0x38] sm:$0xff]
  %v55 = vld [vmem:[%s4 + $0x40] sm:$0xff]
  %v56 = vld [vmem:[%s4 + $0x48] sm:$0xff]
  %v57 = vld [vmem:[%s4 + $0x50] sm:$0xff]
  %v58 = vld [vmem:[%s4 + $0x58] sm:$0xff]
  %v59 = vld [vmem:[%s4 + $0x60] sm:$0xff]
  %v60 = vld [vmem:[%s4 + $0x68] sm:$0xff]
  %v61 = vld [vmem:[%s4 + $0x70] sm:$0xff]
  %v62 = vld [vmem:[%s4 + $0x78] sm:$0xff]
  %v63 = vld [vmem:[%s4 + $0x80] sm:$0xff]
  %v64 = vld [vmem:[%s4 + $0x88] sm:$0xff]
  %v65 = vld [vmem:[%s4 + $0x90] sm:$0xff]
  %v66 = vld [vmem:[%s4 + $0x98] sm:$0xff]
  %v67 = vld [vmem:[%s4 + $0xa0] sm:$0xff]
  %v68 = vld [vmem:[%s4 + $0xa8] sm:$0xff]
  %v69 = vld [vmem:[%s4 + $0xb0] sm:$0xff]
  %v70 = vld [vmem:[%s4 + $0xb8] sm:$0xff]
  %v71 = vld [vmem:[%s4 + $0xc0] sm:$0xff]
  %v72 = vld [vmem:[%s4 + $0xc8] sm:$0xff]
  %v73 = vld [vmem:[%s4 + $0xd0] sm:$0xff]
  %v74 = vld [vmem:[%s4 + $0xd8] sm:$0xff]
  %v75 = vld [vmem:[%s4 + $0xe0] sm:$0xff]
  %v76 = vld [vmem:[%s4 + $0xe8] sm:$0xff]
  %v77 = vld [vmem:[%s4 + $0xf0] sm:$0xff]
  %v78 = vld [vmem:[%s4 + $0xf8] sm:$0xff]
  %v79 = vld [vmem:[%s4 + $0x100] sm:$0xff]
  %v80 = vld [vmem:[%s4 + $0x108] sm:$0xff]
  %v81 = vld [vmem:[%s4 + $0x110] sm:$0xff]
  %v82 = vld [vmem:[%s4 + $0x118] sm:$0xff]
  %v83 = vld [vmem:[%s4 + $0x120] sm:$0xff]
  %v84 = vld [vmem:[%s4 + $0x128] sm:$0xff]
  %v85 = vld [vmem:[%s4 + $0x130] sm:$0xff]
  %v86 = vld [vmem:[%s4 + $0x138] sm:$0xff]
  %v87 = vld [vmem:[%s4 + $0x140] sm:$0xff]
  %v88 = vld [vmem:[%s4 + $0x148] sm:$0xff]
  %v89 = vld [vmem:[%s4 + $0x150] sm:$0xff]
  %v90 = vld [vmem:[%s4 + $0x158] sm:$0xff]
  %v91 = vld [vmem:[%s4 + $0x160] sm:$0xff]
  %v92 = vld [vmem:[%s4 + $0x168] sm:$0xff]
  %v93 = vld [vmem:[%s4 + $0x170] sm:$0xff]
  %v94 = vld [vmem:[%s4 + $0x178] sm:$0xff]
  %v95 = vld [vmem:[%s4 + $0x180] sm:$0xff]
  %v96 = vld [vmem:[%s4 + $0x188] sm:$0xff]
  %v97 = vld [vmem:[%s4 + $0x190] sm:$0xff]
  %v98 = vld [vmem:[%s4 + $0x198] sm:$0xff]
  %v99 = vld [vmem:[%s4 + $0x1a0] sm:$0xff]
  %v100 = vld [vmem:[%s4 + $0x1a8] sm:$0xff]
  %v101 = vld [vmem:[%s4 + $0x1b0] sm:$0xff]
  %v102 = vld [vmem:[%s4 + $0x1b8] sm:$0xff]
  %v103 = vld [vmem:[%s4 + $0x1c0] sm:$0xff]
  %v104 = vld [vmem:[%s4 + $0x1c8] sm:$0xff]
  %v105 = vld [vmem:[%s4 + $0x1d0] sm:$0xff]
  %v106 = vld [vmem:[%s4 + $0x1d8] sm:$0xff]
  %v107 = vld [vmem:[%s4 + $0x1e0] sm:$0xff]
  %v108 = vld [vmem:[%s4 + $0x1e8] sm:$0xff]
  %v109 = vld [vmem:[%s4 + $0x1f0] sm:$0xff]
  %v110 = vld [vmem:[%s4 + $0x1f8] sm:$0xff]
  %v111 = vld [vmem:[%s1] sm:$0xff]
  %v112 = vld [vmem:[%s1 + $0x8] sm:$0xff]
  %v113 = vld [vmem:[%s1 + $0x10] sm:$0xff]
  %v114 = vld [vmem:[%s1 + $0x18] sm:$0xff]
  %v115 = vld [vmem:[%s1 + $0x20] sm:$0xff]
  %v116 = vld [vmem:[%s1 + $0x28] sm:$0xff]
  %v117 = vld [vmem:[%s1 + $0x30] sm:$0xff]
  %v118 = vld [vmem:[%s1 + $0x38] sm:$0xff]
  %v119 = vld [vmem:[%s5] sm:$0xff]
  %v120 = vld [vmem:[%s5 + $0x8] sm:$0xff]
  %v121 = vld [vmem:[%s5 + $0x10] sm:$0xff]
  %v122 = vld [vmem:[%s5 + $0x18] sm:$0xff]
  %v123 = vld [vmem:[%s5 + $0x20] sm:$0xff]
  %v124 = vld [vmem:[%s5 + $0x28] sm:$0xff]
  %v125 = vld [vmem:[%s5 + $0x30] sm:$0xff]
  %v126 = vld [vmem:[%s5 + $0x38] sm:$0xff]
  %vm127 = vcmask 130048
  %v129 = vsel %vm127, %v111, 0
  %v132 = vsel %vm127, %v112, 0
  %v135 = vsel %vm127, %v113, 0
  %v138 = vsel %vm127, %v114, 0
  %v141 = vsel %vm127, %v115, 0
  %v144 = vsel %vm127, %v116, 0
  %v147 = vsel %vm127, %v117, 0
  %v150 = vsel %vm127, %v118, 0
  %152 = vmatprep.subr.mxu0 %v120
  %153 = vmatpush1.msra.mxu0 %v119
  %154 = vmatprep.subr.mxu0 %v124
  %155 = vmatpush1.msra.mxu0 %v123
  %156 = vmatprep.subr.mxu0 0.0
  %157 = vmatpush1.msra.mxu0 0.0
  %158 = vmatprep.subr.mxu0 0.0
  %159 = vmatpush1.msra.mxu0 0.0
  %160 = vmatprep.subr.mxu0 0.0
  %161 = vmatpush1.msra.mxu0 0.0
  %162 = vmatprep.subr.mxu0 0.0
  %163 = vmatpush1.msra.mxu0 0.0
  %164 = vmatprep.subr.mxu0 0.0
  %165 = vmatpush1.msra.mxu0 0.0
  %166 = vmatprep.subr.mxu0 0.0
  %167 = vmatpush1.msra.mxu0 0.0
  %168 = vmatprep.subr.mxu0 0.0
  %169 = vmatpush1.msra.mxu0 0.0
  %170 = vmatprep.subr.mxu0 0.0
  %171 = vmatpush1.msra.mxu0 0.0
  %172 = vmatprep.subr.mxu0 0.0
  %173 = vmatpush1.msra.mxu0 0.0
  %174 = vmatprep.subr.mxu0 0.0
  %175 = vmatpush1.msra.mxu0 0.0
  %176 = vmatprep.subr.mxu0 0.0
  %177 = vmatpush1.msra.mxu0 0.0
  %178 = vmatprep.subr.mxu0 0.0
  %179 = vmatpush1.msra.mxu0 0.0
  %180 = vmatprep.subr.mxu0 0.0
  %181 = vmatpush1.msra.mxu0 0.0
  %182 = vmatprep.subr.mxu0 0.0
  %183 = vmatpush1.msra.mxu0 0.0
  %184 = vmatprep.subr.mxu0 0.0
  %185 = vmatpush1.msra.mxu0 0.0
  %186 = vmatprep.subr.mxu0 0.0
  %187 = vmatpush1.msra.mxu0 0.0
  %188 = vmatprep.subr.mxu0 0.0
  %189 = vmatpush1.msra.mxu0 0.0
  %190 = vmatprep.subr.mxu0 0.0
  %191 = vmatpush1.msra.mxu0 0.0
  %192 = vmatprep.subr.mxu0 0.0
  %193 = vmatpush1.msra.mxu0 0.0
  %194 = vmatprep.subr.mxu0 0.0
  %195 = vmatpush1.msra.mxu0 0.0
  %196 = vmatprep.subr.mxu0 0.0
  %197 = vmatpush1.msra.mxu0 0.0
  %198 = vmatprep.subr.mxu0 0.0
  %199 = vmatpush1.msra.mxu0 0.0
  %200 = vmatprep.subr.mxu0 0.0
  %201 = vmatpush1.msra.mxu0 0.0
  %202 = vmatprep.subr.mxu0 0.0
  %203 = vmatpush1.msra.mxu0 0.0
  %204 = vmatprep.subr.mxu0 0.0
  %205 = vmatpush1.msra.mxu0 0.0
  %206 = vmatprep.subr.mxu0 0.0
  %207 = vmatpush1.msra.mxu0 0.0
  %208 = vmatprep.subr.mxu0 0.0
  %209 = vmatpush1.msra.mxu0 0.0
  %210 = vmatprep.subr.mxu0 0.0
  %211 = vmatpush1.msra.mxu0 0.0
  %212 = vmatprep.subr.mxu0 0.0
  %213 = vmatpush1.msra.mxu0 0.0
  %214 = vmatprep.subr.mxu0 0.0
  %215 = vmatpush1.msra.mxu0 0.0
  %216 = vmatprep.mubr.f32.mxu0 0.0
  %217 = vmatmul.mubr.f32.gmra.mrb[0].mxu0 %v129
  %v218 = vpop.f32.mrb[0].mxu0
  %v219 = vadd.f32 0.0, %v218
  %v220 = vpop.f32.mrb[0].mxu0
  %v221 = vadd.f32 0.0, %v220
  %222 = vmatprep.mubr.f32.mxu0 0.0
  %223 = vmatmul.mubr.f32.gmra.mrb[0].mxu0 %v132
  %v224 = vpop.f32.mrb[0].mxu0
  %v225 = vadd.f32 0.0, %v224
  %v226 = vpop.f32.mrb[0].mxu0
  %v227 = vadd.f32 0.0, %v226
  %228 = vmatprep.mubr.f32.mxu0 0.0
  %229 = vmatmul.mubr.f32.gmra.mrb[0].mxu0 %v135
  %v230 = vpop.f32.mrb[0].mxu0
  %v231 = vadd.f32 0.0, %v230
  %v232 = vpop.f32.mrb[0].mxu0
  %v233 = vadd.f32 0.0, %v232
  %234 = vmatprep.mubr.f32.mxu0 0.0
  %235 = vmatmul.mubr.f32.gmra.mrb[0].mxu0 %v138
  %v236 = vpop.f32.mrb[0].mxu0
  %v237 = vadd.f32 0.0, %v236
  %v238 = vpop.f32.mrb[0].mxu0
  %v239 = vadd.f32 0.0, %v238
  %240 = vmatprep.mubr.f32.mxu0 0.0
  %241 = vmatmul.mubr.f32.gmra.mrb[0].mxu0 %v141
  %v242 = vpop.f32.mrb[0].mxu0
  %v243 = vadd.f32 0.0, %v242
  %v244 = vpop.f32.mrb[0].mxu0
  %v245 = vadd.f32 0.0, %v244
  %246 = vmatprep.mubr.f32.mxu0 0.0
  %247 = vmatmul.mubr.f32.gmra.mrb[0].mxu0 %v144
  %v248 = vpop.f32.mrb[0].mxu0
  %v249 = vadd.f32 0.0, %v248
  %v250 = vpop.f32.mrb[0].mxu0
  %v251 = vadd.f32 0.0, %v250
  %252 = vmatprep.mubr.f32.mxu0 0.0
  %253 = vmatmul.mubr.f32.gmra.mrb[0].mxu0 %v147
  %v254 = vpop.f32.mrb[0].mxu0
  %v255 = vadd.f32 0.0, %v254
  %v256 = vpop.f32.mrb[0].mxu0
  %v257 = vadd.f32 0.0, %v256
  %258 = vmatprep.mubr.f32.mxu0 0.0
  %259 = vmatmul.mubr.f32.gmra.mrb[0].mxu0 %v150
  %v260 = vpop.f32.mrb[0].mxu0
  %v261 = vadd.f32 0.0, %v260
  %v262 = vpop.f32.mrb[0].mxu0
  %v263 = vadd.f32 0.0, %v262
  %264 = vdwg.mxu0
  %265 = vmatprep.subr.mxu0 %v122
  %266 = vmatpush1.msra.mxu0 %v121
  %267 = vmatprep.subr.mxu0 %v126
  %268 = vmatpush1.msra.mxu0 %v125
  %269 = vmatprep.subr.mxu0 0.0
  %270 = vmatpush1.msra.mxu0 0.0
  %271 = vmatprep.subr.mxu0 0.0
  %272 = vmatpush1.msra.mxu0 0.0
  %273 = vmatprep.subr.mxu0 0.0
  %274 = vmatpush1.msra.mxu0 0.0
  %275 = vmatprep.subr.mxu0 0.0
  %276 = vmatpush1.msra.mxu0 0.0
  %277 = vmatprep.subr.mxu0 0.0
  %278 = vmatpush1.msra.mxu0 0.0
  %279 = vmatprep.subr.mxu0 0.0
  %280 = vmatpush1.msra.mxu0 0.0
  %281 = vmatprep.subr.mxu0 0.0
  %282 = vmatpush1.msra.mxu0 0.0
  %283 = vmatprep.subr.mxu0 0.0
  %284 = vmatpush1.msra.mxu0 0.0
  %285 = vmatprep.subr.mxu0 0.0
  %286 = vmatpush1.msra.mxu0 0.0
  %287 = vmatprep.subr.mxu0 0.0
  %288 = vmatpush1.msra.mxu0 0.0
  %289 = vmatprep.subr.mxu0 0.0
  %290 = vmatpush1.msra.mxu0 0.0
  %291 = vmatprep.subr.mxu0 0.0
  %292 = vmatpush1.msra.mxu0 0.0
  %293 = vmatprep.subr.mxu0 0.0
  %294 = vmatpush1.msra.mxu0 0.0
  %295 = vmatprep.subr.mxu0 0.0
  %296 = vmatpush1.msra.mxu0 0.0
  %297 = vmatprep.subr.mxu0 0.0
  %298 = vmatpush1.msra.mxu0 0.0
  %299 = vmatprep.subr.mxu0 0.0
  %300 = vmatpush1.msra.mxu0 0.0
  %301 = vmatprep.subr.mxu0 0.0
  %302 = vmatpush1.msra.mxu0 0.0
  %303 = vmatprep.subr.mxu0 0.0
  %304 = vmatpush1.msra.mxu0 0.0
  %305 = vmatprep.subr.mxu0 0.0
  %306 = vmatpush1.msra.mxu0 0.0
  %307 = vmatprep.subr.mxu0 0.0
  %308 = vmatpush1.msra.mxu0 0.0
  %309 = vmatprep.subr.mxu0 0.0
  %310 = vmatpush1.msra.mxu0 0.0
  %311 = vmatprep.subr.mxu0 0.0
  %312 = vmatpush1.msra.mxu0 0.0
  %313 = vmatprep.subr.mxu0 0.0
  %314 = vmatpush1.msra.mxu0 0.0
  %315 = vmatprep.subr.mxu0 0.0
  %316 = vmatpush1.msra.mxu0 0.0
  %317 = vmatprep.subr.mxu0 0.0
  %318 = vmatpush1.msra.mxu0 0.0
  %319 = vmatprep.subr.mxu0 0.0
  %320 = vmatpush1.msra.mxu0 0.0
  %321 = vmatprep.subr.mxu0 0.0
  %322 = vmatpush1.msra.mxu0 0.0
  %323 = vmatprep.subr.mxu0 0.0
  %324 = vmatpush1.msra.mxu0 0.0
  %325 = vmatprep.subr.mxu0 0.0
  %326 = vmatpush1.msra.mxu0 0.0
  %327 = vmatprep.subr.mxu0 0.0
  %328 = vmatpush1.msra.mxu0 0.0
  %329 = vmatprep.mubr.f32.mxu0 0.0
  %330 = vmatmul.mubr.f32.gmra.mrb[0].mxu0 %v129
  %v331 = vpop.f32.mrb[0].mxu0
  %v332 = vadd.f32 0.0, %v331
  %v333 = vpop.f32.mrb[0].mxu0
  %v334 = vadd.f32 0.0, %v333
  %335 = vmatprep.mubr.f32.mxu0 0.0
  %336 = vmatmul.mubr.f32.gmra.mrb[0].mxu0 %v132
  %v337 = vpop.f32.mrb[0].mxu0
  %v338 = vadd.f32 0.0, %v337
  %v339 = vpop.f32.mrb[0].mxu0
  %v340 = vadd.f32 0.0, %v339
  %341 = vmatprep.mubr.f32.mxu0 0.0
  %342 = vmatmul.mubr.f32.gmra.mrb[0].mxu0 %v135
  %v343 = vpop.f32.mrb[0].mxu0
  %v344 = vadd.f32 0.0, %v343
  %v345 = vpop.f32.mrb[0].mxu0
  %v346 = vadd.f32 0.0, %v345
  %347 = vmatprep.mubr.f32.mxu0 0.0
  %348 = vmatmul.mubr.f32.gmra.mrb[0].mxu0 %v138
  %v349 = vpop.f32.mrb[0].mxu0
  %v350 = vadd.f32 0.0, %v349
  %v351 = vpop.f32.mrb[0].mxu0
  %v352 = vadd.f32 0.0, %v351
  %353 = vmatprep.mubr.f32.mxu0 0.0
  %354 = vmatmul.mubr.f32.gmra.mrb[0].mxu0 %v141
  %v355 = vpop.f32.mrb[0].mxu0
  %v356 = vadd.f32 0.0, %v355
  %v357 = vpop.f32.mrb[0].mxu0
  %v358 = vadd.f32 0.0, %v357
  %359 = vmatprep.mubr.f32.mxu0 0.0
  %360 = vmatmul.mubr.f32.gmra.mrb[0].mxu0 %v144
  %v361 = vpop.f32.mrb[0].mxu0
  %v362 = vadd.f32 0.0, %v361
  %v363 = vpop.f32.mrb[0].mxu0
  %v364 = vadd.f32 0.0, %v363
  %365 = vmatprep.mubr.f32.mxu0 0.0
  %366 = vmatmul.mubr.f32.gmra.mrb[0].mxu0 %v147
  %v367 = vpop.f32.mrb[0].mxu0
  %v368 = vadd.f32 0.0, %v367
  %v369 = vpop.f32.mrb[0].mxu0
  %v370 = vadd.f32 0.0, %v369
  %371 = vmatprep.mubr.f32.mxu0 0.0
  %372 = vmatmul.mubr.f32.gmra.mrb[0].mxu0 %v150
  %v373 = vpop.f32.mrb[0].mxu0
  %v374 = vadd.f32 0.0, %v373
  %v375 = vpop.f32.mrb[0].mxu0
  %v376 = vadd.f32 0.0, %v375
  %377 = vdwg.mxu0
  %378 = vmatprep.subr.mxu0 %v48
  %379 = vmatpush1.msra.mxu0 %v47
  %380 = vmatprep.subr.mxu0 %v52
  %381 = vmatpush1.msra.mxu0 %v51
  %382 = vmatprep.subr.mxu0 %v56
  %383 = vmatpush1.msra.mxu0 %v55
  %384 = vmatprep.subr.mxu0 %v60
  %385 = vmatpush1.msra.mxu0 %v59
  %386 = vmatprep.subr.mxu0 %v64
  %387 = vmatpush1.msra.mxu0 %v63
  %388 = vmatprep.subr.mxu0 %v68
  %389 = vmatpush1.msra.mxu0 %v67
  %390 = vmatprep.subr.mxu0 %v72
  %391 = vmatpush1.msra.mxu0 %v71
  %392 = vmatprep.subr.mxu0 %v76
  %393 = vmatpush1.msra.mxu0 %v75
  %394 = vmatprep.subr.mxu0 %v80
  %395 = vmatpush1.msra.mxu0 %v79
  %396 = vmatprep.subr.mxu0 %v84
  %397 = vmatpush1.msra.mxu0 %v83
  %398 = vmatprep.subr.mxu0 %v88
  %399 = vmatpush1.msra.mxu0 %v87
  %400 = vmatprep.subr.mxu0 %v92
  %401 = vmatpush1.msra.mxu0 %v91
  %402 = vmatprep.subr.mxu0 %v96
  %403 = vmatpush1.msra.mxu0 %v95
  %404 = vmatprep.subr.mxu0 %v100
  %405 = vmatpush1.msra.mxu0 %v99
  %406 = vmatprep.subr.mxu0 %v104
  %407 = vmatpush1.msra.mxu0 %v103
  %408 = vmatprep.subr.mxu0 %v108
  %409 = vmatpush1.msra.mxu0 %v107
  %410 = vmatprep.subr.mxu0 0.0
  %411 = vmatpush1.msra.mxu0 0.0
  %412 = vmatprep.subr.mxu0 0.0
  %413 = vmatpush1.msra.mxu0 0.0
  %414 = vmatprep.subr.mxu0 0.0
  %415 = vmatpush1.msra.mxu0 0.0
  %416 = vmatprep.subr.mxu0 0.0
  %417 = vmatpush1.msra.mxu0 0.0
  %418 = vmatprep.subr.mxu0 0.0
  %419 = vmatpush1.msra.mxu0 0.0
  %420 = vmatprep.subr.mxu0 0.0
  %421 = vmatpush1.msra.mxu0 0.0
  %422 = vmatprep.subr.mxu0 0.0
  %423 = vmatpush1.msra.mxu0 0.0
  %424 = vmatprep.subr.mxu0 0.0
  %425 = vmatpush1.msra.mxu0 0.0
  %426 = vmatprep.subr.mxu0 0.0
  %427 = vmatpush1.msra.mxu0 0.0
  %428 = vmatprep.subr.mxu0 0.0
  %429 = vmatpush1.msra.mxu0 0.0
  %430 = vmatprep.subr.mxu0 0.0
  %431 = vmatpush1.msra.mxu0 0.0
  %432 = vmatprep.subr.mxu0 0.0
  %433 = vmatpush1.msra.mxu0 0.0
  %434 = vmatprep.subr.mxu0 0.0
  %435 = vmatpush1.msra.mxu0 0.0
  %436 = vmatprep.subr.mxu0 0.0
  %437 = vmatpush1.msra.mxu0 0.0
  %438 = vmatprep.subr.mxu0 0.0
  %439 = vmatpush1.msra.mxu0 0.0
  %440 = vmatprep.subr.mxu0 0.0
  %441 = vmatpush1.msra.mxu0 0.0
  %442 = vmatprep.mubr.f32.mxu0 0.0
  %443 = vmatmul.mubr.f32.gmra.mrb[0].mxu0 %v39
  %v444 = vpop.f32.mrb[0].mxu0
  %v445 = vadd.f32 %v219, %v444
  %v446 = vpop.f32.mrb[0].mxu0
  %v447 = vadd.f32 %v221, %v446
  %448 = vmatprep.mubr.f32.mxu0 0.0
  %449 = vmatmul.mubr.f32.gmra.mrb[0].mxu0 %v40
  %v450 = vpop.f32.mrb[0].mxu0
  %v451 = vadd.f32 %v225, %v450
  %v452 = vpop.f32.mrb[0].mxu0
  %v453 = vadd.f32 %v227, %v452
  %454 = vmatprep.mubr.f32.mxu0 0.0
  %455 = vmatmul.mubr.f32.gmra.mrb[0].mxu0 %v41
  %v456 = vpop.f32.mrb[0].mxu0
  %v457 = vadd.f32 %v231, %v456
  %v458 = vpop.f32.mrb[0].mxu0
  %v459 = vadd.f32 %v233, %v458
  %460 = vmatprep.mubr.f32.mxu0 0.0
  %461 = vmatmul.mubr.f32.gmra.mrb[0].mxu0 %v42
  %v462 = vpop.f32.mrb[0].mxu0
  %v463 = vadd.f32 %v237, %v462
  %v464 = vpop.f32.mrb[0].mxu0
  %v465 = vadd.f32 %v239, %v464
  %466 = vmatprep.mubr.f32.mxu0 0.0
  %467 = vmatmul.mubr.f32.gmra.mrb[0].mxu0 %v43
  %v468 = vpop.f32.mrb[0].mxu0
  %v469 = vadd.f32 %v243, %v468
  %v470 = vpop.f32.mrb[0].mxu0
  %v471 = vadd.f32 %v245, %v470
  %472 = vmatprep.mubr.f32.mxu0 0.0
  %473 = vmatmul.mubr.f32.gmra.mrb[0].mxu0 %v44
  %v474 = vpop.f32.mrb[0].mxu0
  %v475 = vadd.f32 %v249, %v474
  %v476 = vpop.f32.mrb[0].mxu0
  %v477 = vadd.f32 %v251, %v476
  %478 = vmatprep.mubr.f32.mxu0 0.0
  %479 = vmatmul.mubr.f32.gmra.mrb[0].mxu0 %v45
  %v480 = vpop.f32.mrb[0].mxu0
  %v481 = vadd.f32 %v255, %v480
  %v482 = vpop.f32.mrb[0].mxu0
  %v483 = vadd.f32 %v257, %v482
  %484 = vmatprep.mubr.f32.mxu0 0.0
  %485 = vmatmul.mubr.f32.gmra.mrb[0].mxu0 %v46
  %v486 = vpop.f32.mrb[0].mxu0
  %v487 = vadd.f32 %v261, %v486
  %v488 = vpop.f32.mrb[0].mxu0
  %v489 = vadd.f32 %v263, %v488
  %490 = vdwg.mxu0
  %491 = vmatprep.subr.mxu0 %v50
  %492 = vmatpush1.msra.mxu0 %v49
  %493 = vmatprep.subr.mxu0 %v54
  %494 = vmatpush1.msra.mxu0 %v53
  %495 = vmatprep.subr.mxu0 %v58
  %496 = vmatpush1.msra.mxu0 %v57
  %497 = vmatprep.subr.mxu0 %v62
  %498 = vmatpush1.msra.mxu0 %v61
  %499 = vmatprep.subr.mxu0 %v66
  %500 = vmatpush1.msra.mxu0 %v65
  %501 = vmatprep.subr.mxu0 %v70
  %502 = vmatpush1.msra.mxu0 %v69
  %503 = vmatprep.subr.mxu0 %v74
  %504 = vmatpush1.msra.mxu0 %v73
  %505 = vmatprep.subr.mxu0 %v78
  %506 = vmatpush1.msra.mxu0 %v77
  %507 = vmatprep.subr.mxu0 %v82
  %508 = vmatpush1.msra.mxu0 %v81
  %509 = vmatprep.subr.mxu0 %v86
  %510 = vmatpush1.msra.mxu0 %v85
  %511 = vmatprep.subr.mxu0 %v90
  %512 = vmatpush1.msra.mxu0 %v89
  %513 = vmatprep.subr.mxu0 %v94
  %514 = vmatpush1.msra.mxu0 %v93
  %515 = vmatprep.subr.mxu0 %v98
  %516 = vmatpush1.msra.mxu0 %v97
  %517 = vmatprep.subr.mxu0 %v102
  %518 = vmatpush1.msra.mxu0 %v101
  %519 = vmatprep.subr.mxu0 %v106
  %520 = vmatpush1.msra.mxu0 %v105
  %521 = vmatprep.subr.mxu0 %v110
  %522 = vmatpush1.msra.mxu0 %v109
  %523 = vmatprep.subr.mxu0 0.0
  %524 = vmatpush1.msra.mxu0 0.0
  %525 = vmatprep.subr.mxu0 0.0
  %526 = vmatpush1.msra.mxu0 0.0
  %527 = vmatprep.subr.mxu0 0.0
  %528 = vmatpush1.msra.mxu0 0.0
  %529 = vmatprep.subr.mxu0 0.0
  %530 = vmatpush1.msra.mxu0 0.0
  %531 = vmatprep.subr.mxu0 0.0
  %532 = vmatpush1.msra.mxu0 0.0
  %533 = vmatprep.subr.mxu0 0.0
  %534 = vmatpush1.msra.mxu0 0.0
  %535 = vmatprep.subr.mxu0 0.0
  %536 = vmatpush1.msra.mxu0 0.0
  %537 = vmatprep.subr.mxu0 0.0
  %538 = vmatpush1.msra.mxu0 0.0
  %539 = vmatprep.subr.mxu0 0.0
  %540 = vmatpush1.msra.mxu0 0.0
  %541 = vmatprep.subr.mxu0 0.0
  %542 = vmatpush1.msra.mxu0 0.0
  %543 = vmatprep.subr.mxu0 0.0
  %544 = vmatpush1.msra.mxu0 0.0
  %545 = vmatprep.subr.mxu0 0.0
  %546 = vmatpush1.msra.mxu0 0.0
  %547 = vmatprep.subr.mxu0 0.0
  %548 = vmatpush1.msra.mxu0 0.0
  %549 = vmatprep.subr.mxu0 0.0
  %550 = vmatpush1.msra.mxu0 0.0
  %551 = vmatprep.subr.mxu0 0.0
  %552 = vmatpush1.msra.mxu0 0.0
  %553 = vmatprep.subr.mxu0 0.0
  %554 = vmatpush1.msra.mxu0 0.0
  %555 = vmatprep.mubr.f32.mxu0 0.0
  %556 = vmatmul.mubr.f32.gmra.mrb[0].mxu0 %v39
  %v557 = vpop.f32.mrb[0].mxu0
  %v558 = vadd.f32 %v332, %v557
  %v559 = vpop.f32.mrb[0].mxu0
  %v560 = vadd.f32 %v334, %v559
  %561 = vmatprep.mubr.f32.mxu0 0.0
  %562 = vmatmul.mubr.f32.gmra.mrb[0].mxu0 %v40
  %v563 = vpop.f32.mrb[0].mxu0
  %v564 = vadd.f32 %v338, %v563
  %v565 = vpop.f32.mrb[0].mxu0
  %v566 = vadd.f32 %v340, %v565
  %567 = vmatprep.mubr.f32.mxu0 0.0
  %568 = vmatmul.mubr.f32.gmra.mrb[0].mxu0 %v41
  %v569 = vpop.f32.mrb[0].mxu0
  %v570 = vadd.f32 %v344, %v569
  %v571 = vpop.f32.mrb[0].mxu0
  %v572 = vadd.f32 %v346, %v571
  %573 = vmatprep.mubr.f32.mxu0 0.0
  %574 = vmatmul.mubr.f32.gmra.mrb[0].mxu0 %v42
  %v575 = vpop.f32.mrb[0].mxu0
  %v576 = vadd.f32 %v350, %v575
  %v577 = vpop.f32.mrb[0].mxu0
  %v578 = vadd.f32 %v352, %v577
  %579 = vmatprep.mubr.f32.mxu0 0.0
  %580 = vmatmul.mubr.f32.gmra.mrb[0].mxu0 %v43
  %v581 = vpop.f32.mrb[0].mxu0
  %v582 = vadd.f32 %v356, %v581
  %v583 = vpop.f32.mrb[0].mxu0
  %v584 = vadd.f32 %v358, %v583
  %585 = vmatprep.mubr.f32.mxu0 0.0
  %586 = vmatmul.mubr.f32.gmra.mrb[0].mxu0 %v44
  %v587 = vpop.f32.mrb[0].mxu0
  %v588 = vadd.f32 %v362, %v587
  %v589 = vpop.f32.mrb[0].mxu0
  %v590 = vadd.f32 %v364, %v589
  %591 = vmatprep.mubr.f32.mxu0 0.0
  %592 = vmatmul.mubr.f32.gmra.mrb[0].mxu0 %v45
  %v593 = vpop.f32.mrb[0].mxu0
  %v594 = vadd.f32 %v368, %v593
  %v595 = vpop.f32.mrb[0].mxu0
  %v596 = vadd.f32 %v370, %v595
  %597 = vmatprep.mubr.f32.mxu0 0.0
  %598 = vmatmul.mubr.f32.gmra.mrb[0].mxu0 %v46
  %v599 = vpop.f32.mrb[0].mxu0
  %v600 = vadd.f32 %v374, %v599
  %v601 = vpop.f32.mrb[0].mxu0
  %v602 = vadd.f32 %v376, %v601
  %603 = vdwg.mxu0
  %v604 = vld [vmem:[%s6] sm:$0xf]
  %v606 = vlaneseq
  %v607 = vshrl.u32 %v606, 7
  %v608 = vsub.s32 0, %v607
  %v609 = vrot.slane %v604, %v608
  %v610 = vlaneseq
  %v611 = vshrl.u32 %v610, 7
  %v612 = vsub.s32 1, %v611
  %v613 = vrot.slane %v604, %v612
  %v614 = vlaneseq
  %v615 = vshrl.u32 %v614, 7
  %v616 = vsub.s32 2, %v615
  %v617 = vrot.slane %v604, %v616
  %v618 = vlaneseq
  %v619 = vshrl.u32 %v618, 7
  %v620 = vsub.s32 3, %v619
  %v621 = vrot.slane %v604, %v620
  %v626 = vadd.f32 %v445, %v609
  %v627 = vadd.f32 %v447, %v613
  %v628 = vadd.f32 %v558, %v617
  %v629 = vadd.f32 %v560, %v621
  %v630 = vadd.f32 %v451, %v609
  %v631 = vadd.f32 %v453, %v613
  %v632 = vadd.f32 %v564, %v617
  %v633 = vadd.f32 %v566, %v621
  %v634 = vadd.f32 %v457, %v609
  %v635 = vadd.f32 %v459, %v613
  %v636 = vadd.f32 %v570, %v617
  %v637 = vadd.f32 %v572, %v621
  %v638 = vadd.f32 %v463, %v609
  %v639 = vadd.f32 %v465, %v613
  %v640 = vadd.f32 %v576, %v617
  %v641 = vadd.f32 %v578, %v621
  %v642 = vadd.f32 %v469, %v609
  %v643 = vadd.f32 %v471, %v613
  %v644 = vadd.f32 %v582, %v617
  %v645 = vadd.f32 %v584, %v621
  %v646 = vadd.f32 %v475, %v609
  %v647 = vadd.f32 %v477, %v613
  %v648 = vadd.f32 %v588, %v617
  %v649 = vadd.f32 %v590, %v621
  %v650 = vadd.f32 %v481, %v609
  %v651 = vadd.f32 %v483, %v613
  %v652 = vadd.f32 %v594, %v617
  %v653 = vadd.f32 %v596, %v621
  %v654 = vadd.f32 %v487, %v609
  %v655 = vadd.f32 %v489, %v613
  %v656 = vadd.f32 %v600, %v617
  %v657 = vadd.f32 %v602, %v621
  %658 = vst [vmem:[#allocation2] sm:$0xff] %v626
  %659 = vst [vmem:[#allocation2 + $0x8] sm:$0xff] %v627
  %660 = vst [vmem:[#allocation2 + $0x10] sm:$0xff] %v628
  %661 = vst [vmem:[#allocation2 + $0x18] sm:$0xff] %v629
  %662 = vst [vmem:[#allocation2 + $0x20] sm:$0xff] %v630
  %663 = vst [vmem:[#allocation2 + $0x28] sm:$0xff] %v631
  %664 = vst [vmem:[#allocation2 + $0x30] sm:$0xff] %v632
  %665 = vst [vmem:[#allocation2 + $0x38] sm:$0xff] %v633
  %666 = vst [vmem:[#allocation2 + $0x40] sm:$0xff] %v634
  %667 = vst [vmem:[#allocation2 + $0x48] sm:$0xff] %v635
  %668 = vst [vmem:[#allocation2 + $0x50] sm:$0xff] %v636
  %669 = vst [vmem:[#allocation2 + $0x58] sm:$0xff] %v637
  %670 = vst [vmem:[#allocation2 + $0x60] sm:$0xff] %v638
  %671 = vst [vmem:[#allocation2 + $0x68] sm:$0xff] %v639
  %672 = vst [vmem:[#allocation2 + $0x70] sm:$0xff] %v640
  %673 = vst [vmem:[#allocation2 + $0x78] sm:$0xff] %v641
  %674 = vst [vmem:[#allocation2 + $0x80] sm:$0xff] %v642
  %675 = vst [vmem:[#allocation2 + $0x88] sm:$0xff] %v643
  %676 = vst [vmem:[#allocation2 + $0x90] sm:$0xff] %v644
  %677 = vst [vmem:[#allocation2 + $0x98] sm:$0xff] %v645
  %678 = vst [vmem:[#allocation2 + $0xa0] sm:$0xff] %v646
  %679 = vst [vmem:[#allocation2 + $0xa8] sm:$0xff] %v647
  %680 = vst [vmem:[#allocation2 + $0xb0] sm:$0xff] %v648
  %681 = vst [vmem:[#allocation2 + $0xb8] sm:$0xff] %v649
  %682 = vst [vmem:[#allocation2 + $0xc0] sm:$0xff] %v650
  %683 = vst [vmem:[#allocation2 + $0xc8] sm:$0xff] %v651
  %684 = vst [vmem:[#allocation2 + $0xd0] sm:$0xff] %v652
  %685 = vst [vmem:[#allocation2 + $0xd8] sm:$0xff] %v653
  %686 = vst [vmem:[#allocation2 + $0xe0] sm:$0xff] %v654
  %687 = vst [vmem:[#allocation2 + $0xe8] sm:$0xff] %v655
  %688 = vst [vmem:[#allocation2 + $0xf0] sm:$0xff] %v656
  %689 = vst [vmem:[#allocation2 + $0xf8] sm:$0xff] %v657
  %v690 = vld [vmem:[%s2] sm:$0xff]
  %v691 = vld [vmem:[%s3] sm:$0xff]
  %v692 = vld [vmem:[#allocation2] sm:$0xff]
  %v693 = vld [vmem:[#allocation2 + $0x8] sm:$0xff]
  %v694 = vld [vmem:[#allocation2 + $0x10] sm:$0xff]
  %v695 = vld [vmem:[#allocation2 + $0x18] sm:$0xff]
  %v696 = vpack.c.bf16 %v690, %v690
  %v697 = vld [vmem:[%s7] sm:$0xff]
  %v698 = vld [vmem:[%s7 + $0x8] sm:$0xff]
  %v699 = vld [vmem:[%s7 + $0x10] sm:$0xff]
  %v700 = vld [vmem:[%s7 + $0x18] sm:$0xff]
  %v701 = vld [vmem:[%s7 + $0x20] sm:$0xff]
  %v702 = vld [vmem:[%s7 + $0x28] sm:$0xff]
  %v703 = vld [vmem:[%s7 + $0x30] sm:$0xff]
  %v704 = vld [vmem:[%s7 + $0x38] sm:$0xff]
  %v705 = vld [vmem:[%s7 + $0x40] sm:$0xff]
  %v706 = vld [vmem:[%s7 + $0x48] sm:$0xff]
  %v707 = vld [vmem:[%s7 + $0x50] sm:$0xff]
  %v708 = vld [vmem:[%s7 + $0x58] sm:$0xff]
  %v709 = vld [vmem:[%s7 + $0x60] sm:$0xff]
  %v710 = vld [vmem:[%s7 + $0x68] sm:$0xff]
  %v711 = vld [vmem:[%s7 + $0x70] sm:$0xff]
  %v712 = vld [vmem:[%s7 + $0x78] sm:$0xff]
  %v713 = vld [vmem:[%s7 + $0x80] sm:$0xff]
  %v714 = vld [vmem:[%s7 + $0x88] sm:$0xff]
  %v715 = vld [vmem:[%s7 + $0x90] sm:$0xff]
  %v716 = vld [vmem:[%s7 + $0x98] sm:$0xff]
  %v717 = vld [vmem:[%s7 + $0xa0] sm:$0xff]
  %v718 = vld [vmem:[%s7 + $0xa8] sm:$0xff]
  %v719 = vld [vmem:[%s7 + $0xb0] sm:$0xff]
  %v720 = vld [vmem:[%s7 + $0xb8] sm:$0xff]
  %v721 = vld [vmem:[%s7 + $0xc0] sm:$0xff]
  %v722 = vld [vmem:[%s7 + $0xc8] sm:$0xff]
  %v723 = vld [vmem:[%s7 + $0xd0] sm:$0xff]
  %v724 = vld [vmem:[%s7 + $0xd8] sm:$0xff]
  %v725 = vld [vmem:[%s7 + $0xe0] sm:$0xff]
  %v726 = vld [vmem:[%s7 + $0xe8] sm:$0xff]
  %v727 = vld [vmem:[%s7 + $0xf0] sm:$0xff]
  %v728 = vld [vmem:[%s7 + $0xf8] sm:$0xff]
  %v761 = vunpack.c.l.b16 %v697
  %v762 = vunpack.c.h.b16 %v697
  %v763 = vunpack.c.l.b16 %v698
  %v764 = vunpack.c.h.b16 %v698
  %v765 = vunpack.c.l.b16 %v699
  %v766 = vunpack.c.h.b16 %v699
  %v767 = vunpack.c.l.b16 %v700
  %v768 = vunpack.c.h.b16 %v700
  %v769 = vunpack.c.l.b16 %v701
  %v770 = vunpack.c.h.b16 %v701
  %v771 = vunpack.c.l.b16 %v702
  %v772 = vunpack.c.h.b16 %v702
  %v773 = vunpack.c.l.b16 %v703
  %v774 = vunpack.c.h.b16 %v703
  %v775 = vunpack.c.l.b16 %v704
  %v776 = vunpack.c.h.b16 %v704
  %v777 = vunpack.c.l.b16 %v705
  %v778 = vunpack.c.h.b16 %v705
  %v779 = vunpack.c.l.b16 %v706
  %v780 = vunpack.c.h.b16 %v706
  %v781 = vunpack.c.l.b16 %v707
  %v782 = vunpack.c.h.b16 %v707
  %v783 = vunpack.c.l.b16 %v708
  %v784 = vunpack.c.h.b16 %v708
  %v785 = vunpack.c.l.b16 %v709
  %v786 = vunpack.c.h.b16 %v709
  %v787 = vunpack.c.l.b16 %v710
  %v788 = vunpack.c.h.b16 %v710
  %v789 = vunpack.c.l.b16 %v711
  %v790 = vunpack.c.h.b16 %v711
  %v791 = vunpack.c.l.b16 %v712
  %v792 = vunpack.c.h.b16 %v712
  %v793 = vunpack.c.l.b16 %v713
  %v794 = vunpack.c.h.b16 %v713
  %v795 = vunpack.c.l.b16 %v714
  %v796 = vunpack.c.h.b16 %v714
  %v797 = vunpack.c.l.b16 %v715
  %v798 = vunpack.c.h.b16 %v715
  %v799 = vunpack.c.l.b16 %v716
  %v800 = vunpack.c.h.b16 %v716
  %v801 = vunpack.c.l.b16 %v717
  %v802 = vunpack.c.h.b16 %v717
  %v803 = vunpack.c.l.b16 %v718
  %v804 = vunpack.c.h.b16 %v718
  %v805 = vunpack.c.l.b16 %v719
  %v806 = vunpack.c.h.b16 %v719
  %v807 = vunpack.c.l.b16 %v720
  %v808 = vunpack.c.h.b16 %v720
  %v809 = vunpack.c.l.b16 %v721
  %v810 = vunpack.c.h.b16 %v721
  %v811 = vunpack.c.l.b16 %v722
  %v812 = vunpack.c.h.b16 %v722
  %v813 = vunpack.c.l.b16 %v723
  %v814 = vunpack.c.h.b16 %v723
  %v815 = vunpack.c.l.b16 %v724
  %v816 = vunpack.c.h.b16 %v724
  %v817 = vunpack.c.l.b16 %v725
  %v818 = vunpack.c.h.b16 %v725
  %v819 = vunpack.c.l.b16 %v726
  %v820 = vunpack.c.h.b16 %v726
  %v821 = vunpack.c.l.b16 %v727
  %v822 = vunpack.c.h.b16 %v727
  %v823 = vunpack.c.l.b16 %v728
  %v824 = vunpack.c.h.b16 %v728
  %v825 = vpack.c.b16 %v765, %v761
  %v826 = vpack.c.b16 %v766, %v762
  %v827 = vpack.c.b16 %v767, %v763
  %v828 = vpack.c.b16 %v768, %v764
  %v829 = vpack.c.b16 %v773, %v769
  %v830 = vpack.c.b16 %v774, %v770
  %v831 = vpack.c.b16 %v775, %v771
  %v832 = vpack.c.b16 %v776, %v772
  %v833 = vpack.c.b16 %v781, %v777
  %v834 = vpack.c.b16 %v782, %v778
  %v835 = vpack.c.b16 %v783, %v779
  %v836 = vpack.c.b16 %v784, %v780
  %v837 = vpack.c.b16 %v789, %v785
  %v838 = vpack.c.b16 %v790, %v786
  %v839 = vpack.c.b16 %v791, %v787
  %v840 = vpack.c.b16 %v792, %v788
  %v841 = vpack.c.b16 %v797, %v793
  %v842 = vpack.c.b16 %v798, %v794
  %v843 = vpack.c.b16 %v799, %v795
  %v844 = vpack.c.b16 %v800, %v796
  %v845 = vpack.c.b16 %v805, %v801
  %v846 = vpack.c.b16 %v806, %v802
  %v847 = vpack.c.b16 %v807, %v803
  %v848 = vpack.c.b16 %v808, %v804
  %v849 = vpack.c.b16 %v813, %v809
  %v850 = vpack.c.b16 %v814, %v810
  %v851 = vpack.c.b16 %v815, %v811
  %v852 = vpack.c.b16 %v816, %v812
  %v853 = vpack.c.b16 %v821, %v817
  %v854 = vpack.c.b16 %v822, %v818
  %v855 = vpack.c.b16 %v823, %v819
  %v856 = vpack.c.b16 %v824, %v820
  %889 = vmatprep.subr.bf16.mxu0 %v826
  %890 = vmatpush1.bf16.msra.mxu0 %v825
  %891 = vmatprep.subr.bf16.mxu0 %v830
  %892 = vmatpush1.bf16.msra.mxu0 %v829
  %893 = vmatprep.subr.bf16.mxu0 %v834
  %894 = vmatpush1.bf16.msra.mxu0 %v833
  %895 = vmatprep.subr.bf16.mxu0 %v838
  %896 = vmatpush1.bf16.msra.mxu0 %v837
  %897 = vmatprep.subr.bf16.mxu0 %v842
  %898 = vmatpush1.bf16.msra.mxu0 %v841
  %899 = vmatprep.subr.bf16.mxu0 %v846
  %900 = vmatpush1.bf16.msra.mxu0 %v845
  %901 = vmatprep.subr.bf16.mxu0 %v850
  %902 = vmatpush1.bf16.msra.mxu0 %v849
  %903 = vmatprep.subr.bf16.mxu0 %v854
  %904 = vmatpush1.bf16.msra.mxu0 %v853
  %905 = vmatprep.subr.bf16.mxu0 0
  %906 = vmatpush1.bf16.msra.mxu0 0
  %907 = vmatprep.subr.bf16.mxu0 0
  %908 = vmatpush1.bf16.msra.mxu0 0
  %909 = vmatprep.subr.bf16.mxu0 0
  %910 = vmatpush1.bf16.msra.mxu0 0
  %911 = vmatprep.subr.bf16.mxu0 0
  %912 = vmatpush1.bf16.msra.mxu0 0
  %913 = vmatprep.subr.bf16.mxu0 0
  %914 = vmatpush1.bf16.msra.mxu0 0
  %915 = vmatprep.subr.bf16.mxu0 0
  %916 = vmatpush1.bf16.msra.mxu0 0
  %917 = vmatprep.subr.bf16.mxu0 0
  %918 = vmatpush1.bf16.msra.mxu0 0
  %919 = vmatprep.subr.bf16.mxu0 0
  %920 = vmatpush1.bf16.msra.mxu0 0
  %921 = vmatprep.mubr.bf16.mxu0 0
  %922 = vmatmul.mubr.bf16.gmra.mrb[0].mxu0 %v696
  %v923 = vpop.f32.mrb[0].mxu0
  %v924 = vadd.f32 0.0, %v923
  %v925 = vpop.f32.mrb[0].mxu0
  %v926 = vadd.f32 0.0, %v925
  %v927 = vpop.f32.mrb[0].mxu0
  %v928 = vpop.f32.mrb[0].mxu0
  %929 = vdwg.mxu0
  %930 = vmatprep.subr.bf16.mxu0 %v828
  %931 = vmatpush1.bf16.msra.mxu0 %v827
  %932 = vmatprep.subr.bf16.mxu0 %v832
  %933 = vmatpush1.bf16.msra.mxu0 %v831
  %934 = vmatprep.subr.bf16.mxu0 %v836
  %935 = vmatpush1.bf16.msra.mxu0 %v835
  %936 = vmatprep.subr.bf16.mxu0 %v840
  %937 = vmatpush1.bf16.msra.mxu0 %v839
  %938 = vmatprep.subr.bf16.mxu0 %v844
  %939 = vmatpush1.bf16.msra.mxu0 %v843
  %940 = vmatprep.subr.bf16.mxu0 %v848
  %941 = vmatpush1.bf16.msra.mxu0 %v847
  %942 = vmatprep.subr.bf16.mxu0 %v852
  %943 = vmatpush1.bf16.msra.mxu0 %v851
  %944 = vmatprep.subr.bf16.mxu0 %v856
  %945 = vmatpush1.bf16.msra.mxu0 %v855
  %946 = vmatprep.subr.bf16.mxu0 0
  %947 = vmatpush1.bf16.msra.mxu0 0
  %948 = vmatprep.subr.bf16.mxu0 0
  %949 = vmatpush1.bf16.msra.mxu0 0
  %950 = vmatprep.subr.bf16.mxu0 0
  %951 = vmatpush1.bf16.msra.mxu0 0
  %952 = vmatprep.subr.bf16.mxu0 0
  %953 = vmatpush1.bf16.msra.mxu0 0
  %954 = vmatprep.subr.bf16.mxu0 0
  %955 = vmatpush1.bf16.msra.mxu0 0
  %956 = vmatprep.subr.bf16.mxu0 0
  %957 = vmatpush1.bf16.msra.mxu0 0
  %958 = vmatprep.subr.bf16.mxu0 0
  %959 = vmatpush1.bf16.msra.mxu0 0
  %960 = vmatprep.subr.bf16.mxu0 0
  %961 = vmatpush1.bf16.msra.mxu0 0
  %962 = vmatprep.mubr.bf16.mxu0 0
  %963 = vmatmul.mubr.bf16.gmra.mrb[0].mxu0 %v696
  %v964 = vpop.f32.mrb[0].mxu0
  %v965 = vadd.f32 0.0, %v964
  %v966 = vpop.f32.mrb[0].mxu0
  %v967 = vadd.f32 0.0, %v966
  %v968 = vpop.f32.mrb[0].mxu0
  %v969 = vpop.f32.mrb[0].mxu0
  %970 = vdwg.mxu0
  %v971 = vadd.f32 %v692, %v924
  %v972 = vadd.f32 %v693, %v926
  %v973 = vadd.f32 %v694, %v965
  %v974 = vadd.f32 %v695, %v967
  %v975 = vmul.f32 %v971, 0.5
  %v976 = vmul.f32 %v972, 0.5
  %v977 = vmul.f32 %v973, 0.5
  %v978 = vtanh.pop %v975
  %v979 = vtanh.pop %v976
  %v980 = vtanh.pop %v977
  %v981 = vmul.f32 %v978, 0.5
  %v982 = vmul.f32 %v979, 0.5
  %v983 = vmul.f32 %v980, 0.5
  %v984 = vadd.f32 %v981, 0.5
  %v985 = vadd.f32 %v982, 0.5
  %v986 = vadd.f32 %v983, 0.5
  %v987 = vtanh.pop %v974
  %v988 = vmul.f32 %v985, %v691
  %v989 = vmul.f32 %v984, %v987
  %v990 = vadd.f32 %v988, %v989
  %v991 = vtanh.pop %v990
  %v992 = vmul.f32 %v986, %v991
  %993 = vst [vmem:[#allocation3] sm:$0xff] %v992
  %v994 = vld [vmem:[#allocation2 + $0x20] sm:$0xff]
  %v995 = vld [vmem:[#allocation2 + $0x28] sm:$0xff]
  %v996 = vld [vmem:[#allocation2 + $0x30] sm:$0xff]
  %v997 = vld [vmem:[#allocation2 + $0x38] sm:$0xff]
  %v998 = vpack.c.bf16 %v992, %v992
  %v999 = vld [vmem:[%s7] sm:$0xff]
  %v1000 = vld [vmem:[%s7 + $0x8] sm:$0xff]
  %v1001 = vld [vmem:[%s7 + $0x10] sm:$0xff]
  %v1002 = vld [vmem:[%s7 + $0x18] sm:$0xff]
  %v1003 = vld [vmem:[%s7 + $0x20] sm:$0xff]
  %v1004 = vld [vmem:[%s7 + $0x28] sm:$0xff]
  %v1005 = vld [vmem:[%s7 + $0x30] sm:$0xff]
  %v1006 = vld [vmem:[%s7 + $0x38] sm:$0xff]
  %v1007 = vld [vmem:[%s7 + $0x40] sm:$0xff]
  %v1008 = vld [vmem:[%s7 + $0x48] sm:$0xff]
  %v1009 = vld [vmem:[%s7 + $0x50] sm:$0xff]
  %v1010 = vld [vmem:[%s7 + $0x58] sm:$0xff]
  %v1011 = vld [vmem:[%s7 + $0x60] sm:$0xff]
  %v1012 = vld [vmem:[%s7 + $0x68] sm:$0xff]
  %v1013 = vld [vmem:[%s7 + $0x70] sm:$0xff]
  %v1014 = vld [vmem:[%s7 + $0x78] sm:$0xff]
  %v1015 = vld [vmem:[%s7 + $0x80] sm:$0xff]
  %v1016 = vld [vmem:[%s7 + $0x88] sm:$0xff]
  %v1017 = vld [vmem:[%s7 + $0x90] sm:$0xff]
  %v1018 = vld [vmem:[%s7 + $0x98] sm:$0xff]
  %v1019 = vld [vmem:[%s7 + $0xa0] sm:$0xff]
  %v1020 = vld [vmem:[%s7 + $0xa8] sm:$0xff]
  %v1021 = vld [vmem:[%s7 + $0xb0] sm:$0xff]
  %v1022 = vld [vmem:[%s7 + $0xb8] sm:$0xff]
  %v1023 = vld [vmem:[%s7 + $0xc0] sm:$0xff]
  %v1024 = vld [vmem:[%s7 + $0xc8] sm:$0xff]
  %v1025 = vld [vmem:[%s7 + $0xd0] sm:$0xff]
  %v1026 = vld [vmem:[%s7 + $0xd8] sm:$0xff]
  %v1027 = vld [vmem:[%s7 + $0xe0] sm:$0xff]
  %v1028 = vld [vmem:[%s7 + $0xe8] sm:$0xff]
  %v1029 = vld [vmem:[%s7 + $0xf0] sm:$0xff]
  %v1030 = vld [vmem:[%s7 + $0xf8] sm:$0xff]
  %v1063 = vunpack.c.l.b16 %v999
  %v1064 = vunpack.c.h.b16 %v999
  %v1065 = vunpack.c.l.b16 %v1000
  %v1066 = vunpack.c.h.b16 %v1000
  %v1067 = vunpack.c.l.b16 %v1001
  %v1068 = vunpack.c.h.b16 %v1001
  %v1069 = vunpack.c.l.b16 %v1002
  %v1070 = vunpack.c.h.b16 %v1002
  %v1071 = vunpack.c.l.b16 %v1003
  %v1072 = vunpack.c.h.b16 %v1003
  %v1073 = vunpack.c.l.b16 %v1004
  %v1074 = vunpack.c.h.b16 %v1004
  %v1075 = vunpack.c.l.b16 %v1005
  %v1076 = vunpack.c.h.b16 %v1005
  %v1077 = vunpack.c.l.b16 %v1006
  %v1078 = vunpack.c.h.b16 %v1006
  %v1079 = vunpack.c.l.b16 %v1007
  %v1080 = vunpack.c.h.b16 %v1007
  %v1081 = vunpack.c.l.b16 %v1008
  %v1082 = vunpack.c.h.b16 %v1008
  %v1083 = vunpack.c.l.b16 %v1009
  %v1084 = vunpack.c.h.b16 %v1009
  %v1085 = vunpack.c.l.b16 %v1010
  %v1086 = vunpack.c.h.b16 %v1010
  %v1087 = vunpack.c.l.b16 %v1011
  %v1088 = vunpack.c.h.b16 %v1011
  %v1089 = vunpack.c.l.b16 %v1012
  %v1090 = vunpack.c.h.b16 %v1012
  %v1091 = vunpack.c.l.b16 %v1013
  %v1092 = vunpack.c.h.b16 %v1013
  %v1093 = vunpack.c.l.b16 %v1014
  %v1094 = vunpack.c.h.b16 %v1014
  %v1095 = vunpack.c.l.b16 %v1015
  %v1096 = vunpack.c.h.b16 %v1015
  %v1097 = vunpack.c.l.b16 %v1016
  %v1098 = vunpack.c.h.b16 %v1016
  %v1099 = vunpack.c.l.b16 %v1017
  %v1100 = vunpack.c.h.b16 %v1017
  %v1101 = vunpack.c.l.b16 %v1018
  %v1102 = vunpack.c.h.b16 %v1018
  %v1103 = vunpack.c.l.b16 %v1019
  %v1104 = vunpack.c.h.b16 %v1019
  %v1105 = vunpack.c.l.b16 %v1020
  %v1106 = vunpack.c.h.b16 %v1020
  %v1107 = vunpack.c.l.b16 %v1021
  %v1108 = vunpack.c.h.b16 %v1021
  %v1109 = vunpack.c.l.b16 %v1022
  %v1110 = vunpack.c.h.b16 %v1022
  %v1111 = vunpack.c.l.b16 %v1023
  %v1112 = vunpack.c.h.b16 %v1023
  %v1113 = vunpack.c.l.b16 %v1024
  %v1114 = vunpack.c.h.b16 %v1024
  %v1115 = vunpack.c.l.b16 %v1025
  %v1116 = vunpack.c.h.b16 %v1025
  %v1117 = vunpack.c.l.b16 %v1026
  %v1118 = vunpack.c.h.b16 %v1026
  %v1119 = vunpack.c.l.b16 %v1027
  %v1120 = vunpack.c.h.b16 %v1027
  %v1121 = vunpack.c.l.b16 %v1028
  %v1122 = vunpack.c.h.b16 %v1028
  %v1123 = vunpack.c.l.b16 %v1029
  %v1124 = vunpack.c.h.b16 %v1029
  %v1125 = vunpack.c.l.b16 %v1030
  %v1126 = vunpack.c.h.b16 %v1030
  %v1127 = vpack.c.b16 %v1067, %v1063
  %v1128 = vpack.c.b16 %v1068, %v1064
  %v1129 = vpack.c.b16 %v1069, %v1065
  %v1130 = vpack.c.b16 %v1070, %v1066
  %v1131 = vpack.c.b16 %v1075, %v1071
  %v1132 = vpack.c.b16 %v1076, %v1072
  %v1133 = vpack.c.b16 %v1077, %v1073
  %v1134 = vpack.c.b16 %v1078, %v1074
  %v1135 = vpack.c.b16 %v1083, %v1079
  %v1136 = vpack.c.b16 %v1084, %v1080
  %v1137 = vpack.c.b16 %v1085, %v1081
  %v1138 = vpack.c.b16 %v1086, %v1082
  %v1139 = vpack.c.b16 %v1091, %v1087
  %v1140 = vpack.c.b16 %v1092, %v1088
  %v1141 = vpack.c.b16 %v1093, %v1089
  %v1142 = vpack.c.b16 %v1094, %v1090
  %v1143 = vpack.c.b16 %v1099, %v1095
  %v1144 = vpack.c.b16 %v1100, %v1096
  %v1145 = vpack.c.b16 %v1101, %v1097
  %v1146 = vpack.c.b16 %v1102, %v1098
  %v1147 = vpack.c.b16 %v1107, %v1103
  %v1148 = vpack.c.b16 %v1108, %v1104
  %v1149 = vpack.c.b16 %v1109, %v1105
  %v1150 = vpack.c.b16 %v1110, %v1106
  %v1151 = vpack.c.b16 %v1115, %v1111
  %v1152 = vpack.c.b16 %v1116, %v1112
  %v1153 = vpack.c.b16 %v1117, %v1113
  %v1154 = vpack.c.b16 %v1118, %v1114
  %v1155 = vpack.c.b16 %v1123, %v1119
  %v1156 = vpack.c.b16 %v1124, %v1120
  %v1157 = vpack.c.b16 %v1125, %v1121
  %v1158 = vpack.c.b16 %v1126, %v1122
  %1191 = vmatprep.subr.bf16.mxu0 %v1128
  %1192 = vmatpush1.bf16.msra.mxu0 %v1127
  %1193 = vmatprep.subr.bf16.mxu0 %v1132
  %1194 = vmatpush1.bf16.msra.mxu0 %v1131
  %1195 = vmatprep.subr.bf16.mxu0 %v1136
  %1196 = vmatpush1.bf16.msra.mxu0 %v1135
  %1197 = vmatprep.subr.bf16.mxu0 %v1140
  %1198 = vmatpush1.bf16.msra.mxu0 %v1139
  %1199 = vmatprep.subr.bf16.mxu0 %v1144
  %1200 = vmatpush1.bf16.msra.mxu0 %v1143
  %1201 = vmatprep.subr.bf16.mxu0 %v1148
  %1202 = vmatpush1.bf16.msra.mxu0 %v1147
  %1203 = vmatprep.subr.bf16.mxu0 %v1152
  %1204 = vmatpush1.bf16.msra.mxu0 %v1151
  %1205 = vmatprep.subr.bf16.mxu0 %v1156
  %1206 = vmatpush1.bf16.msra.mxu0 %v1155
  %1207 = vmatprep.subr.bf16.mxu0 0
  %1208 = vmatpush1.bf16.msra.mxu0 0
  %1209 = vmatprep.subr.bf16.mxu0 0
  %1210 = vmatpush1.bf16.msra.mxu0 0
  %1211 = vmatprep.subr.bf16.mxu0 0
  %1212 = vmatpush1.bf16.msra.mxu0 0
  %1213 = vmatprep.subr.bf16.mxu0 0
  %1214 = vmatpush1.bf16.msra.mxu0 0
  %1215 = vmatprep.subr.bf16.mxu0 0
  %1216 = vmatpush1.bf16.msra.mxu0 0
  %1217 = vmatprep.subr.bf16.mxu0 0
  %1218 = vmatpush1.bf16.msra.mxu0 0
  %1219 = vmatprep.subr.bf16.mxu0 0
  %1220 = vmatpush1.bf16.msra.mxu0 0
  %1221 = vmatprep.subr.bf16.mxu0 0
  %1222 = vmatpush1.bf16.msra.mxu0 0
  %1223 = vmatprep.mubr.bf16.mxu0 0
  %1224 = vmatmul.mubr.bf16.gmra.mrb[0].mxu0 %v998
  %v1225 = vpop.f32.mrb[0].mxu0
  %v1226 = vadd.f32 0.0, %v1225
  %v1227 = vpop.f32.mrb[0].mxu0
  %v1228 = vadd.f32 0.0, %v1227
  %v1229 = vpop.f32.mrb[0].mxu0
  %v1230 = vpop.f32.mrb[0].mxu0
  %1231 = vdwg.mxu0
  %1232 = vmatprep.subr.bf16.mxu0 %v1130
  %1233 = vmatpush1.bf16.msra.mxu0 %v1129
  %1234 = vmatprep.subr.bf16.mxu0 %v1134
  %1235 = vmatpush1.bf16.msra.mxu0 %v1133
  %1236 = vmatprep.subr.bf16.mxu0 %v1138
  %1237 = vmatpush1.bf16.msra.mxu0 %v1137
  %1238 = vmatprep.subr.bf16.mxu0 %v1142
  %1239 = vmatpush1.bf16.msra.mxu0 %v1141
  %1240 = vmatprep.subr.bf16.mxu0 %v1146
  %1241 = vmatpush1.bf16.msra.mxu0 %v1145
  %1242 = vmatprep.subr.bf16.mxu0 %v1150
  %1243 = vmatpush1.bf16.msra.mxu0 %v1149
  %1244 = vmatprep.subr.bf16.mxu0 %v1154
  %1245 = vmatpush1.bf16.msra.mxu0 %v1153
  %1246 = vmatprep.subr.bf16.mxu0 %v1158
  %1247 = vmatpush1.bf16.msra.mxu0 %v1157
  %1248 = vmatprep.subr.bf16.mxu0 0
  %1249 = vmatpush1.bf16.msra.mxu0 0
  %1250 = vmatprep.subr.bf16.mxu0 0
  %1251 = vmatpush1.bf16.msra.mxu0 0
  %1252 = vmatprep.subr.bf16.mxu0 0
  %1253 = vmatpush1.bf16.msra.mxu0 0
  %1254 = vmatprep.subr.bf16.mxu0 0
  %1255 = vmatpush1.bf16.msra.mxu0 0
  %1256 = vmatprep.subr.bf16.mxu0 0
  %1257 = vmatpush1.bf16.msra.mxu0 0
  %1258 = vmatprep.subr.bf16.mxu0 0
  %1259 = vmatpush1.bf16.msra.mxu0 0
  %1260 = vmatprep.subr.bf16.mxu0 0
  %1261 = vmatpush1.bf16.msra.mxu0 0
  %1262 = vmatprep.subr.bf16.mxu0 0
  %1263 = vmatpush1.bf16.msra.mxu0 0
  %1264 = vmatprep.mubr.bf16.mxu0 0
  %1265 = vmatmul.mubr.bf16.gmra.mrb[0].mxu0 %v998
  %v1266 = vpop.f32.mrb[0].mxu0
  %v1267 = vadd.f32 0.0, %v1266
  %v1268 = vpop.f32.mrb[0].mxu0
  %v1269 = vadd.f32 0.0, %v1268
  %v1270 = vpop.f32.mrb[0].mxu0
  %v1271 = vpop.f32.mrb[0].mxu0
  %1272 = vdwg.mxu0
  %v1273 = vadd.f32 %v994, %v1226
  %v1274 = vadd.f32 %v995, %v1228
  %v1275 = vadd.f32 %v996, %v1267
  %v1276 = vadd.f32 %v997, %v1269
  %v1277 = vmul.f32 %v1273, 0.5
  %v1278 = vmul.f32 %v1274, 0.5
  %v1279 = vmul.f32 %v1275, 0.5
  %v1280 = vtanh.pop %v1277
  %v1281 = vtanh.pop %v1278
  %v1282 = vtanh.pop %v1279
  %v1283 = vmul.f32 %v1280, 0.5
  %v1284 = vmul.f32 %v1281, 0.5
  %v1285 = vmul.f32 %v1282, 0.5
  %v1286 = vadd.f32 %v1283, 0.5
  %v1287 = vadd.f32 %v1284, 0.5
  %v1288 = vadd.f32 %v1285, 0.5
  %v1289 = vtanh.pop %v1276
  %v1290 = vmul.f32 %v1287, %v990
  %v1291 = vmul.f32 %v1286, %v1289
  %v1292 = vadd.f32 %v1290, %v1291
  %v1293 = vtanh.pop %v1292
  %v1294 = vmul.f32 %v1288, %v1293
  %1295 = vst [vmem:[#allocation3 + $0x8] sm:$0xff] %v1294
  %v1296 = vld [vmem:[#allocation2 + $0x40] sm:$0xff]
  %v1297 = vld [vmem:[#allocation2 + $0x48] sm:$0xff]
  %v1298 = vld [vmem:[#allocation2 + $0x50] sm:$0xff]
  %v1299 = vld [vmem:[#allocation2 + $0x58] sm:$0xff]
  %v1300 = vpack.c.bf16 %v1294, %v1294
  %v1301 = vld [vmem:[%s7] sm:$0xff]
  %v1302 = vld [vmem:[%s7 + $0x8] sm:$0xff]
  %v1303 = vld [vmem:[%s7 + $0x10] sm:$0xff]
  %v1304 = vld [vmem:[%s7 + $0x18] sm:$0xff]
  %v1305 = vld [vmem:[%s7 + $0x20] sm:$0xff]
  %v1306 = vld [vmem:[%s7 + $0x28] sm:$0xff]
  %v1307 = vld [vmem:[%s7 + $0x30] sm:$0xff]
  %v1308 = vld [vmem:[%s7 + $0x38] sm:$0xff]
  %v1309 = vld [vmem:[%s7 + $0x40] sm:$0xff]
  %v1310 = vld [vmem:[%s7 + $0x48] sm:$0xff]
  %v1311 = vld [vmem:[%s7 + $0x50] sm:$0xff]
  %v1312 = vld [vmem:[%s7 + $0x58] sm:$0xff]
  %v1313 = vld [vmem:[%s7 + $0x60] sm:$0xff]
  %v1314 = vld [vmem:[%s7 + $0x68] sm:$0xff]
  %v1315 = vld [vmem:[%s7 + $0x70] sm:$0xff]
  %v1316 = vld [vmem:[%s7 + $0x78] sm:$0xff]
  %v1317 = vld [vmem:[%s7 + $0x80] sm:$0xff]
  %v1318 = vld [vmem:[%s7 + $0x88] sm:$0xff]
  %v1319 = vld [vmem:[%s7 + $0x90] sm:$0xff]
  %v1320 = vld [vmem:[%s7 + $0x98] sm:$0xff]
  %v1321 = vld [vmem:[%s7 + $0xa0] sm:$0xff]
  %v1322 = vld [vmem:[%s7 + $0xa8] sm:$0xff]
  %v1323 = vld [vmem:[%s7 + $0xb0] sm:$0xff]
  %v1324 = vld [vmem:[%s7 + $0xb8] sm:$0xff]
  %v1325 = vld [vmem:[%s7 + $0xc0] sm:$0xff]
  %v1326 = vld [vmem:[%s7 + $0xc8] sm:$0xff]
  %v1327 = vld [vmem:[%s7 + $0xd0] sm:$0xff]
  %v1328 = vld [vmem:[%s7 + $0xd8] sm:$0xff]
  %v1329 = vld [vmem:[%s7 + $0xe0] sm:$0xff]
  %v1330 = vld [vmem:[%s7 + $0xe8] sm:$0xff]
  %v1331 = vld [vmem:[%s7 + $0xf0] sm:$0xff]
  %v1332 = vld [vmem:[%s7 + $0xf8] sm:$0xff]
  %v1365 = vunpack.c.l.b16 %v1301
  %v1366 = vunpack.c.h.b16 %v1301
  %v1367 = vunpack.c.l.b16 %v1302
  %v1368 = vunpack.c.h.b16 %v1302
  %v1369 = vunpack.c.l.b16 %v1303
  %v1370 = vunpack.c.h.b16 %v1303
  %v1371 = vunpack.c.l.b16 %v1304
  %v1372 = vunpack.c.h.b16 %v1304
  %v1373 = vunpack.c.l.b16 %v1305
  %v1374 = vunpack.c.h.b16 %v1305
  %v1375 = vunpack.c.l.b16 %v1306
  %v1376 = vunpack.c.h.b16 %v1306
  %v1377 = vunpack.c.l.b16 %v1307
  %v1378 = vunpack.c.h.b16 %v1307
  %v1379 = vunpack.c.l.b16 %v1308
  %v1380 = vunpack.c.h.b16 %v1308
  %v1381 = vunpack.c.l.b16 %v1309
  %v1382 = vunpack.c.h.b16 %v1309
  %v1383 = vunpack.c.l.b16 %v1310
  %v1384 = vunpack.c.h.b16 %v1310
  %v1385 = vunpack.c.l.b16 %v1311
  %v1386 = vunpack.c.h.b16 %v1311
  %v1387 = vunpack.c.l.b16 %v1312
  %v1388 = vunpack.c.h.b16 %v1312
  %v1389 = vunpack.c.l.b16 %v1313
  %v1390 = vunpack.c.h.b16 %v1313
  %v1391 = vunpack.c.l.b16 %v1314
  %v1392 = vunpack.c.h.b16 %v1314
  %v1393 = vunpack.c.l.b16 %v1315
  %v1394 = vunpack.c.h.b16 %v1315
  %v1395 = vunpack.c.l.b16 %v1316
  %v1396 = vunpack.c.h.b16 %v1316
  %v1397 = vunpack.c.l.b16 %v1317
  %v1398 = vunpack.c.h.b16 %v1317
  %v1399 = vunpack.c.l.b16 %v1318
  %v1400 = vunpack.c.h.b16 %v1318
  %v1401 = vunpack.c.l.b16 %v1319
  %v1402 = vunpack.c.h.b16 %v1319
  %v1403 = vunpack.c.l.b16 %v1320
  %v1404 = vunpack.c.h.b16 %v1320
  %v1405 = vunpack.c.l.b16 %v1321
  %v1406 = vunpack.c.h.b16 %v1321
  %v1407 = vunpack.c.l.b16 %v1322
  %v1408 = vunpack.c.h.b16 %v1322
  %v1409 = vunpack.c.l.b16 %v1323
  %v1410 = vunpack.c.h.b16 %v1323
  %v1411 = vunpack.c.l.b16 %v1324
  %v1412 = vunpack.c.h.b16 %v1324
  %v1413 = vunpack.c.l.b16 %v1325
  %v1414 = vunpack.c.h.b16 %v1325
  %v1415 = vunpack.c.l.b16 %v1326
  %v1416 = vunpack.c.h.b16 %v1326
  %v1417 = vunpack.c.l.b16 %v1327
  %v1418 = vunpack.c.h.b16 %v1327
  %v1419 = vunpack.c.l.b16 %v1328
  %v1420 = vunpack.c.h.b16 %v1328
  %v1421 = vunpack.c.l.b16 %v1329
  %v1422 = vunpack.c.h.b16 %v1329
  %v1423 = vunpack.c.l.b16 %v1330
  %v1424 = vunpack.c.h.b16 %v1330
  %v1425 = vunpack.c.l.b16 %v1331
  %v1426 = vunpack.c.h.b16 %v1331
  %v1427 = vunpack.c.l.b16 %v1332
  %v1428 = vunpack.c.h.b16 %v1332
  %v1429 = vpack.c.b16 %v1369, %v1365
  %v1430 = vpack.c.b16 %v1370, %v1366
  %v1431 = vpack.c.b16 %v1371, %v1367
  %v1432 = vpack.c.b16 %v1372, %v1368
  %v1433 = vpack.c.b16 %v1377, %v1373
  %v1434 = vpack.c.b16 %v1378, %v1374
  %v1435 = vpack.c.b16 %v1379, %v1375
  %v1436 = vpack.c.b16 %v1380, %v1376
  %v1437 = vpack.c.b16 %v1385, %v1381
  %v1438 = vpack.c.b16 %v1386, %v1382
  %v1439 = vpack.c.b16 %v1387, %v1383
  %v1440 = vpack.c.b16 %v1388, %v1384
  %v1441 = vpack.c.b16 %v1393, %v1389
  %v1442 = vpack.c.b16 %v1394, %v1390
  %v1443 = vpack.c.b16 %v1395, %v1391
  %v1444 = vpack.c.b16 %v1396, %v1392
  %v1445 = vpack.c.b16 %v1401, %v1397
  %v1446 = vpack.c.b16 %v1402, %v1398
  %v1447 = vpack.c.b16 %v1403, %v1399
  %v1448 = vpack.c.b16 %v1404, %v1400
  %v1449 = vpack.c.b16 %v1409, %v1405
  %v1450 = vpack.c.b16 %v1410, %v1406
  %v1451 = vpack.c.b16 %v1411, %v1407
  %v1452 = vpack.c.b16 %v1412, %v1408
  %v1453 = vpack.c.b16 %v1417, %v1413
  %v1454 = vpack.c.b16 %v1418, %v1414
  %v1455 = vpack.c.b16 %v1419, %v1415
  %v1456 = vpack.c.b16 %v1420, %v1416
  %v1457 = vpack.c.b16 %v1425, %v1421
  %v1458 = vpack.c.b16 %v1426, %v1422
  %v1459 = vpack.c.b16 %v1427, %v1423
  %v1460 = vpack.c.b16 %v1428, %v1424
  %1493 = vmatprep.subr.bf16.mxu0 %v1430
  %1494 = vmatpush1.bf16.msra.mxu0 %v1429
  %1495 = vmatprep.subr.bf16.mxu0 %v1434
  %1496 = vmatpush1.bf16.msra.mxu0 %v1433
  %1497 = vmatprep.subr.bf16.mxu0 %v1438
  %1498 = vmatpush1.bf16.msra.mxu0 %v1437
  %1499 = vmatprep.subr.bf16.mxu0 %v1442
  %1500 = vmatpush1.bf16.msra.mxu0 %v1441
  %1501 = vmatprep.subr.bf16.mxu0 %v1446
  %1502 = vmatpush1.bf16.msra.mxu0 %v1445
  %1503 = vmatprep.subr.bf16.mxu0 %v1450
  %1504 = vmatpush1.bf16.msra.mxu0 %v1449
  %1505 = vmatprep.subr.bf16.mxu0 %v1454
  %1506 = vmatpush1.bf16.msra.mxu0 %v1453
  %1507 = vmatprep.subr.bf16.mxu0 %v1458
  %1508 = vmatpush1.bf16.msra.mxu0 %v1457
  %1509 = vmatprep.subr.bf16.mxu0 0
  %1510 = vmatpush1.bf16.msra.mxu0 0
  %1511 = vmatprep.subr.bf16.mxu0 0
  %1512 = vmatpush1.bf16.msra.mxu0 0
  %1513 = vmatprep.subr.bf16.mxu0 0
  %1514 = vmatpush1.bf16.msra.mxu0 0
  %1515 = vmatprep.subr.bf16.mxu0 0
  %1516 = vmatpush1.bf16.msra.mxu0 0
  %1517 = vmatprep.subr.bf16.mxu0 0
  %1518 = vmatpush1.bf16.msra.mxu0 0
  %1519 = vmatprep.subr.bf16.mxu0 0
  %1520 = vmatpush1.bf16.msra.mxu0 0
  %1521 = vmatprep.subr.bf16.mxu0 0
  %1522 = vmatpush1.bf16.msra.mxu0 0
  %1523 = vmatprep.subr.bf16.mxu0 0
  %1524 = vmatpush1.bf16.msra.mxu0 0
  %1525 = vmatprep.mubr.bf16.mxu0 0
  %1526 = vmatmul.mubr.bf16.gmra.mrb[0].mxu0 %v1300
  %v1527 = vpop.f32.mrb[0].mxu0
  %v1528 = vadd.f32 0.0, %v1527
  %v1529 = vpop.f32.mrb[0].mxu0
  %v1530 = vadd.f32 0.0, %v1529
  %v1531 = vpop.f32.mrb[0].mxu0
  %v1532 = vpop.f32.mrb[0].mxu0
  %1533 = vdwg.mxu0
  %1534 = vmatprep.subr.bf16.mxu0 %v1432
  %1535 = vmatpush1.bf16.msra.mxu0 %v1431
  %1536 = vmatprep.subr.bf16.mxu0 %v1436
  %1537 = vmatpush1.bf16.msra.mxu0 %v1435
  %1538 = vmatprep.subr.bf16.mxu0 %v1440
  %1539 = vmatpush1.bf16.msra.mxu0 %v1439
  %1540 = vmatprep.subr.bf16.mxu0 %v1444
  %1541 = vmatpush1.bf16.msra.mxu0 %v1443
  %1542 = vmatprep.subr.bf16.mxu0 %v1448
  %1543 = vmatpush1.bf16.msra.mxu0 %v1447
  %1544 = vmatprep.subr.bf16.mxu0 %v1452
  %1545 = vmatpush1.bf16.msra.mxu0 %v1451
  %1546 = vmatprep.subr.bf16.mxu0 %v1456
  %1547 = vmatpush1.bf16.msra.mxu0 %v1455
  %1548 = vmatprep.subr.bf16.mxu0 %v1460
  %1549 = vmatpush1.bf16.msra.mxu0 %v1459
  %1550 = vmatprep.subr.bf16.mxu0 0
  %1551 = vmatpush1.bf16.msra.mxu0 0
  %1552 = vmatprep.subr.bf16.mxu0 0
  %1553 = vmatpush1.bf16.msra.mxu0 0
  %1554 = vmatprep.subr.bf16.mxu0 0
  %1555 = vmatpush1.bf16.msra.mxu0 0
  %1556 = vmatprep.subr.bf16.mxu0 0
  %1557 = vmatpush1.bf16.msra.mxu0 0
  %1558 = vmatprep.subr.bf16.mxu0 0
  %1559 = vmatpush1.bf16.msra.mxu0 0
  %1560 = vmatprep.subr.bf16.mxu0 0
  %1561 = vmatpush1.bf16.msra.mxu0 0
  %1562 = vmatprep.subr.bf16.mxu0 0
  %1563 = vmatpush1.bf16.msra.mxu0 0
  %1564 = vmatprep.subr.bf16.mxu0 0
  %1565 = vmatpush1.bf16.msra.mxu0 0
  %1566 = vmatprep.mubr.bf16.mxu0 0
  %1567 = vmatmul.mubr.bf16.gmra.mrb[0].mxu0 %v1300
  %v1568 = vpop.f32.mrb[0].mxu0
  %v1569 = vadd.f32 0.0, %v1568
  %v1570 = vpop.f32.mrb[0].mxu0
  %v1571 = vadd.f32 0.0, %v1570
  %v1572 = vpop.f32.mrb[0].mxu0
  %v1573 = vpop.f32.mrb[0].mxu0
  %1574 = vdwg.mxu0
  %v1575 = vadd.f32 %v1296, %v1528
  %v1576 = vadd.f32 %v1297, %v1530
  %v1577 = vadd.f32 %v1298, %v1569
  %v1578 = vadd.f32 %v1299, %v1571
  %v1579 = vmul.f32 %v1575, 0.5
  %v1580 = vmul.f32 %v1576, 0.5
  %v1581 = vmul.f32 %v1577, 0.5
  %v1582 = vtanh.pop %v1579
  %v1583 = vtanh.pop %v1580
  %v1584 = vtanh.pop %v1581
  %v1585 = vmul.f32 %v1582, 0.5
  %v1586 = vmul.f32 %v1583, 0.5
  %v1587 = vmul.f32 %v1584, 0.5
  %v1588 = vadd.f32 %v1585, 0.5
  %v1589 = vadd.f32 %v1586, 0.5
  %v1590 = vadd.f32 %v1587, 0.5
  %v1591 = vtanh.pop %v1578
  %v1592 = vmul.f32 %v1589, %v1292
  %v1593 = vmul.f32 %v1588, %v1591
  %v1594 = vadd.f32 %v1592, %v1593
  %v1595 = vtanh.pop %v1594
  %v1596 = vmul.f32 %v1590, %v1595
  %1597 = vst [vmem:[#allocation3 + $0x10] sm:$0xff] %v1596
  %v1598 = vld [vmem:[#allocation2 + $0x60] sm:$0xff]
  %v1599 = vld [vmem:[#allocation2 + $0x68] sm:$0xff]
  %v1600 = vld [vmem:[#allocation2 + $0x70] sm:$0xff]
  %v1601 = vld [vmem:[#allocation2 + $0x78] sm:$0xff]
  %v1602 = vpack.c.bf16 %v1596, %v1596
  %v1603 = vld [vmem:[%s7] sm:$0xff]
  %v1604 = vld [vmem:[%s7 + $0x8] sm:$0xff]
  %v1605 = vld [vmem:[%s7 + $0x10] sm:$0xff]
  %v1606 = vld [vmem:[%s7 + $0x18] sm:$0xff]
  %v1607 = vld [vmem:[%s7 + $0x20] sm:$0xff]
  %v1608 = vld [vmem:[%s7 + $0x28] sm:$0xff]
  %v1609 = vld [vmem:[%s7 + $0x30] sm:$0xff]
  %v1610 = vld [vmem:[%s7 + $0x38] sm:$0xff]
  %v1611 = vld [vmem:[%s7 + $0x40] sm:$0xff]
  %v1612 = vld [vmem:[%s7 + $0x48] sm:$0xff]
  %v1613 = vld [vmem:[%s7 + $0x50] sm:$0xff]
  %v1614 = vld [vmem:[%s7 + $0x58] sm:$0xff]
  %v1615 = vld [vmem:[%s7 + $0x60] sm:$0xff]
  %v1616 = vld [vmem:[%s7 + $0x68] sm:$0xff]
  %v1617 = vld [vmem:[%s7 + $0x70] sm:$0xff]
  %v1618 = vld [vmem:[%s7 + $0x78] sm:$0xff]
  %v1619 = vld [vmem:[%s7 + $0x80] sm:$0xff]
  %v1620 = vld [vmem:[%s7 + $0x88] sm:$0xff]
  %v1621 = vld [vmem:[%s7 + $0x90] sm:$0xff]
  %v1622 = vld [vmem:[%s7 + $0x98] sm:$0xff]
  %v1623 = vld [vmem:[%s7 + $0xa0] sm:$0xff]
  %v1624 = vld [vmem:[%s7 + $0xa8] sm:$0xff]
  %v1625 = vld [vmem:[%s7 + $0xb0] sm:$0xff]
  %v1626 = vld [vmem:[%s7 + $0xb8] sm:$0xff]
  %v1627 = vld [vmem:[%s7 + $0xc0] sm:$0xff]
  %v1628 = vld [vmem:[%s7 + $0xc8] sm:$0xff]
  %v1629 = vld [vmem:[%s7 + $0xd0] sm:$0xff]
  %v1630 = vld [vmem:[%s7 + $0xd8] sm:$0xff]
  %v1631 = vld [vmem:[%s7 + $0xe0] sm:$0xff]
  %v1632 = vld [vmem:[%s7 + $0xe8] sm:$0xff]
  %v1633 = vld [vmem:[%s7 + $0xf0] sm:$0xff]
  %v1634 = vld [vmem:[%s7 + $0xf8] sm:$0xff]
  %v1667 = vunpack.c.l.b16 %v1603
  %v1668 = vunpack.c.h.b16 %v1603
  %v1669 = vunpack.c.l.b16 %v1604
  %v1670 = vunpack.c.h.b16 %v1604
  %v1671 = vunpack.c.l.b16 %v1605
  %v1672 = vunpack.c.h.b16 %v1605
  %v1673 = vunpack.c.l.b16 %v1606
  %v1674 = vunpack.c.h.b16 %v1606
  %v1675 = vunpack.c.l.b16 %v1607
  %v1676 = vunpack.c.h.b16 %v1607
  %v1677 = vunpack.c.l.b16 %v1608
  %v1678 = vunpack.c.h.b16 %v1608
  %v1679 = vunpack.c.l.b16 %v1609
  %v1680 = vunpack.c.h.b16 %v1609
  %v1681 = vunpack.c.l.b16 %v1610
  %v1682 = vunpack.c.h.b16 %v1610
  %v1683 = vunpack.c.l.b16 %v1611
  %v1684 = vunpack.c.h.b16 %v1611
  %v1685 = vunpack.c.l.b16 %v1612
  %v1686 = vunpack.c.h.b16 %v1612
  %v1687 = vunpack.c.l.b16 %v1613
  %v1688 = vunpack.c.h.b16 %v1613
  %v1689 = vunpack.c.l.b16 %v1614
  %v1690 = vunpack.c.h.b16 %v1614
  %v1691 = vunpack.c.l.b16 %v1615
  %v1692 = vunpack.c.h.b16 %v1615
  %v1693 = vunpack.c.l.b16 %v1616
  %v1694 = vunpack.c.h.b16 %v1616
  %v1695 = vunpack.c.l.b16 %v1617
  %v1696 = vunpack.c.h.b16 %v1617
  %v1697 = vunpack.c.l.b16 %v1618
  %v1698 = vunpack.c.h.b16 %v1618
  %v1699 = vunpack.c.l.b16 %v1619
  %v1700 = vunpack.c.h.b16 %v1619
  %v1701 = vunpack.c.l.b16 %v1620
  %v1702 = vunpack.c.h.b16 %v1620
  %v1703 = vunpack.c.l.b16 %v1621
  %v1704 = vunpack.c.h.b16 %v1621
  %v1705 = vunpack.c.l.b16 %v1622
  %v1706 = vunpack.c.h.b16 %v1622
  %v1707 = vunpack.c.l.b16 %v1623
  %v1708 = vunpack.c.h.b16 %v1623
  %v1709 = vunpack.c.l.b16 %v1624
  %v1710 = vunpack.c.h.b16 %v1624
  %v1711 = vunpack.c.l.b16 %v1625
  %v1712 = vunpack.c.h.b16 %v1625
  %v1713 = vunpack.c.l.b16 %v1626
  %v1714 = vunpack.c.h.b16 %v1626
  %v1715 = vunpack.c.l.b16 %v1627
  %v1716 = vunpack.c.h.b16 %v1627
  %v1717 = vunpack.c.l.b16 %v1628
  %v1718 = vunpack.c.h.b16 %v1628
  %v1719 = vunpack.c.l.b16 %v1629
  %v1720 = vunpack.c.h.b16 %v1629
  %v1721 = vunpack.c.l.b16 %v1630
  %v1722 = vunpack.c.h.b16 %v1630
  %v1723 = vunpack.c.l.b16 %v1631
  %v1724 = vunpack.c.h.b16 %v1631
  %v1725 = vunpack.c.l.b16 %v1632
  %v1726 = vunpack.c.h.b16 %v1632
  %v1727 = vunpack.c.l.b16 %v1633
  %v1728 = vunpack.c.h.b16 %v1633
  %v1729 = vunpack.c.l.b16 %v1634
  %v1730 = vunpack.c.h.b16 %v1634
  %v1731 = vpack.c.b16 %v1671, %v1667
  %v1732 = vpack.c.b16 %v1672, %v1668
  %v1733 = vpack.c.b16 %v1673, %v1669
  %v1734 = vpack.c.b16 %v1674, %v1670
  %v1735 = vpack.c.b16 %v1679, %v1675
  %v1736 = vpack.c.b16 %v1680, %v1676
  %v1737 = vpack.c.b16 %v1681, %v1677
  %v1738 = vpack.c.b16 %v1682, %v1678
  %v1739 = vpack.c.b16 %v1687, %v1683
  %v1740 = vpack.c.b16 %v1688, %v1684
  %v1741 = vpack.c.b16 %v1689, %v1685
  %v1742 = vpack.c.b16 %v1690, %v1686
  %v1743 = vpack.c.b16 %v1695, %v1691
  %v1744 = vpack.c.b16 %v1696, %v1692
  %v1745 = vpack.c.b16 %v1697, %v1693
  %v1746 = vpack.c.b16 %v1698, %v1694
  %v1747 = vpack.c.b16 %v1703, %v1699
  %v1748 = vpack.c.b16 %v1704, %v1700
  %v1749 = vpack.c.b16 %v1705, %v1701
  %v1750 = vpack.c.b16 %v1706, %v1702
  %v1751 = vpack.c.b16 %v1711, %v1707
  %v1752 = vpack.c.b16 %v1712, %v1708
  %v1753 = vpack.c.b16 %v1713, %v1709
  %v1754 = vpack.c.b16 %v1714, %v1710
  %v1755 = vpack.c.b16 %v1719, %v1715
  %v1756 = vpack.c.b16 %v1720, %v1716
  %v1757 = vpack.c.b16 %v1721, %v1717
  %v1758 = vpack.c.b16 %v1722, %v1718
  %v1759 = vpack.c.b16 %v1727, %v1723
  %v1760 = vpack.c.b16 %v1728, %v1724
  %v1761 = vpack.c.b16 %v1729, %v1725
  %v1762 = vpack.c.b16 %v1730, %v1726
  %1795 = vmatprep.subr.bf16.mxu0 %v1732
  %1796 = vmatpush1.bf16.msra.mxu0 %v1731
  %1797 = vmatprep.subr.bf16.mxu0 %v1736
  %1798 = vmatpush1.bf16.msra.mxu0 %v1735
  %1799 = vmatprep.subr.bf16.mxu0 %v1740
  %1800 = vmatpush1.bf16.msra.mxu0 %v1739
  %1801 = vmatprep.subr.bf16.mxu0 %v1744
  %1802 = vmatpush1.bf16.msra.mxu0 %v1743
  %1803 = vmatprep.subr.bf16.mxu0 %v1748
  %1804 = vmatpush1.bf16.msra.mxu0 %v1747
  %1805 = vmatprep.subr.bf16.mxu0 %v1752
  %1806 = vmatpush1.bf16.msra.mxu0 %v1751
  %1807 = vmatprep.subr.bf16.mxu0 %v1756
  %1808 = vmatpush1.bf16.msra.mxu0 %v1755
  %1809 = vmatprep.subr.bf16.mxu0 %v1760
  %1810 = vmatpush1.bf16.msra.mxu0 %v1759
  %1811 = vmatprep.subr.bf16.mxu0 0
  %1812 = vmatpush1.bf16.msra.mxu0 0
  %1813 = vmatprep.subr.bf16.mxu0 0
  %1814 = vmatpush1.bf16.msra.mxu0 0
  %1815 = vmatprep.subr.bf16.mxu0 0
  %1816 = vmatpush1.bf16.msra.mxu0 0
  %1817 = vmatprep.subr.bf16.mxu0 0
  %1818 = vmatpush1.bf16.msra.mxu0 0
  %1819 = vmatprep.subr.bf16.mxu0 0
  %1820 = vmatpush1.bf16.msra.mxu0 0
  %1821 = vmatprep.subr.bf16.mxu0 0
  %1822 = vmatpush1.bf16.msra.mxu0 0
  %1823 = vmatprep.subr.bf16.mxu0 0
  %1824 = vmatpush1.bf16.msra.mxu0 0
  %1825 = vmatprep.subr.bf16.mxu0 0
  %1826 = vmatpush1.bf16.msra.mxu0 0
  %1827 = vmatprep.mubr.bf16.mxu0 0
  %1828 = vmatmul.mubr.bf16.gmra.mrb[0].mxu0 %v1602
  %v1829 = vpop.f32.mrb[0].mxu0
  %v1830 = vadd.f32 0.0, %v1829
  %v1831 = vpop.f32.mrb[0].mxu0
  %v1832 = vadd.f32 0.0, %v1831
  %v1833 = vpop.f32.mrb[0].mxu0
  %v1834 = vpop.f32.mrb[0].mxu0
  %1835 = vdwg.mxu0
  %1836 = vmatprep.subr.bf16.mxu0 %v1734
  %1837 = vmatpush1.bf16.msra.mxu0 %v1733
  %1838 = vmatprep.subr.bf16.mxu0 %v1738
  %1839 = vmatpush1.bf16.msra.mxu0 %v1737
  %1840 = vmatprep.subr.bf16.mxu0 %v1742
  %1841 = vmatpush1.bf16.msra.mxu0 %v1741
  %1842 = vmatprep.subr.bf16.mxu0 %v1746
  %1843 = vmatpush1.bf16.msra.mxu0 %v1745
  %1844 = vmatprep.subr.bf16.mxu0 %v1750
  %1845 = vmatpush1.bf16.msra.mxu0 %v1749
  %1846 = vmatprep.subr.bf16.mxu0 %v1754
  %1847 = vmatpush1.bf16.msra.mxu0 %v1753
  %1848 = vmatprep.subr.bf16.mxu0 %v1758
  %1849 = vmatpush1.bf16.msra.mxu0 %v1757
  %1850 = vmatprep.subr.bf16.mxu0 %v1762
  %1851 = vmatpush1.bf16.msra.mxu0 %v1761
  %1852 = vmatprep.subr.bf16.mxu0 0
  %1853 = vmatpush1.bf16.msra.mxu0 0
  %1854 = vmatprep.subr.bf16.mxu0 0
  %1855 = vmatpush1.bf16.msra.mxu0 0
  %1856 = vmatprep.subr.bf16.mxu0 0
  %1857 = vmatpush1.bf16.msra.mxu0 0
  %1858 = vmatprep.subr.bf16.mxu0 0
  %1859 = vmatpush1.bf16.msra.mxu0 0
  %1860 = vmatprep.subr.bf16.mxu0 0
  %1861 = vmatpush1.bf16.msra.mxu0 0
  %1862 = vmatprep.subr.bf16.mxu0 0
  %1863 = vmatpush1.bf16.msra.mxu0 0
  %1864 = vmatprep.subr.bf16.mxu0 0
  %1865 = vmatpush1.bf16.msra.mxu0 0
  %1866 = vmatprep.subr.bf16.mxu0 0
  %1867 = vmatpush1.bf16.msra.mxu0 0
  %1868 = vmatprep.mubr.bf16.mxu0 0
  %1869 = vmatmul.mubr.bf16.gmra.mrb[0].mxu0 %v1602
  %v1870 = vpop.f32.mrb[0].mxu0
  %v1871 = vadd.f32 0.0, %v1870
  %v1872 = vpop.f32.mrb[0].mxu0
  %v1873 = vadd.f32 0.0, %v1872
  %v1874 = vpop.f32.mrb[0].mxu0
  %v1875 = vpop.f32.mrb[0].mxu0
  %1876 = vdwg.mxu0
  %v1877 = vadd.f32 %v1598, %v1830
  %v1878 = vadd.f32 %v1599, %v1832
  %v1879 = vadd.f32 %v1600, %v1871
  %v1880 = vadd.f32 %v1601, %v1873
  %v1881 = vmul.f32 %v1877, 0.5
  %v1882 = vmul.f32 %v1878, 0.5
  %v1883 = vmul.f32 %v1879, 0.5
  %v1884 = vtanh.pop %v1881
  %v1885 = vtanh.pop %v1882
  %v1886 = vtanh.pop %v1883
  %v1887 = vmul.f32 %v1884, 0.5
  %v1888 = vmul.f32 %v1885, 0.5
  %v1889 = vmul.f32 %v1886, 0.5
  %v1890 = vadd.f32 %v1887, 0.5
  %v1891 = vadd.f32 %v1888, 0.5
  %v1892 = vadd.f32 %v1889, 0.5
  %v1893 = vtanh.pop %v1880
  %v1894 = vmul.f32 %v1891, %v1594
  %v1895 = vmul.f32 %v1890, %v1893
  %v1896 = vadd.f32 %v1894, %v1895
  %v1897 = vtanh.pop %v1896
  %v1898 = vmul.f32 %v1892, %v1897
  %1899 = vst [vmem:[#allocation3 + $0x18] sm:$0xff] %v1898
  %v1900 = vld [vmem:[#allocation2 + $0x80] sm:$0xff]
  %v1901 = vld [vmem:[#allocation2 + $0x88] sm:$0xff]
  %v1902 = vld [vmem:[#allocation2 + $0x90] sm:$0xff]
  %v1903 = vld [vmem:[#allocation2 + $0x98] sm:$0xff]
  %v1904 = vpack.c.bf16 %v1898, %v1898
  %v1905 = vld [vmem:[%s7] sm:$0xff]
  %v1906 = vld [vmem:[%s7 + $0x8] sm:$0xff]
  %v1907 = vld [vmem:[%s7 + $0x10] sm:$0xff]
  %v1908 = vld [vmem:[%s7 + $0x18] sm:$0xff]
  %v1909 = vld [vmem:[%s7 + $0x20] sm:$0xff]
  %v1910 = vld [vmem:[%s7 + $0x28] sm:$0xff]
  %v1911 = vld [vmem:[%s7 + $0x30] sm:$0xff]
  %v1912 = vld [vmem:[%s7 + $0x38] sm:$0xff]
  %v1913 = vld [vmem:[%s7 + $0x40] sm:$0xff]
  %v1914 = vld [vmem:[%s7 + $0x48] sm:$0xff]
  %v1915 = vld [vmem:[%s7 + $0x50] sm:$0xff]
  %v1916 = vld [vmem:[%s7 + $0x58] sm:$0xff]
  %v1917 = vld [vmem:[%s7 + $0x60] sm:$0xff]
  %v1918 = vld [vmem:[%s7 + $0x68] sm:$0xff]
  %v1919 = vld [vmem:[%s7 + $0x70] sm:$0xff]
  %v1920 = vld [vmem:[%s7 + $0x78] sm:$0xff]
  %v1921 = vld [vmem:[%s7 + $0x80] sm:$0xff]
  %v1922 = vld [vmem:[%s7 + $0x88] sm:$0xff]
  %v1923 = vld [vmem:[%s7 + $0x90] sm:$0xff]
  %v1924 = vld [vmem:[%s7 + $0x98] sm:$0xff]
  %v1925 = vld [vmem:[%s7 + $0xa0] sm:$0xff]
  %v1926 = vld [vmem:[%s7 + $0xa8] sm:$0xff]
  %v1927 = vld [vmem:[%s7 + $0xb0] sm:$0xff]
  %v1928 = vld [vmem:[%s7 + $0xb8] sm:$0xff]
  %v1929 = vld [vmem:[%s7 + $0xc0] sm:$0xff]
  %v1930 = vld [vmem:[%s7 + $0xc8] sm:$0xff]
  %v1931 = vld [vmem:[%s7 + $0xd0] sm:$0xff]
  %v1932 = vld [vmem:[%s7 + $0xd8] sm:$0xff]
  %v1933 = vld [vmem:[%s7 + $0xe0] sm:$0xff]
  %v1934 = vld [vmem:[%s7 + $0xe8] sm:$0xff]
  %v1935 = vld [vmem:[%s7 + $0xf0] sm:$0xff]
  %v1936 = vld [vmem:[%s7 + $0xf8] sm:$0xff]
  %v1969 = vunpack.c.l.b16 %v1905
  %v1970 = vunpack.c.h.b16 %v1905
  %v1971 = vunpack.c.l.b16 %v1906
  %v1972 = vunpack.c.h.b16 %v1906
  %v1973 = vunpack.c.l.b16 %v1907
  %v1974 = vunpack.c.h.b16 %v1907
  %v1975 = vunpack.c.l.b16 %v1908
  %v1976 = vunpack.c.h.b16 %v1908
  %v1977 = vunpack.c.l.b16 %v1909
  %v1978 = vunpack.c.h.b16 %v1909
  %v1979 = vunpack.c.l.b16 %v1910
  %v1980 = vunpack.c.h.b16 %v1910
  %v1981 = vunpack.c.l.b16 %v1911
  %v1982 = vunpack.c.h.b16 %v1911
  %v1983 = vunpack.c.l.b16 %v1912
  %v1984 = vunpack.c.h.b16 %v1912
  %v1985 = vunpack.c.l.b16 %v1913
  %v1986 = vunpack.c.h.b16 %v1913
  %v1987 = vunpack.c.l.b16 %v1914
  %v1988 = vunpack.c.h.b16 %v1914
  %v1989 = vunpack.c.l.b16 %v1915
  %v1990 = vunpack.c.h.b16 %v1915
  %v1991 = vunpack.c.l.b16 %v1916
  %v1992 = vunpack.c.h.b16 %v1916
  %v1993 = vunpack.c.l.b16 %v1917
  %v1994 = vunpack.c.h.b16 %v1917
  %v1995 = vunpack.c.l.b16 %v1918
  %v1996 = vunpack.c.h.b16 %v1918
  %v1997 = vunpack.c.l.b16 %v1919
  %v1998 = vunpack.c.h.b16 %v1919
  %v1999 = vunpack.c.l.b16 %v1920
  %v2000 = vunpack.c.h.b16 %v1920
  %v2001 = vunpack.c.l.b16 %v1921
  %v2002 = vunpack.c.h.b16 %v1921
  %v2003 = vunpack.c.l.b16 %v1922
  %v2004 = vunpack.c.h.b16 %v1922
  %v2005 = vunpack.c.l.b16 %v1923
  %v2006 = vunpack.c.h.b16 %v1923
  %v2007 = vunpack.c.l.b16 %v1924
  %v2008 = vunpack.c.h.b16 %v1924
  %v2009 = vunpack.c.l.b16 %v1925
  %v2010 = vunpack.c.h.b16 %v1925
  %v2011 = vunpack.c.l.b16 %v1926
  %v2012 = vunpack.c.h.b16 %v1926
  %v2013 = vunpack.c.l.b16 %v1927
  %v2014 = vunpack.c.h.b16 %v1927
  %v2015 = vunpack.c.l.b16 %v1928
  %v2016 = vunpack.c.h.b16 %v1928
  %v2017 = vunpack.c.l.b16 %v1929
  %v2018 = vunpack.c.h.b16 %v1929
  %v2019 = vunpack.c.l.b16 %v1930
  %v2020 = vunpack.c.h.b16 %v1930
  %v2021 = vunpack.c.l.b16 %v1931
  %v2022 = vunpack.c.h.b16 %v1931
  %v2023 = vunpack.c.l.b16 %v1932
  %v2024 = vunpack.c.h.b16 %v1932
  %v2025 = vunpack.c.l.b16 %v1933
  %v2026 = vunpack.c.h.b16 %v1933
  %v2027 = vunpack.c.l.b16 %v1934
  %v2028 = vunpack.c.h.b16 %v1934
  %v2029 = vunpack.c.l.b16 %v1935
  %v2030 = vunpack.c.h.b16 %v1935
  %v2031 = vunpack.c.l.b16 %v1936
  %v2032 = vunpack.c.h.b16 %v1936
  %v2033 = vpack.c.b16 %v1973, %v1969
  %v2034 = vpack.c.b16 %v1974, %v1970
  %v2035 = vpack.c.b16 %v1975, %v1971
  %v2036 = vpack.c.b16 %v1976, %v1972
  %v2037 = vpack.c.b16 %v1981, %v1977
  %v2038 = vpack.c.b16 %v1982, %v1978
  %v2039 = vpack.c.b16 %v1983, %v1979
  %v2040 = vpack.c.b16 %v1984, %v1980
  %v2041 = vpack.c.b16 %v1989, %v1985
  %v2042 = vpack.c.b16 %v1990, %v1986
  %v2043 = vpack.c.b16 %v1991, %v1987
  %v2044 = vpack.c.b16 %v1992, %v1988
  %v2045 = vpack.c.b16 %v1997, %v1993
  %v2046 = vpack.c.b16 %v1998, %v1994
  %v2047 = vpack.c.b16 %v1999, %v1995
  %v2048 = vpack.c.b16 %v2000, %v1996
  %v2049 = vpack.c.b16 %v2005, %v2001
  %v2050 = vpack.c.b16 %v2006, %v2002
  %v2051 = vpack.c.b16 %v2007, %v2003
  %v2052 = vpack.c.b16 %v2008, %v2004
  %v2053 = vpack.c.b16 %v2013, %v2009
  %v2054 = vpack.c.b16 %v2014, %v2010
  %v2055 = vpack.c.b16 %v2015, %v2011
  %v2056 = vpack.c.b16 %v2016, %v2012
  %v2057 = vpack.c.b16 %v2021, %v2017
  %v2058 = vpack.c.b16 %v2022, %v2018
  %v2059 = vpack.c.b16 %v2023, %v2019
  %v2060 = vpack.c.b16 %v2024, %v2020
  %v2061 = vpack.c.b16 %v2029, %v2025
  %v2062 = vpack.c.b16 %v2030, %v2026
  %v2063 = vpack.c.b16 %v2031, %v2027
  %v2064 = vpack.c.b16 %v2032, %v2028
  %2097 = vmatprep.subr.bf16.mxu0 %v2034
  %2098 = vmatpush1.bf16.msra.mxu0 %v2033
  %2099 = vmatprep.subr.bf16.mxu0 %v2038
  %2100 = vmatpush1.bf16.msra.mxu0 %v2037
  %2101 = vmatprep.subr.bf16.mxu0 %v2042
  %2102 = vmatpush1.bf16.msra.mxu0 %v2041
  %2103 = vmatprep.subr.bf16.mxu0 %v2046
  %2104 = vmatpush1.bf16.msra.mxu0 %v2045
  %2105 = vmatprep.subr.bf16.mxu0 %v2050
  %2106 = vmatpush1.bf16.msra.mxu0 %v2049
  %2107 = vmatprep.subr.bf16.mxu0 %v2054
  %2108 = vmatpush1.bf16.msra.mxu0 %v2053
  %2109 = vmatprep.subr.bf16.mxu0 %v2058
  %2110 = vmatpush1.bf16.msra.mxu0 %v2057
  %2111 = vmatprep.subr.bf16.mxu0 %v2062
  %2112 = vmatpush1.bf16.msra.mxu0 %v2061
  %2113 = vmatprep.subr.bf16.mxu0 0
  %2114 = vmatpush1.bf16.msra.mxu0 0
  %2115 = vmatprep.subr.bf16.mxu0 0
  %2116 = vmatpush1.bf16.msra.mxu0 0
  %2117 = vmatprep.subr.bf16.mxu0 0
  %2118 = vmatpush1.bf16.msra.mxu0 0
  %2119 = vmatprep.subr.bf16.mxu0 0
  %2120 = vmatpush1.bf16.msra.mxu0 0
  %2121 = vmatprep.subr.bf16.mxu0 0
  %2122 = vmatpush1.bf16.msra.mxu0 0
  %2123 = vmatprep.subr.bf16.mxu0 0
  %2124 = vmatpush1.bf16.msra.mxu0 0
  %2125 = vmatprep.subr.bf16.mxu0 0
  %2126 = vmatpush1.bf16.msra.mxu0 0
  %2127 = vmatprep.subr.bf16.mxu0 0
  %2128 = vmatpush1.bf16.msra.mxu0 0
  %2129 = vmatprep.mubr.bf16.mxu0 0
  %2130 = vmatmul.mubr.bf16.gmra.mrb[0].mxu0 %v1904
  %v2131 = vpop.f32.mrb[0].mxu0
  %v2132 = vadd.f32 0.0, %v2131
  %v2133 = vpop.f32.mrb[0].mxu0
  %v2134 = vadd.f32 0.0, %v2133
  %v2135 = vpop.f32.mrb[0].mxu0
  %v2136 = vpop.f32.mrb[0].mxu0
  %2137 = vdwg.mxu0
  %2138 = vmatprep.subr.bf16.mxu0 %v2036
  %2139 = vmatpush1.bf16.msra.mxu0 %v2035
  %2140 = vmatprep.subr.bf16.mxu0 %v2040
  %2141 = vmatpush1.bf16.msra.mxu0 %v2039
  %2142 = vmatprep.subr.bf16.mxu0 %v2044
  %2143 = vmatpush1.bf16.msra.mxu0 %v2043
  %2144 = vmatprep.subr.bf16.mxu0 %v2048
  %2145 = vmatpush1.bf16.msra.mxu0 %v2047
  %2146 = vmatprep.subr.bf16.mxu0 %v2052
  %2147 = vmatpush1.bf16.msra.mxu0 %v2051
  %2148 = vmatprep.subr.bf16.mxu0 %v2056
  %2149 = vmatpush1.bf16.msra.mxu0 %v2055
  %2150 = vmatprep.subr.bf16.mxu0 %v2060
  %2151 = vmatpush1.bf16.msra.mxu0 %v2059
  %2152 = vmatprep.subr.bf16.mxu0 %v2064
  %2153 = vmatpush1.bf16.msra.mxu0 %v2063
  %2154 = vmatprep.subr.bf16.mxu0 0
  %2155 = vmatpush1.bf16.msra.mxu0 0
  %2156 = vmatprep.subr.bf16.mxu0 0
  %2157 = vmatpush1.bf16.msra.mxu0 0
  %2158 = vmatprep.subr.bf16.mxu0 0
  %2159 = vmatpush1.bf16.msra.mxu0 0
  %2160 = vmatprep.subr.bf16.mxu0 0
  %2161 = vmatpush1.bf16.msra.mxu0 0
  %2162 = vmatprep.subr.bf16.mxu0 0
  %2163 = vmatpush1.bf16.msra.mxu0 0
  %2164 = vmatprep.subr.bf16.mxu0 0
  %2165 = vmatpush1.bf16.msra.mxu0 0
  %2166 = vmatprep.subr.bf16.mxu0 0
  %2167 = vmatpush1.bf16.msra.mxu0 0
  %2168 = vmatprep.subr.bf16.mxu0 0
  %2169 = vmatpush1.bf16.msra.mxu0 0
  %2170 = vmatprep.mubr.bf16.mxu0 0
  %2171 = vmatmul.mubr.bf16.gmra.mrb[0].mxu0 %v1904
  %v2172 = vpop.f32.mrb[0].mxu0
  %v2173 = vadd.f32 0.0, %v2172
  %v2174 = vpop.f32.mrb[0].mxu0
  %v2175 = vadd.f32 0.0, %v2174
  %v2176 = vpop.f32.mrb[0].mxu0
  %v2177 = vpop.f32.mrb[0].mxu0
  %2178 = vdwg.mxu0
  %v2179 = vadd.f32 %v1900, %v2132
  %v2180 = vadd.f32 %v1901, %v2134
  %v2181 = vadd.f32 %v1902, %v2173
  %v2182 = vadd.f32 %v1903, %v2175
  %v2183 = vmul.f32 %v2179, 0.5
  %v2184 = vmul.f32 %v2180, 0.5
  %v2185 = vmul.f32 %v2181, 0.5
  %v2186 = vtanh.pop %v2183
  %v2187 = vtanh.pop %v2184
  %v2188 = vtanh.pop %v2185
  %v2189 = vmul.f32 %v2186, 0.5
  %v2190 = vmul.f32 %v2187, 0.5
  %v2191 = vmul.f32 %v2188, 0.5
  %v2192 = vadd.f32 %v2189, 0.5
  %v2193 = vadd.f32 %v2190, 0.5
  %v2194 = vadd.f32 %v2191, 0.5
  %v2195 = vtanh.pop %v2182
  %v2196 = vmul.f32 %v2193, %v1896
  %v2197 = vmul.f32 %v2192, %v2195
  %v2198 = vadd.f32 %v2196, %v2197
  %v2199 = vtanh.pop %v2198
  %v2200 = vmul.f32 %v2194, %v2199
  %2201 = vst [vmem:[#allocation3 + $0x20] sm:$0xff] %v2200
  %v2202 = vld [vmem:[#allocation2 + $0xa0] sm:$0xff]
  %v2203 = vld [vmem:[#allocation2 + $0xa8] sm:$0xff]
  %v2204 = vld [vmem:[#allocation2 + $0xb0] sm:$0xff]
  %v2205 = vld [vmem:[#allocation2 + $0xb8] sm:$0xff]
  %v2206 = vpack.c.bf16 %v2200, %v2200
  %v2207 = vld [vmem:[%s7] sm:$0xff]
  %v2208 = vld [vmem:[%s7 + $0x8] sm:$0xff]
  %v2209 = vld [vmem:[%s7 + $0x10] sm:$0xff]
  %v2210 = vld [vmem:[%s7 + $0x18] sm:$0xff]
  %v2211 = vld [vmem:[%s7 + $0x20] sm:$0xff]
  %v2212 = vld [vmem:[%s7 + $0x28] sm:$0xff]
  %v2213 = vld [vmem:[%s7 + $0x30] sm:$0xff]
  %v2214 = vld [vmem:[%s7 + $0x38] sm:$0xff]
  %v2215 = vld [vmem:[%s7 + $0x40] sm:$0xff]
  %v2216 = vld [vmem:[%s7 + $0x48] sm:$0xff]
  %v2217 = vld [vmem:[%s7 + $0x50] sm:$0xff]
  %v2218 = vld [vmem:[%s7 + $0x58] sm:$0xff]
  %v2219 = vld [vmem:[%s7 + $0x60] sm:$0xff]
  %v2220 = vld [vmem:[%s7 + $0x68] sm:$0xff]
  %v2221 = vld [vmem:[%s7 + $0x70] sm:$0xff]
  %v2222 = vld [vmem:[%s7 + $0x78] sm:$0xff]
  %v2223 = vld [vmem:[%s7 + $0x80] sm:$0xff]
  %v2224 = vld [vmem:[%s7 + $0x88] sm:$0xff]
  %v2225 = vld [vmem:[%s7 + $0x90] sm:$0xff]
  %v2226 = vld [vmem:[%s7 + $0x98] sm:$0xff]
  %v2227 = vld [vmem:[%s7 + $0xa0] sm:$0xff]
  %v2228 = vld [vmem:[%s7 + $0xa8] sm:$0xff]
  %v2229 = vld [vmem:[%s7 + $0xb0] sm:$0xff]
  %v2230 = vld [vmem:[%s7 + $0xb8] sm:$0xff]
  %v2231 = vld [vmem:[%s7 + $0xc0] sm:$0xff]
  %v2232 = vld [vmem:[%s7 + $0xc8] sm:$0xff]
  %v2233 = vld [vmem:[%s7 + $0xd0] sm:$0xff]
  %v2234 = vld [vmem:[%s7 + $0xd8] sm:$0xff]
  %v2235 = vld [vmem:[%s7 + $0xe0] sm:$0xff]
  %v2236 = vld [vmem:[%s7 + $0xe8] sm:$0xff]
  %v2237 = vld [vmem:[%s7 + $0xf0] sm:$0xff]
  %v2238 = vld [vmem:[%s7 + $0xf8] sm:$0xff]
  %v2271 = vunpack.c.l.b16 %v2207
  %v2272 = vunpack.c.h.b16 %v2207
  %v2273 = vunpack.c.l.b16 %v2208
  %v2274 = vunpack.c.h.b16 %v2208
  %v2275 = vunpack.c.l.b16 %v2209
  %v2276 = vunpack.c.h.b16 %v2209
  %v2277 = vunpack.c.l.b16 %v2210
  %v2278 = vunpack.c.h.b16 %v2210
  %v2279 = vunpack.c.l.b16 %v2211
  %v2280 = vunpack.c.h.b16 %v2211
  %v2281 = vunpack.c.l.b16 %v2212
  %v2282 = vunpack.c.h.b16 %v2212
  %v2283 = vunpack.c.l.b16 %v2213
  %v2284 = vunpack.c.h.b16 %v2213
  %v2285 = vunpack.c.l.b16 %v2214
  %v2286 = vunpack.c.h.b16 %v2214
  %v2287 = vunpack.c.l.b16 %v2215
  %v2288 = vunpack.c.h.b16 %v2215
  %v2289 = vunpack.c.l.b16 %v2216
  %v2290 = vunpack.c.h.b16 %v2216
  %v2291 = vunpack.c.l.b16 %v2217
  %v2292 = vunpack.c.h.b16 %v2217
  %v2293 = vunpack.c.l.b16 %v2218
  %v2294 = vunpack.c.h.b16 %v2218
  %v2295 = vunpack.c.l.b16 %v2219
  %v2296 = vunpack.c.h.b16 %v2219
  %v2297 = vunpack.c.l.b16 %v2220
  %v2298 = vunpack.c.h.b16 %v2220
  %v2299 = vunpack.c.l.b16 %v2221
  %v2300 = vunpack.c.h.b16 %v2221
  %v2301 = vunpack.c.l.b16 %v2222
  %v2302 = vunpack.c.h.b16 %v2222
  %v2303 = vunpack.c.l.b16 %v2223
  %v2304 = vunpack.c.h.b16 %v2223
  %v2305 = vunpack.c.l.b16 %v2224
  %v2306 = vunpack.c.h.b16 %v2224
  %v2307 = vunpack.c.l.b16 %v2225
  %v2308 = vunpack.c.h.b16 %v2225
  %v2309 = vunpack.c.l.b16 %v2226
  %v2310 = vunpack.c.h.b16 %v2226
  %v2311 = vunpack.c.l.b16 %v2227
  %v2312 = vunpack.c.h.b16 %v2227
  %v2313 = vunpack.c.l.b16 %v2228
  %v2314 = vunpack.c.h.b16 %v2228
  %v2315 = vunpack.c.l.b16 %v2229
  %v2316 = vunpack.c.h.b16 %v2229
  %v2317 = vunpack.c.l.b16 %v2230
  %v2318 = vunpack.c.h.b16 %v2230
  %v2319 = vunpack.c.l.b16 %v2231
  %v2320 = vunpack.c.h.b16 %v2231
  %v2321 = vunpack.c.l.b16 %v2232
  %v2322 = vunpack.c.h.b16 %v2232
  %v2323 = vunpack.c.l.b16 %v2233
  %v2324 = vunpack.c.h.b16 %v2233
  %v2325 = vunpack.c.l.b16 %v2234
  %v2326 = vunpack.c.h.b16 %v2234
  %v2327 = vunpack.c.l.b16 %v2235
  %v2328 = vunpack.c.h.b16 %v2235
  %v2329 = vunpack.c.l.b16 %v2236
  %v2330 = vunpack.c.h.b16 %v2236
  %v2331 = vunpack.c.l.b16 %v2237
  %v2332 = vunpack.c.h.b16 %v2237
  %v2333 = vunpack.c.l.b16 %v2238
  %v2334 = vunpack.c.h.b16 %v2238
  %v2335 = vpack.c.b16 %v2275, %v2271
  %v2336 = vpack.c.b16 %v2276, %v2272
  %v2337 = vpack.c.b16 %v2277, %v2273
  %v2338 = vpack.c.b16 %v2278, %v2274
  %v2339 = vpack.c.b16 %v2283, %v2279
  %v2340 = vpack.c.b16 %v2284, %v2280
  %v2341 = vpack.c.b16 %v2285, %v2281
  %v2342 = vpack.c.b16 %v2286, %v2282
  %v2343 = vpack.c.b16 %v2291, %v2287
  %v2344 = vpack.c.b16 %v2292, %v2288
  %v2345 = vpack.c.b16 %v2293, %v2289
  %v2346 = vpack.c.b16 %v2294, %v2290
  %v2347 = vpack.c.b16 %v2299, %v2295
  %v2348 = vpack.c.b16 %v2300, %v2296
  %v2349 = vpack.c.b16 %v2301, %v2297
  %v2350 = vpack.c.b16 %v2302, %v2298
  %v2351 = vpack.c.b16 %v2307, %v2303
  %v2352 = vpack.c.b16 %v2308, %v2304
  %v2353 = vpack.c.b16 %v2309, %v2305
  %v2354 = vpack.c.b16 %v2310, %v2306
  %v2355 = vpack.c.b16 %v2315, %v2311
  %v2356 = vpack.c.b16 %v2316, %v2312
  %v2357 = vpack.c.b16 %v2317, %v2313
  %v2358 = vpack.c.b16 %v2318, %v2314
  %v2359 = vpack.c.b16 %v2323, %v2319
  %v2360 = vpack.c.b16 %v2324, %v2320
  %v2361 = vpack.c.b16 %v2325, %v2321
  %v2362 = vpack.c.b16 %v2326, %v2322
  %v2363 = vpack.c.b16 %v2331, %v2327
  %v2364 = vpack.c.b16 %v2332, %v2328
  %v2365 = vpack.c.b16 %v2333, %v2329
  %v2366 = vpack.c.b16 %v2334, %v2330
  %2399 = vmatprep.subr.bf16.mxu0 %v2336
  %2400 = vmatpush1.bf16.msra.mxu0 %v2335
  %2401 = vmatprep.subr.bf16.mxu0 %v2340
  %2402 = vmatpush1.bf16.msra.mxu0 %v2339
  %2403 = vmatprep.subr.bf16.mxu0 %v2344
  %2404 = vmatpush1.bf16.msra.mxu0 %v2343
  %2405 = vmatprep.subr.bf16.mxu0 %v2348
  %2406 = vmatpush1.bf16.msra.mxu0 %v2347
  %2407 = vmatprep.subr.bf16.mxu0 %v2352
  %2408 = vmatpush1.bf16.msra.mxu0 %v2351
  %2409 = vmatprep.subr.bf16.mxu0 %v2356
  %2410 = vmatpush1.bf16.msra.mxu0 %v2355
  %2411 = vmatprep.subr.bf16.mxu0 %v2360
  %2412 = vmatpush1.bf16.msra.mxu0 %v2359
  %2413 = vmatprep.subr.bf16.mxu0 %v2364
  %2414 = vmatpush1.bf16.msra.mxu0 %v2363
  %2415 = vmatprep.subr.bf16.mxu0 0
  %2416 = vmatpush1.bf16.msra.mxu0 0
  %2417 = vmatprep.subr.bf16.mxu0 0
  %2418 = vmatpush1.bf16.msra.mxu0 0
  %2419 = vmatprep.subr.bf16.mxu0 0
  %2420 = vmatpush1.bf16.msra.mxu0 0
  %2421 = vmatprep.subr.bf16.mxu0 0
  %2422 = vmatpush1.bf16.msra.mxu0 0
  %2423 = vmatprep.subr.bf16.mxu0 0
  %2424 = vmatpush1.bf16.msra.mxu0 0
  %2425 = vmatprep.subr.bf16.mxu0 0
  %2426 = vmatpush1.bf16.msra.mxu0 0
  %2427 = vmatprep.subr.bf16.mxu0 0
  %2428 = vmatpush1.bf16.msra.mxu0 0
  %2429 = vmatprep.subr.bf16.mxu0 0
  %2430 = vmatpush1.bf16.msra.mxu0 0
  %2431 = vmatprep.mubr.bf16.mxu0 0
  %2432 = vmatmul.mubr.bf16.gmra.mrb[0].mxu0 %v2206
  %v2433 = vpop.f32.mrb[0].mxu0
  %v2434 = vadd.f32 0.0, %v2433
  %v2435 = vpop.f32.mrb[0].mxu0
  %v2436 = vadd.f32 0.0, %v2435
  %v2437 = vpop.f32.mrb[0].mxu0
  %v2438 = vpop.f32.mrb[0].mxu0
  %2439 = vdwg.mxu0
  %2440 = vmatprep.subr.bf16.mxu0 %v2338
  %2441 = vmatpush1.bf16.msra.mxu0 %v2337
  %2442 = vmatprep.subr.bf16.mxu0 %v2342
  %2443 = vmatpush1.bf16.msra.mxu0 %v2341
  %2444 = vmatprep.subr.bf16.mxu0 %v2346
  %2445 = vmatpush1.bf16.msra.mxu0 %v2345
  %2446 = vmatprep.subr.bf16.mxu0 %v2350
  %2447 = vmatpush1.bf16.msra.mxu0 %v2349
  %2448 = vmatprep.subr.bf16.mxu0 %v2354
  %2449 = vmatpush1.bf16.msra.mxu0 %v2353
  %2450 = vmatprep.subr.bf16.mxu0 %v2358
  %2451 = vmatpush1.bf16.msra.mxu0 %v2357
  %2452 = vmatprep.subr.bf16.mxu0 %v2362
  %2453 = vmatpush1.bf16.msra.mxu0 %v2361
  %2454 = vmatprep.subr.bf16.mxu0 %v2366
  %2455 = vmatpush1.bf16.msra.mxu0 %v2365
  %2456 = vmatprep.subr.bf16.mxu0 0
  %2457 = vmatpush1.bf16.msra.mxu0 0
  %2458 = vmatprep.subr.bf16.mxu0 0
  %2459 = vmatpush1.bf16.msra.mxu0 0
  %2460 = vmatprep.subr.bf16.mxu0 0
  %2461 = vmatpush1.bf16.msra.mxu0 0
  %2462 = vmatprep.subr.bf16.mxu0 0
  %2463 = vmatpush1.bf16.msra.mxu0 0
  %2464 = vmatprep.subr.bf16.mxu0 0
  %2465 = vmatpush1.bf16.msra.mxu0 0
  %2466 = vmatprep.subr.bf16.mxu0 0
  %2467 = vmatpush1.bf16.msra.mxu0 0
  %2468 = vmatprep.subr.bf16.mxu0 0
  %2469 = vmatpush1.bf16.msra.mxu0 0
  %2470 = vmatprep.subr.bf16.mxu0 0
  %2471 = vmatpush1.bf16.msra.mxu0 0
  %2472 = vmatprep.mubr.bf16.mxu0 0
  %2473 = vmatmul.mubr.bf16.gmra.mrb[0].mxu0 %v2206
  %v2474 = vpop.f32.mrb[0].mxu0
  %v2475 = vadd.f32 0.0, %v2474
  %v2476 = vpop.f32.mrb[0].mxu0
  %v2477 = vadd.f32 0.0, %v2476
  %v2478 = vpop.f32.mrb[0].mxu0
  %v2479 = vpop.f32.mrb[0].mxu0
  %2480 = vdwg.mxu0
  %v2481 = vadd.f32 %v2202, %v2434
  %v2482 = vadd.f32 %v2203, %v2436
  %v2483 = vadd.f32 %v2204, %v2475
  %v2484 = vadd.f32 %v2205, %v2477
  %v2485 = vmul.f32 %v2481, 0.5
  %v2486 = vmul.f32 %v2482, 0.5
  %v2487 = vmul.f32 %v2483, 0.5
  %v2488 = vtanh.pop %v2485
  %v2489 = vtanh.pop %v2486
  %v2490 = vtanh.pop %v2487
  %v2491 = vmul.f32 %v2488, 0.5
  %v2492 = vmul.f32 %v2489, 0.5
  %v2493 = vmul.f32 %v2490, 0.5
  %v2494 = vadd.f32 %v2491, 0.5
  %v2495 = vadd.f32 %v2492, 0.5
  %v2496 = vadd.f32 %v2493, 0.5
  %v2497 = vtanh.pop %v2484
  %v2498 = vmul.f32 %v2495, %v2198
  %v2499 = vmul.f32 %v2494, %v2497
  %v2500 = vadd.f32 %v2498, %v2499
  %v2501 = vtanh.pop %v2500
  %v2502 = vmul.f32 %v2496, %v2501
  %2503 = vst [vmem:[#allocation3 + $0x28] sm:$0xff] %v2502
  %v2504 = vld [vmem:[#allocation2 + $0xc0] sm:$0xff]
  %v2505 = vld [vmem:[#allocation2 + $0xc8] sm:$0xff]
  %v2506 = vld [vmem:[#allocation2 + $0xd0] sm:$0xff]
  %v2507 = vld [vmem:[#allocation2 + $0xd8] sm:$0xff]
  %v2508 = vpack.c.bf16 %v2502, %v2502
  %v2509 = vld [vmem:[%s7] sm:$0xff]
  %v2510 = vld [vmem:[%s7 + $0x8] sm:$0xff]
  %v2511 = vld [vmem:[%s7 + $0x10] sm:$0xff]
  %v2512 = vld [vmem:[%s7 + $0x18] sm:$0xff]
  %v2513 = vld [vmem:[%s7 + $0x20] sm:$0xff]
  %v2514 = vld [vmem:[%s7 + $0x28] sm:$0xff]
  %v2515 = vld [vmem:[%s7 + $0x30] sm:$0xff]
  %v2516 = vld [vmem:[%s7 + $0x38] sm:$0xff]
  %v2517 = vld [vmem:[%s7 + $0x40] sm:$0xff]
  %v2518 = vld [vmem:[%s7 + $0x48] sm:$0xff]
  %v2519 = vld [vmem:[%s7 + $0x50] sm:$0xff]
  %v2520 = vld [vmem:[%s7 + $0x58] sm:$0xff]
  %v2521 = vld [vmem:[%s7 + $0x60] sm:$0xff]
  %v2522 = vld [vmem:[%s7 + $0x68] sm:$0xff]
  %v2523 = vld [vmem:[%s7 + $0x70] sm:$0xff]
  %v2524 = vld [vmem:[%s7 + $0x78] sm:$0xff]
  %v2525 = vld [vmem:[%s7 + $0x80] sm:$0xff]
  %v2526 = vld [vmem:[%s7 + $0x88] sm:$0xff]
  %v2527 = vld [vmem:[%s7 + $0x90] sm:$0xff]
  %v2528 = vld [vmem:[%s7 + $0x98] sm:$0xff]
  %v2529 = vld [vmem:[%s7 + $0xa0] sm:$0xff]
  %v2530 = vld [vmem:[%s7 + $0xa8] sm:$0xff]
  %v2531 = vld [vmem:[%s7 + $0xb0] sm:$0xff]
  %v2532 = vld [vmem:[%s7 + $0xb8] sm:$0xff]
  %v2533 = vld [vmem:[%s7 + $0xc0] sm:$0xff]
  %v2534 = vld [vmem:[%s7 + $0xc8] sm:$0xff]
  %v2535 = vld [vmem:[%s7 + $0xd0] sm:$0xff]
  %v2536 = vld [vmem:[%s7 + $0xd8] sm:$0xff]
  %v2537 = vld [vmem:[%s7 + $0xe0] sm:$0xff]
  %v2538 = vld [vmem:[%s7 + $0xe8] sm:$0xff]
  %v2539 = vld [vmem:[%s7 + $0xf0] sm:$0xff]
  %v2540 = vld [vmem:[%s7 + $0xf8] sm:$0xff]
  %v2573 = vunpack.c.l.b16 %v2509
  %v2574 = vunpack.c.h.b16 %v2509
  %v2575 = vunpack.c.l.b16 %v2510
  %v2576 = vunpack.c.h.b16 %v2510
  %v2577 = vunpack.c.l.b16 %v2511
  %v2578 = vunpack.c.h.b16 %v2511
  %v2579 = vunpack.c.l.b16 %v2512
  %v2580 = vunpack.c.h.b16 %v2512
  %v2581 = vunpack.c.l.b16 %v2513
  %v2582 = vunpack.c.h.b16 %v2513
  %v2583 = vunpack.c.l.b16 %v2514
  %v2584 = vunpack.c.h.b16 %v2514
  %v2585 = vunpack.c.l.b16 %v2515
  %v2586 = vunpack.c.h.b16 %v2515
  %v2587 = vunpack.c.l.b16 %v2516
  %v2588 = vunpack.c.h.b16 %v2516
  %v2589 = vunpack.c.l.b16 %v2517
  %v2590 = vunpack.c.h.b16 %v2517
  %v2591 = vunpack.c.l.b16 %v2518
  %v2592 = vunpack.c.h.b16 %v2518
  %v2593 = vunpack.c.l.b16 %v2519
  %v2594 = vunpack.c.h.b16 %v2519
  %v2595 = vunpack.c.l.b16 %v2520
  %v2596 = vunpack.c.h.b16 %v2520
  %v2597 = vunpack.c.l.b16 %v2521
  %v2598 = vunpack.c.h.b16 %v2521
  %v2599 = vunpack.c.l.b16 %v2522
  %v2600 = vunpack.c.h.b16 %v2522
  %v2601 = vunpack.c.l.b16 %v2523
  %v2602 = vunpack.c.h.b16 %v2523
  %v2603 = vunpack.c.l.b16 %v2524
  %v2604 = vunpack.c.h.b16 %v2524
  %v2605 = vunpack.c.l.b16 %v2525
  %v2606 = vunpack.c.h.b16 %v2525
  %v2607 = vunpack.c.l.b16 %v2526
  %v2608 = vunpack.c.h.b16 %v2526
  %v2609 = vunpack.c.l.b16 %v2527
  %v2610 = vunpack.c.h.b16 %v2527
  %v2611 = vunpack.c.l.b16 %v2528
  %v2612 = vunpack.c.h.b16 %v2528
  %v2613 = vunpack.c.l.b16 %v2529
  %v2614 = vunpack.c.h.b16 %v2529
  %v2615 = vunpack.c.l.b16 %v2530
  %v2616 = vunpack.c.h.b16 %v2530
  %v2617 = vunpack.c.l.b16 %v2531
  %v2618 = vunpack.c.h.b16 %v2531
  %v2619 = vunpack.c.l.b16 %v2532
  %v2620 = vunpack.c.h.b16 %v2532
  %v2621 = vunpack.c.l.b16 %v2533
  %v2622 = vunpack.c.h.b16 %v2533
  %v2623 = vunpack.c.l.b16 %v2534
  %v2624 = vunpack.c.h.b16 %v2534
  %v2625 = vunpack.c.l.b16 %v2535
  %v2626 = vunpack.c.h.b16 %v2535
  %v2627 = vunpack.c.l.b16 %v2536
  %v2628 = vunpack.c.h.b16 %v2536
  %v2629 = vunpack.c.l.b16 %v2537
  %v2630 = vunpack.c.h.b16 %v2537
  %v2631 = vunpack.c.l.b16 %v2538
  %v2632 = vunpack.c.h.b16 %v2538
  %v2633 = vunpack.c.l.b16 %v2539
  %v2634 = vunpack.c.h.b16 %v2539
  %v2635 = vunpack.c.l.b16 %v2540
  %v2636 = vunpack.c.h.b16 %v2540
  %v2637 = vpack.c.b16 %v2577, %v2573
  %v2638 = vpack.c.b16 %v2578, %v2574
  %v2639 = vpack.c.b16 %v2579, %v2575
  %v2640 = vpack.c.b16 %v2580, %v2576
  %v2641 = vpack.c.b16 %v2585, %v2581
  %v2642 = vpack.c.b16 %v2586, %v2582
  %v2643 = vpack.c.b16 %v2587, %v2583
  %v2644 = vpack.c.b16 %v2588, %v2584
  %v2645 = vpack.c.b16 %v2593, %v2589
  %v2646 = vpack.c.b16 %v2594, %v2590
  %v2647 = vpack.c.b16 %v2595, %v2591
  %v2648 = vpack.c.b16 %v2596, %v2592
  %v2649 = vpack.c.b16 %v2601, %v2597
  %v2650 = vpack.c.b16 %v2602, %v2598
  %v2651 = vpack.c.b16 %v2603, %v2599
  %v2652 = vpack.c.b16 %v2604, %v2600
  %v2653 = vpack.c.b16 %v2609, %v2605
  %v2654 = vpack.c.b16 %v2610, %v2606
  %v2655 = vpack.c.b16 %v2611, %v2607
  %v2656 = vpack.c.b16 %v2612, %v2608
  %v2657 = vpack.c.b16 %v2617, %v2613
  %v2658 = vpack.c.b16 %v2618, %v2614
  %v2659 = vpack.c.b16 %v2619, %v2615
  %v2660 = vpack.c.b16 %v2620, %v2616
  %v2661 = vpack.c.b16 %v2625, %v2621
  %v2662 = vpack.c.b16 %v2626, %v2622
  %v2663 = vpack.c.b16 %v2627, %v2623
  %v2664 = vpack.c.b16 %v2628, %v2624
  %v2665 = vpack.c.b16 %v2633, %v2629
  %v2666 = vpack.c.b16 %v2634, %v2630
  %v2667 = vpack.c.b16 %v2635, %v2631
  %v2668 = vpack.c.b16 %v2636, %v2632
  %2701 = vmatprep.subr.bf16.mxu0 %v2638
  %2702 = vmatpush1.bf16.msra.mxu0 %v2637
  %2703 = vmatprep.subr.bf16.mxu0 %v2642
  %2704 = vmatpush1.bf16.msra.mxu0 %v2641
  %2705 = vmatprep.subr.bf16.mxu0 %v2646
  %2706 = vmatpush1.bf16.msra.mxu0 %v2645
  %2707 = vmatprep.subr.bf16.mxu0 %v2650
  %2708 = vmatpush1.bf16.msra.mxu0 %v2649
  %2709 = vmatprep.subr.bf16.mxu0 %v2654
  %2710 = vmatpush1.bf16.msra.mxu0 %v2653
  %2711 = vmatprep.subr.bf16.mxu0 %v2658
  %2712 = vmatpush1.bf16.msra.mxu0 %v2657
  %2713 = vmatprep.subr.bf16.mxu0 %v2662
  %2714 = vmatpush1.bf16.msra.mxu0 %v2661
  %2715 = vmatprep.subr.bf16.mxu0 %v2666
  %2716 = vmatpush1.bf16.msra.mxu0 %v2665
  %2717 = vmatprep.subr.bf16.mxu0 0
  %2718 = vmatpush1.bf16.msra.mxu0 0
  %2719 = vmatprep.subr.bf16.mxu0 0
  %2720 = vmatpush1.bf16.msra.mxu0 0
  %2721 = vmatprep.subr.bf16.mxu0 0
  %2722 = vmatpush1.bf16.msra.mxu0 0
  %2723 = vmatprep.subr.bf16.mxu0 0
  %2724 = vmatpush1.bf16.msra.mxu0 0
  %2725 = vmatprep.subr.bf16.mxu0 0
  %2726 = vmatpush1.bf16.msra.mxu0 0
  %2727 = vmatprep.subr.bf16.mxu0 0
  %2728 = vmatpush1.bf16.msra.mxu0 0
  %2729 = vmatprep.subr.bf16.mxu0 0
  %2730 = vmatpush1.bf16.msra.mxu0 0
  %2731 = vmatprep.subr.bf16.mxu0 0
  %2732 = vmatpush1.bf16.msra.mxu0 0
  %2733 = vmatprep.mubr.bf16.mxu0 0
  %2734 = vmatmul.mubr.bf16.gmra.mrb[0].mxu0 %v2508
  %v2735 = vpop.f32.mrb[0].mxu0
  %v2736 = vadd.f32 0.0, %v2735
  %v2737 = vpop.f32.mrb[0].mxu0
  %v2738 = vadd.f32 0.0, %v2737
  %v2739 = vpop.f32.mrb[0].mxu0
  %v2740 = vpop.f32.mrb[0].mxu0
  %2741 = vdwg.mxu0
  %2742 = vmatprep.subr.bf16.mxu0 %v2640
  %2743 = vmatpush1.bf16.msra.mxu0 %v2639
  %2744 = vmatprep.subr.bf16.mxu0 %v2644
  %2745 = vmatpush1.bf16.msra.mxu0 %v2643
  %2746 = vmatprep.subr.bf16.mxu0 %v2648
  %2747 = vmatpush1.bf16.msra.mxu0 %v2647
  %2748 = vmatprep.subr.bf16.mxu0 %v2652
  %2749 = vmatpush1.bf16.msra.mxu0 %v2651
  %2750 = vmatprep.subr.bf16.mxu0 %v2656
  %2751 = vmatpush1.bf16.msra.mxu0 %v2655
  %2752 = vmatprep.subr.bf16.mxu0 %v2660
  %2753 = vmatpush1.bf16.msra.mxu0 %v2659
  %2754 = vmatprep.subr.bf16.mxu0 %v2664
  %2755 = vmatpush1.bf16.msra.mxu0 %v2663
  %2756 = vmatprep.subr.bf16.mxu0 %v2668
  %2757 = vmatpush1.bf16.msra.mxu0 %v2667
  %2758 = vmatprep.subr.bf16.mxu0 0
  %2759 = vmatpush1.bf16.msra.mxu0 0
  %2760 = vmatprep.subr.bf16.mxu0 0
  %2761 = vmatpush1.bf16.msra.mxu0 0
  %2762 = vmatprep.subr.bf16.mxu0 0
  %2763 = vmatpush1.bf16.msra.mxu0 0
  %2764 = vmatprep.subr.bf16.mxu0 0
  %2765 = vmatpush1.bf16.msra.mxu0 0
  %2766 = vmatprep.subr.bf16.mxu0 0
  %2767 = vmatpush1.bf16.msra.mxu0 0
  %2768 = vmatprep.subr.bf16.mxu0 0
  %2769 = vmatpush1.bf16.msra.mxu0 0
  %2770 = vmatprep.subr.bf16.mxu0 0
  %2771 = vmatpush1.bf16.msra.mxu0 0
  %2772 = vmatprep.subr.bf16.mxu0 0
  %2773 = vmatpush1.bf16.msra.mxu0 0
  %2774 = vmatprep.mubr.bf16.mxu0 0
  %2775 = vmatmul.mubr.bf16.gmra.mrb[0].mxu0 %v2508
  %v2776 = vpop.f32.mrb[0].mxu0
  %v2777 = vadd.f32 0.0, %v2776
  %v2778 = vpop.f32.mrb[0].mxu0
  %v2779 = vadd.f32 0.0, %v2778
  %v2780 = vpop.f32.mrb[0].mxu0
  %v2781 = vpop.f32.mrb[0].mxu0
  %2782 = vdwg.mxu0
  %v2783 = vadd.f32 %v2504, %v2736
  %v2784 = vadd.f32 %v2505, %v2738
  %v2785 = vadd.f32 %v2506, %v2777
  %v2786 = vadd.f32 %v2507, %v2779
  %v2787 = vmul.f32 %v2783, 0.5
  %v2788 = vmul.f32 %v2784, 0.5
  %v2789 = vmul.f32 %v2785, 0.5
  %v2790 = vtanh.pop %v2787
  %v2791 = vtanh.pop %v2788
  %v2792 = vtanh.pop %v2789
  %v2793 = vmul.f32 %v2790, 0.5
  %v2794 = vmul.f32 %v2791, 0.5
  %v2795 = vmul.f32 %v2792, 0.5
  %v2796 = vadd.f32 %v2793, 0.5
  %v2797 = vadd.f32 %v2794, 0.5
  %v2798 = vadd.f32 %v2795, 0.5
  %v2799 = vtanh.pop %v2786
  %v2800 = vmul.f32 %v2797, %v2500
  %v2801 = vmul.f32 %v2796, %v2799
  %v2802 = vadd.f32 %v2800, %v2801
  %v2803 = vtanh.pop %v2802
  %v2804 = vmul.f32 %v2798, %v2803
  %2805 = vst [vmem:[#allocation3 + $0x30] sm:$0xff] %v2804
  %v2806 = vld [vmem:[#allocation2 + $0xe0] sm:$0xff]
  %v2807 = vld [vmem:[#allocation2 + $0xe8] sm:$0xff]
  %v2808 = vld [vmem:[#allocation2 + $0xf0] sm:$0xff]
  %v2809 = vld [vmem:[#allocation2 + $0xf8] sm:$0xff]
  %v2810 = vpack.c.bf16 %v2804, %v2804
  %v2811 = vld [vmem:[%s7] sm:$0xff]
  %v2812 = vld [vmem:[%s7 + $0x8] sm:$0xff]
  %v2813 = vld [vmem:[%s7 + $0x10] sm:$0xff]
  %v2814 = vld [vmem:[%s7 + $0x18] sm:$0xff]
  %v2815 = vld [vmem:[%s7 + $0x20] sm:$0xff]
  %v2816 = vld [vmem:[%s7 + $0x28] sm:$0xff]
  %v2817 = vld [vmem:[%s7 + $0x30] sm:$0xff]
  %v2818 = vld [vmem:[%s7 + $0x38] sm:$0xff]
  %v2819 = vld [vmem:[%s7 + $0x40] sm:$0xff]
  %v2820 = vld [vmem:[%s7 + $0x48] sm:$0xff]
  %v2821 = vld [vmem:[%s7 + $0x50] sm:$0xff]
  %v2822 = vld [vmem:[%s7 + $0x58] sm:$0xff]
  %v2823 = vld [vmem:[%s7 + $0x60] sm:$0xff]
  %v2824 = vld [vmem:[%s7 + $0x68] sm:$0xff]
  %v2825 = vld [vmem:[%s7 + $0x70] sm:$0xff]
  %v2826 = vld [vmem:[%s7 + $0x78] sm:$0xff]
  %v2827 = vld [vmem:[%s7 + $0x80] sm:$0xff]
  %v2828 = vld [vmem:[%s7 + $0x88] sm:$0xff]
  %v2829 = vld [vmem:[%s7 + $0x90] sm:$0xff]
  %v2830 = vld [vmem:[%s7 + $0x98] sm:$0xff]
  %v2831 = vld [vmem:[%s7 + $0xa0] sm:$0xff]
  %v2832 = vld [vmem:[%s7 + $0xa8] sm:$0xff]
  %v2833 = vld [vmem:[%s7 + $0xb0] sm:$0xff]
  %v2834 = vld [vmem:[%s7 + $0xb8] sm:$0xff]
  %v2835 = vld [vmem:[%s7 + $0xc0] sm:$0xff]
  %v2836 = vld [vmem:[%s7 + $0xc8] sm:$0xff]
  %v2837 = vld [vmem:[%s7 + $0xd0] sm:$0xff]
  %v2838 = vld [vmem:[%s7 + $0xd8] sm:$0xff]
  %v2839 = vld [vmem:[%s7 + $0xe0] sm:$0xff]
  %v2840 = vld [vmem:[%s7 + $0xe8] sm:$0xff]
  %v2841 = vld [vmem:[%s7 + $0xf0] sm:$0xff]
  %v2842 = vld [vmem:[%s7 + $0xf8] sm:$0xff]
  %v2875 = vunpack.c.l.b16 %v2811
  %v2876 = vunpack.c.h.b16 %v2811
  %v2877 = vunpack.c.l.b16 %v2812
  %v2878 = vunpack.c.h.b16 %v2812
  %v2879 = vunpack.c.l.b16 %v2813
  %v2880 = vunpack.c.h.b16 %v2813
  %v2881 = vunpack.c.l.b16 %v2814
  %v2882 = vunpack.c.h.b16 %v2814
  %v2883 = vunpack.c.l.b16 %v2815
  %v2884 = vunpack.c.h.b16 %v2815
  %v2885 = vunpack.c.l.b16 %v2816
  %v2886 = vunpack.c.h.b16 %v2816
  %v2887 = vunpack.c.l.b16 %v2817
  %v2888 = vunpack.c.h.b16 %v2817
  %v2889 = vunpack.c.l.b16 %v2818
  %v2890 = vunpack.c.h.b16 %v2818
  %v2891 = vunpack.c.l.b16 %v2819
  %v2892 = vunpack.c.h.b16 %v2819
  %v2893 = vunpack.c.l.b16 %v2820
  %v2894 = vunpack.c.h.b16 %v2820
  %v2895 = vunpack.c.l.b16 %v2821
  %v2896 = vunpack.c.h.b16 %v2821
  %v2897 = vunpack.c.l.b16 %v2822
  %v2898 = vunpack.c.h.b16 %v2822
  %v2899 = vunpack.c.l.b16 %v2823
  %v2900 = vunpack.c.h.b16 %v2823
  %v2901 = vunpack.c.l.b16 %v2824
  %v2902 = vunpack.c.h.b16 %v2824
  %v2903 = vunpack.c.l.b16 %v2825
  %v2904 = vunpack.c.h.b16 %v2825
  %v2905 = vunpack.c.l.b16 %v2826
  %v2906 = vunpack.c.h.b16 %v2826
  %v2907 = vunpack.c.l.b16 %v2827
  %v2908 = vunpack.c.h.b16 %v2827
  %v2909 = vunpack.c.l.b16 %v2828
  %v2910 = vunpack.c.h.b16 %v2828
  %v2911 = vunpack.c.l.b16 %v2829
  %v2912 = vunpack.c.h.b16 %v2829
  %v2913 = vunpack.c.l.b16 %v2830
  %v2914 = vunpack.c.h.b16 %v2830
  %v2915 = vunpack.c.l.b16 %v2831
  %v2916 = vunpack.c.h.b16 %v2831
  %v2917 = vunpack.c.l.b16 %v2832
  %v2918 = vunpack.c.h.b16 %v2832
  %v2919 = vunpack.c.l.b16 %v2833
  %v2920 = vunpack.c.h.b16 %v2833
  %v2921 = vunpack.c.l.b16 %v2834
  %v2922 = vunpack.c.h.b16 %v2834
  %v2923 = vunpack.c.l.b16 %v2835
  %v2924 = vunpack.c.h.b16 %v2835
  %v2925 = vunpack.c.l.b16 %v2836
  %v2926 = vunpack.c.h.b16 %v2836
  %v2927 = vunpack.c.l.b16 %v2837
  %v2928 = vunpack.c.h.b16 %v2837
  %v2929 = vunpack.c.l.b16 %v2838
  %v2930 = vunpack.c.h.b16 %v2838
  %v2931 = vunpack.c.l.b16 %v2839
  %v2932 = vunpack.c.h.b16 %v2839
  %v2933 = vunpack.c.l.b16 %v2840
  %v2934 = vunpack.c.h.b16 %v2840
  %v2935 = vunpack.c.l.b16 %v2841
  %v2936 = vunpack.c.h.b16 %v2841
  %v2937 = vunpack.c.l.b16 %v2842
  %v2938 = vunpack.c.h.b16 %v2842
  %v2939 = vpack.c.b16 %v2879, %v2875
  %v2940 = vpack.c.b16 %v2880, %v2876
  %v2941 = vpack.c.b16 %v2881, %v2877
  %v2942 = vpack.c.b16 %v2882, %v2878
  %v2943 = vpack.c.b16 %v2887, %v2883
  %v2944 = vpack.c.b16 %v2888, %v2884
  %v2945 = vpack.c.b16 %v2889, %v2885
  %v2946 = vpack.c.b16 %v2890, %v2886
  %v2947 = vpack.c.b16 %v2895, %v2891
  %v2948 = vpack.c.b16 %v2896, %v2892
  %v2949 = vpack.c.b16 %v2897, %v2893
  %v2950 = vpack.c.b16 %v2898, %v2894
  %v2951 = vpack.c.b16 %v2903, %v2899
  %v2952 = vpack.c.b16 %v2904, %v2900
  %v2953 = vpack.c.b16 %v2905, %v2901
  %v2954 = vpack.c.b16 %v2906, %v2902
  %v2955 = vpack.c.b16 %v2911, %v2907
  %v2956 = vpack.c.b16 %v2912, %v2908
  %v2957 = vpack.c.b16 %v2913, %v2909
  %v2958 = vpack.c.b16 %v2914, %v2910
  %v2959 = vpack.c.b16 %v2919, %v2915
  %v2960 = vpack.c.b16 %v2920, %v2916
  %v2961 = vpack.c.b16 %v2921, %v2917
  %v2962 = vpack.c.b16 %v2922, %v2918
  %v2963 = vpack.c.b16 %v2927, %v2923
  %v2964 = vpack.c.b16 %v2928, %v2924
  %v2965 = vpack.c.b16 %v2929, %v2925
  %v2966 = vpack.c.b16 %v2930, %v2926
  %v2967 = vpack.c.b16 %v2935, %v2931
  %v2968 = vpack.c.b16 %v2936, %v2932
  %v2969 = vpack.c.b16 %v2937, %v2933
  %v2970 = vpack.c.b16 %v2938, %v2934
  %3003 = vmatprep.subr.bf16.mxu0 %v2940
  %3004 = vmatpush1.bf16.msra.mxu0 %v2939
  %3005 = vmatprep.subr.bf16.mxu0 %v2944
  %3006 = vmatpush1.bf16.msra.mxu0 %v2943
  %3007 = vmatprep.subr.bf16.mxu0 %v2948
  %3008 = vmatpush1.bf16.msra.mxu0 %v2947
  %3009 = vmatprep.subr.bf16.mxu0 %v2952
  %3010 = vmatpush1.bf16.msra.mxu0 %v2951
  %3011 = vmatprep.subr.bf16.mxu0 %v2956
  %3012 = vmatpush1.bf16.msra.mxu0 %v2955
  %3013 = vmatprep.subr.bf16.mxu0 %v2960
  %3014 = vmatpush1.bf16.msra.mxu0 %v2959
  %3015 = vmatprep.subr.bf16.mxu0 %v2964
  %3016 = vmatpush1.bf16.msra.mxu0 %v2963
  %3017 = vmatprep.subr.bf16.mxu0 %v2968
  %3018 = vmatpush1.bf16.msra.mxu0 %v2967
  %3019 = vmatprep.subr.bf16.mxu0 0
  %3020 = vmatpush1.bf16.msra.mxu0 0
  %3021 = vmatprep.subr.bf16.mxu0 0
  %3022 = vmatpush1.bf16.msra.mxu0 0
  %3023 = vmatprep.subr.bf16.mxu0 0
  %3024 = vmatpush1.bf16.msra.mxu0 0
  %3025 = vmatprep.subr.bf16.mxu0 0
  %3026 = vmatpush1.bf16.msra.mxu0 0
  %3027 = vmatprep.subr.bf16.mxu0 0
  %3028 = vmatpush1.bf16.msra.mxu0 0
  %3029 = vmatprep.subr.bf16.mxu0 0
  %3030 = vmatpush1.bf16.msra.mxu0 0
  %3031 = vmatprep.subr.bf16.mxu0 0
  %3032 = vmatpush1.bf16.msra.mxu0 0
  %3033 = vmatprep.subr.bf16.mxu0 0
  %3034 = vmatpush1.bf16.msra.mxu0 0
  %3035 = vmatprep.mubr.bf16.mxu0 0
  %3036 = vmatmul.mubr.bf16.gmra.mrb[0].mxu0 %v2810
  %v3037 = vpop.f32.mrb[0].mxu0
  %v3038 = vadd.f32 0.0, %v3037
  %v3039 = vpop.f32.mrb[0].mxu0
  %v3040 = vadd.f32 0.0, %v3039
  %v3041 = vpop.f32.mrb[0].mxu0
  %v3042 = vpop.f32.mrb[0].mxu0
  %3043 = vdwg.mxu0
  %3044 = vmatprep.subr.bf16.mxu0 %v2942
  %3045 = vmatpush1.bf16.msra.mxu0 %v2941
  %3046 = vmatprep.subr.bf16.mxu0 %v2946
  %3047 = vmatpush1.bf16.msra.mxu0 %v2945
  %3048 = vmatprep.subr.bf16.mxu0 %v2950
  %3049 = vmatpush1.bf16.msra.mxu0 %v2949
  %3050 = vmatprep.subr.bf16.mxu0 %v2954
  %3051 = vmatpush1.bf16.msra.mxu0 %v2953
  %3052 = vmatprep.subr.bf16.mxu0 %v2958
  %3053 = vmatpush1.bf16.msra.mxu0 %v2957
  %3054 = vmatprep.subr.bf16.mxu0 %v2962
  %3055 = vmatpush1.bf16.msra.mxu0 %v2961
  %3056 = vmatprep.subr.bf16.mxu0 %v2966
  %3057 = vmatpush1.bf16.msra.mxu0 %v2965
  %3058 = vmatprep.subr.bf16.mxu0 %v2970
  %3059 = vmatpush1.bf16.msra.mxu0 %v2969
  %3060 = vmatprep.subr.bf16.mxu0 0
  %3061 = vmatpush1.bf16.msra.mxu0 0
  %3062 = vmatprep.subr.bf16.mxu0 0
  %3063 = vmatpush1.bf16.msra.mxu0 0
  %3064 = vmatprep.subr.bf16.mxu0 0
  %3065 = vmatpush1.bf16.msra.mxu0 0
  %3066 = vmatprep.subr.bf16.mxu0 0
  %3067 = vmatpush1.bf16.msra.mxu0 0
  %3068 = vmatprep.subr.bf16.mxu0 0
  %3069 = vmatpush1.bf16.msra.mxu0 0
  %3070 = vmatprep.subr.bf16.mxu0 0
  %3071 = vmatpush1.bf16.msra.mxu0 0
  %3072 = vmatprep.subr.bf16.mxu0 0
  %3073 = vmatpush1.bf16.msra.mxu0 0
  %3074 = vmatprep.subr.bf16.mxu0 0
  %3075 = vmatpush1.bf16.msra.mxu0 0
  %3076 = vmatprep.mubr.bf16.mxu0 0
  %3077 = vmatmul.mubr.bf16.gmra.mrb[0].mxu0 %v2810
  %v3078 = vpop.f32.mrb[0].mxu0
  %v3079 = vadd.f32 0.0, %v3078
  %v3080 = vpop.f32.mrb[0].mxu0
  %v3081 = vadd.f32 0.0, %v3080
  %v3082 = vpop.f32.mrb[0].mxu0
  %v3083 = vpop.f32.mrb[0].mxu0
  %3084 = vdwg.mxu0
  %v3085 = vadd.f32 %v2806, %v3038
  %v3086 = vadd.f32 %v2807, %v3040
  %v3087 = vadd.f32 %v2808, %v3079
  %v3088 = vadd.f32 %v2809, %v3081
  %v3089 = vmul.f32 %v3085, 0.5
  %v3090 = vmul.f32 %v3086, 0.5
  %v3091 = vmul.f32 %v3087, 0.5
  %v3092 = vtanh.pop %v3089
  %v3093 = vtanh.pop %v3090
  %v3094 = vtanh.pop %v3091
  %v3095 = vmul.f32 %v3092, 0.5
  %v3096 = vmul.f32 %v3093, 0.5
  %v3097 = vmul.f32 %v3094, 0.5
  %v3098 = vadd.f32 %v3095, 0.5
  %v3099 = vadd.f32 %v3096, 0.5
  %v3100 = vadd.f32 %v3097, 0.5
  %v3101 = vtanh.pop %v3088
  %v3102 = vmul.f32 %v3099, %v2802
  %v3103 = vmul.f32 %v3098, %v3101
  %v3104 = vadd.f32 %v3102, %v3103
  %v3105 = vtanh.pop %v3104
  %v3106 = vmul.f32 %v3100, %v3105
  %3107 = vst [vmem:[#allocation3 + $0x38] sm:$0xff] %v3106
  %3108 = vst [vmem:[%s11] sm:$0xff] %v3106
  %3109 = vst [vmem:[%s12] sm:$0xff] %v3104
  %v3110 = vld [vmem:[#allocation3] sm:$0xff]
  %v3111 = vld [vmem:[#allocation3 + $0x8] sm:$0xff]
  %v3112 = vld [vmem:[#allocation3 + $0x10] sm:$0xff]
  %v3113 = vld [vmem:[#allocation3 + $0x18] sm:$0xff]
  %v3114 = vld [vmem:[#allocation3 + $0x20] sm:$0xff]
  %v3115 = vld [vmem:[#allocation3 + $0x28] sm:$0xff]
  %v3116 = vld [vmem:[#allocation3 + $0x30] sm:$0xff]
  %v3117 = vld [vmem:[#allocation3 + $0x38] sm:$0xff]
  %v3118 = vld [vmem:[%s8] sm:$0xff]
  %v3119 = vld [vmem:[%s8 + $0x8] sm:$0xff]
  %v3120 = vld [vmem:[%s8 + $0x10] sm:$0xff]
  %v3121 = vld [vmem:[%s8 + $0x18] sm:$0xff]
  %v3122 = vld [vmem:[%s8 + $0x20] sm:$0xff]
  %v3123 = vld [vmem:[%s8 + $0x28] sm:$0xff]
  %v3124 = vld [vmem:[%s8 + $0x30] sm:$0xff]
  %v3125 = vld [vmem:[%s8 + $0x38] sm:$0xff]
  %v3126 = vld [vmem:[%s8 + $0x40] sm:$0xff]
  %v3127 = vld [vmem:[%s8 + $0x48] sm:$0xff]
  %v3128 = vld [vmem:[%s8 + $0x50] sm:$0xff]
  %v3129 = vld [vmem:[%s8 + $0x58] sm:$0xff]
  %v3130 = vld [vmem:[%s8 + $0x60] sm:$0xff]
  %v3131 = vld [vmem:[%s8 + $0x68] sm:$0xff]
  %v3132 = vld [vmem:[%s8 + $0x70] sm:$0xff]
  %v3133 = vld [vmem:[%s8 + $0x78] sm:$0xff]
  %v3134 = vld [vmem:[%s9] sm:$0x1]
  %v3136 = vlaneseq
  %v3137 = vshrl.u32 %v3136, 7
  %v3138 = vsub.s32 0, %v3137
  %v3139 = vrot.slane %v3134, %v3138
  %3141 = vmatprep.subr.mxu0 0.0
  %3142 = vmatpush1.msra.mxu0 %v3118
  %3143 = vmatprep.subr.mxu0 0.0
  %3144 = vmatpush1.msra.mxu0 %v3119
  %3145 = vmatprep.subr.mxu0 0.0
  %3146 = vmatpush1.msra.mxu0 %v3120
  %3147 = vmatprep.subr.mxu0 0.0
  %3148 = vmatpush1.msra.mxu0 %v3121
  %3149 = vmatprep.subr.mxu0 0.0
  %3150 = vmatpush1.msra.mxu0 %v3122
  %3151 = vmatprep.subr.mxu0 0.0
  %3152 = vmatpush1.msra.mxu0 %v3123
  %3153 = vmatprep.subr.mxu0 0.0
  %3154 = vmatpush1.msra.mxu0 %v3124
  %3155 = vmatprep.subr.mxu0 0.0
  %3156 = vmatpush1.msra.mxu0 %v3125
  %3157 = vmatprep.subr.mxu0 0.0
  %3158 = vmatpush1.msra.mxu0 %v3126
  %3159 = vmatprep.subr.mxu0 0.0
  %3160 = vmatpush1.msra.mxu0 %v3127
  %3161 = vmatprep.subr.mxu0 0.0
  %3162 = vmatpush1.msra.mxu0 %v3128
  %3163 = vmatprep.subr.mxu0 0.0
  %3164 = vmatpush1.msra.mxu0 %v3129
  %3165 = vmatprep.subr.mxu0 0.0
  %3166 = vmatpush1.msra.mxu0 %v3130
  %3167 = vmatprep.subr.mxu0 0.0
  %3168 = vmatpush1.msra.mxu0 %v3131
  %3169 = vmatprep.subr.mxu0 0.0
  %3170 = vmatpush1.msra.mxu0 %v3132
  %3171 = vmatprep.subr.mxu0 0.0
  %3172 = vmatpush1.msra.mxu0 %v3133
  %3173 = vmatprep.subr.mxu0 0.0
  %3174 = vmatpush1.msra.mxu0 0.0
  %3175 = vmatprep.subr.mxu0 0.0
  %3176 = vmatpush1.msra.mxu0 0.0
  %3177 = vmatprep.subr.mxu0 0.0
  %3178 = vmatpush1.msra.mxu0 0.0
  %3179 = vmatprep.subr.mxu0 0.0
  %3180 = vmatpush1.msra.mxu0 0.0
  %3181 = vmatprep.subr.mxu0 0.0
  %3182 = vmatpush1.msra.mxu0 0.0
  %3183 = vmatprep.subr.mxu0 0.0
  %3184 = vmatpush1.msra.mxu0 0.0
  %3185 = vmatprep.subr.mxu0 0.0
  %3186 = vmatpush1.msra.mxu0 0.0
  %3187 = vmatprep.subr.mxu0 0.0
  %3188 = vmatpush1.msra.mxu0 0.0
  %3189 = vmatprep.subr.mxu0 0.0
  %3190 = vmatpush1.msra.mxu0 0.0
  %3191 = vmatprep.subr.mxu0 0.0
  %3192 = vmatpush1.msra.mxu0 0.0
  %3193 = vmatprep.subr.mxu0 0.0
  %3194 = vmatpush1.msra.mxu0 0.0
  %3195 = vmatprep.subr.mxu0 0.0
  %3196 = vmatpush1.msra.mxu0 0.0
  %3197 = vmatprep.subr.mxu0 0.0
  %3198 = vmatpush1.msra.mxu0 0.0
  %3199 = vmatprep.subr.mxu0 0.0
  %3200 = vmatpush1.msra.mxu0 0.0
  %3201 = vmatprep.subr.mxu0 0.0
  %3202 = vmatpush1.msra.mxu0 0.0
  %3203 = vmatprep.subr.mxu0 0.0
  %3204 = vmatpush1.msra.mxu0 0.0
  %3205 = vmatprep.mubr.f32.mxu0 0.0
  %3206 = vmatmul.mubr.f32.gmra.mrb[0].mxu0 %v3110
  %v3207 = vpop.f32.mrb[0].mxu0
  %v3208 = vadd.f32 %v3139, %v3207
  %v3209 = vpop.f32.mrb[0].mxu0
  %3210 = vmatprep.mubr.f32.mxu0 0.0
  %3211 = vmatmul.mubr.f32.gmra.mrb[0].mxu0 %v3111
  %v3212 = vpop.f32.mrb[0].mxu0
  %v3213 = vadd.f32 %v3139, %v3212
  %v3214 = vpop.f32.mrb[0].mxu0
  %3215 = vmatprep.mubr.f32.mxu0 0.0
  %3216 = vmatmul.mubr.f32.gmra.mrb[0].mxu0 %v3112
  %v3217 = vpop.f32.mrb[0].mxu0
  %v3218 = vadd.f32 %v3139, %v3217
  %v3219 = vpop.f32.mrb[0].mxu0
  %3220 = vmatprep.mubr.f32.mxu0 0.0
  %3221 = vmatmul.mubr.f32.gmra.mrb[0].mxu0 %v3113
  %v3222 = vpop.f32.mrb[0].mxu0
  %v3223 = vadd.f32 %v3139, %v3222
  %v3224 = vpop.f32.mrb[0].mxu0
  %3225 = vmatprep.mubr.f32.mxu0 0.0
  %3226 = vmatmul.mubr.f32.gmra.mrb[0].mxu0 %v3114
  %v3227 = vpop.f32.mrb[0].mxu0
  %v3228 = vadd.f32 %v3139, %v3227
  %v3229 = vpop.f32.mrb[0].mxu0
  %3230 = vmatprep.mubr.f32.mxu0 0.0
  %3231 = vmatmul.mubr.f32.gmra.mrb[0].mxu0 %v3115
  %v3232 = vpop.f32.mrb[0].mxu0
  %v3233 = vadd.f32 %v3139, %v3232
  %v3234 = vpop.f32.mrb[0].mxu0
  %3235 = vmatprep.mubr.f32.mxu0 0.0
  %3236 = vmatmul.mubr.f32.gmra.mrb[0].mxu0 %v3116
  %v3237 = vpop.f32.mrb[0].mxu0
  %v3238 = vadd.f32 %v3139, %v3237
  %v3239 = vpop.f32.mrb[0].mxu0
  %3240 = vmatprep.mubr.f32.mxu0 0.0
  %3241 = vmatmul.mubr.f32.gmra.mrb[0].mxu0 %v3117
  %v3242 = vpop.f32.mrb[0].mxu0
  %v3243 = vadd.f32 %v3139, %v3242
  %v3244 = vpop.f32.mrb[0].mxu0
  %3245 = vdwg.mxu0
  %3246 = vst [vmem:[%s10] sm:$0xff] %v3208
  %3247 = vst [vmem:[%s10 + $0x8] sm:$0xff] %v3213
  %3248 = vst [vmem:[%s10 + $0x10] sm:$0xff] %v3218
  %3249 = vst [vmem:[%s10 + $0x18] sm:$0xff] %v3223
  %3250 = vst [vmem:[%s10 + $0x20] sm:$0xff] %v3228
  %3251 = vst [vmem:[%s10 + $0x28] sm:$0xff] %v3233
  %3252 = vst [vmem:[%s10 + $0x30] sm:$0xff] %v3238
  %3253 = vst [vmem:[%s10 + $0x38] sm:$0xff] %v3243
  // Predicated region
  $region42: #{worker_forward.1} parent=0 // pred_check
    _
  $region43: #{worker_forward.1} parent=0 // pred_check_branch
    %3255 = sbr.rel (0) target = $region45
  $region44: #{worker_forward.1} parent=0 // pred_region
    _
  $region45: #{worker_forward.1} parent=0 // pred_fallthru
    _
  // Predicated region
  $region46: #{worker_forward.1} parent=0 // pred_check
    _
  $region47: #{worker_forward.1} parent=0 // pred_check_branch
    %3257 = sbr.rel (0) target = $region49
  $region48: #{worker_forward.1} parent=0 // pred_region
    _
  $region49: #{worker_forward.1} parent=0 // pred_fallthru
    _
  // Predicated region
  $region50: #{worker_forward.1} parent=0 // pred_check
    _
  $region51: #{worker_forward.1} parent=0 // pred_check_branch
    %3259 = sbr.rel (0) target = $region53
  $region52: #{worker_forward.1} parent=0 // pred_region
    _
  $region53: #{worker_forward.1} parent=0 // pred_fallthru
    _
  // Predicated region
  $region54: #{worker_forward.1} parent=0 // pred_check
    _
  $region55: #{worker_forward.1} parent=0 // pred_check_branch
    %3261 = sbr.rel (0) target = $region57
  $region56: #{worker_forward.1} parent=0 // pred_region
    _
  $region57: #{worker_forward.1} parent=0 // pred_fallthru
    _
  // Predicated region
  $region58: #{worker_forward.1} parent=0 // pred_check
    _
  $region59: #{worker_forward.1} parent=0 // pred_check_branch
    %3263 = sbr.rel (0) target = $region61
  $region60: #{worker_forward.1} parent=0 // pred_region
    _
  $region61: #{worker_forward.1} parent=0 // pred_fallthru
    _
  // Predicated region
  $region62: #{worker_forward.1} parent=0 // pred_check
    _
  $region63: #{worker_forward.1} parent=0 // pred_check_branch
    %3265 = sbr.rel (0) target = $region65
  $region64: #{worker_forward.1} parent=0 // pred_region
    _
  $region65: #{worker_forward.1} parent=0 // pred_fallthru
    _

</llo_original>
